<compile_context>
chip_gen: v7x
topology: tpu7x:2x2x1
jax: 0.10.0
libtpu: 0.0.40
codegen_flags: <defaults>
</compile_context>

<pallas_src>
import enum
from functools import partial

import numpy as np
import jax
import jax.numpy as jnp
from jax import lax
from jax.experimental import pallas as pl
from jax.experimental.pallas import tpu as pltpu


class NodeType(enum.Enum):
    AGENT = 0
    OBJECT = 1


class EdgeType(enum.Enum):
    AGENT_TO_AGENT = 0
    OBJECT_TO_AGENT = 1
    OBJECT_TO_OBJECT = 2


NODE_TYPES = [NodeType.AGENT, NodeType.OBJECT]
EDGE_TYPES = [EdgeType.AGENT_TO_AGENT, EdgeType.OBJECT_TO_AGENT, EdgeType.OBJECT_TO_OBJECT]

LANE = 128       # padded feature width (lane-dense working layout)
NEG_BIG = 1e9


# --------------------------- Fused Pallas kernel ---------------------------

def _rho_fused_kernel(x_ref, mask_ref, bias_ref, wqkv_ref, bqkv_ref, wo_ref, bo_ref,
                      gamma_ref, beta_ref, out_ref, *,
                      n_agent, n_valid, d_real, num_heads, head_dim,
                      add_residual_first, eps):
    # x_ref    : [n_pad, 128]           node features, global order, zero padded
    # mask_ref : [n_pad, n_pad]         mask[dst, src] in {0,1}
    # bias_ref : [2, H, n_pad, n_pad]   per-layer per-head additive logit bias
    # wqkv_ref : [2, 2, 128, 384]       per-layer / per-node-type [Wq|Wk|Wv] (zero padded)
    # bqkv_ref : [2, 2, 1, 384], wo_ref: [2,2,128,128], bo/gamma/beta: [2,2,1,128]
    n_pad, F = x_ref.shape
    n_layers = wqkv_ref.shape[0]
    n_types = wqkv_ref.shape[1]

    col = lax.broadcasted_iota(jnp.int32, (1, F), 1)
    row = lax.broadcasted_iota(jnp.int32, (n_pad, 1), 0)
    feat_mask = (col < d_real).astype(jnp.float32)                           # [1, F]
    type_masks = [
        (row < n_agent).astype(jnp.float32),                                 # AGENT rows
        jnp.logical_and(row >= n_agent, row < n_valid).astype(jnp.float32),  # OBJECT rows
    ]
    head_masks = [
        jnp.logical_and(col >= h * head_dim, col < (h + 1) * head_dim).astype(jnp.float32)
        for h in range(num_heads)
    ]

    mask = mask_ref[...]                       # [n_pad, n_pad]
    add_mask = (mask - 1.0) * NEG_BIG          # 0 where edge, -1e9 where not (incl. padding)
    scale = 1.0 / float(head_dim) ** 0.5
    inv_d = 1.0 / float(d_real)

    h_state = x_ref[...]                       # running node features [n_pad, F]

    for l in range(n_layers):
        # ---- per-node-type fused Q|K|V projection (one matmul per type) ----
        qkv = type_masks[0] * (
            jnp.dot(h_state, wqkv_ref[l, 0], preferred_element_type=jnp.float32)
            + bqkv_ref[l, 0])
        for t in range(1, n_types):
            qkv = qkv + type_masks[t] * (
                jnp.dot(h_state, wqkv_ref[l, t], preferred_element_type=jnp.float32)
                + bqkv_ref[l, t])
        q = qkv[:, 0:F]
        k = qkv[:, F:2 * F]
        v = qkv[:, 2 * F:3 * F]

        # ---- masked multi-head attention (block-diagonal head masking) ----
        o = jnp.zeros((n_pad, F), jnp.float32)
        for hd in range(num_heads):
            hm = head_masks[hd]                                     # [1, F]
            logits = lax.dot_general(q * hm, k, (((1,), (1,)), ((), ())),
                                     preferred_element_type=jnp.float32)  # [n_pad, n_pad]
            logits = logits * scale + bias_ref[l, hd] + add_mask
            m = jnp.max(logits, axis=-1, keepdims=True)
            pexp = jnp.exp(logits - m)
            denom = jnp.sum(pexp, axis=-1, keepdims=True)
            attw = pexp * pl.reciprocal(denom, approx=True) * mask  # rows w/o edges -> 0
            o = o + jnp.dot(attw, v * hm, preferred_element_type=jnp.float32)

        # ---- per-node-type output projection ----
        z = type_masks[0] * (
            jnp.dot(o, wo_ref[l, 0], preferred_element_type=jnp.float32) + bo_ref[l, 0])
        for t in range(1, n_types):
            z = z + type_masks[t] * (
                jnp.dot(o, wo_ref[l, t], preferred_element_type=jnp.float32) + bo_ref[l, t])

        # ---- LayerNorm over the d_real real features + residual ----
        mean = jnp.sum(z * feat_mask, axis=-1, keepdims=True) * inv_d
        cent = (z - mean) * feat_mask
        var = jnp.sum(cent * cent, axis=-1, keepdims=True) * inv_d
        normed = cent * lax.rsqrt(var + eps)
        ln = type_masks[0] * (normed * gamma_ref[l, 0] + beta_ref[l, 0])
        for t in range(1, n_types):
            ln = ln + type_masks[t] * (normed * gamma_ref[l, t] + beta_ref[l, t])

        if l == 0 and not add_residual_first:
            h_state = ln
        else:
            h_state = ln + h_state

    out_ref[...] = h_state


def _call_fused(x, mask, bias, wqkv, bqkv, wo, bo, gamma, beta, *,
                n_agent, n_valid, d_real, num_heads, head_dim, add_residual_first):
    n_pad, F = x.shape
    kernel = partial(_rho_fused_kernel,
                     n_agent=n_agent, n_valid=n_valid, d_real=d_real,
                     num_heads=num_heads, head_dim=head_dim,
                     add_residual_first=add_residual_first, eps=1e-5)
    return pl.pallas_call(
        kernel,
        out_shape=jax.ShapeDtypeStruct((n_pad, F), jnp.float32),
        in_specs=[pl.BlockSpec(memory_space=pltpu.MemorySpace.VMEM)] * 9,
        out_specs=pl.BlockSpec(memory_space=pltpu.MemorySpace.VMEM),
    )(x, mask, bias, wqkv, bqkv, wo, bo, gamma, beta)


# --------------------------- Parameter init (deterministic) ---------------------------

def init_hetero_attention(key, in_dim, edge_dim, num_heads, head_dim):
    out_dim = num_heads * head_dim
    params = {"node": {}, "edge": {}, "out": {}}
    for nt in NODE_TYPES:
        key, k1, k2, k3, k4 = jax.random.split(key, 5)
        params["node"][nt.name] = {
            "Wq": 0.1 * jax.random.normal(k1, (in_dim, out_dim), jnp.float32),
            "Wk": 0.1 * jax.random.normal(k2, (in_dim, out_dim), jnp.float32),
            "Wv": 0.1 * jax.random.normal(k3, (in_dim, out_dim), jnp.float32),
            "bq": jnp.zeros((1, out_dim), jnp.float32),
            "bk": jnp.zeros((1, out_dim), jnp.float32),
            "bv": jnp.zeros((1, out_dim), jnp.float32),
        }
        params["out"][nt.name] = {
            "Wo": 0.1 * jax.random.normal(k4, (out_dim, out_dim), jnp.float32),
            "bo": jnp.zeros((1, out_dim), jnp.float32),
        }
    for et in EDGE_TYPES:
        key, ke = jax.random.split(key)
        params["edge"][et.name] = {
            "We": 0.1 * jax.random.normal(ke, (edge_dim, num_heads), jnp.float32),
            "be": jnp.zeros((1, num_heads), jnp.float32),
        }
    return params


def init_residual_block(out_dim):
    # torch.nn.LayerNorm default init: weight = 1, bias = 0
    return {
        nt.name: {
            "gamma": jnp.ones((1, out_dim), jnp.float32),
            "beta": jnp.zeros((1, out_dim), jnp.float32),
        }
        for nt in NODE_TYPES
    }


def init_rho_nn(key, num_att_heads, head_dim, in_dim, edge_dim):
    out_dim = num_att_heads * head_dim
    k1, k2 = jax.random.split(key)
    return {
        "l1": init_hetero_attention(k1, in_dim, edge_dim, num_att_heads, head_dim),
        "ln1": init_residual_block(out_dim),
        "l2": init_hetero_attention(k2, out_dim, edge_dim, num_att_heads, head_dim),
        "ln2": init_residual_block(out_dim),
    }


# --------------------------- Host-side packing / glue (no scatter) ---------------------------

def _pad2(a, r, c):
    a = a.astype(jnp.float32)
    return jnp.pad(a, ((0, r - a.shape[0]), (0, c - a.shape[1])))


def _pack_params(params):
    """Stack padded weights as [num_layers, num_node_types, ...]."""
    wqkv_l, bqkv_l, wo_l, bo_l, g_l, b_l = [], [], [], [], [], []
    for lkey, lnkey in (("l1", "ln1"), ("l2", "ln2")):
        lp, lnp = params[lkey], params[lnkey]
        wqkv_t, bqkv_t, wo_t, bo_t, g_t, b_t = [], [], [], [], [], []
        for nt in NODE_TYPES:
            pn = lp["node"][nt.name]
            po = lp["out"][nt.name]
            pg = lnp[nt.name]
            wqkv_t.append(jnp.concatenate(
                [_pad2(pn["Wq"], LANE, LANE), _pad2(pn["Wk"], LANE, LANE),
                 _pad2(pn["Wv"], LANE, LANE)], axis=1))
            bqkv_t.append(jnp.concatenate(
                [_pad2(pn["bq"], 1, LANE), _pad2(pn["bk"], 1, LANE),
                 _pad2(pn["bv"], 1, LANE)], axis=1))
            wo_t.append(_pad2(po["Wo"], LANE, LANE))
            bo_t.append(_pad2(po["bo"], 1, LANE))
            g_t.append(_pad2(pg["gamma"], 1, LANE))
            b_t.append(_pad2(pg["beta"], 1, LANE))
        wqkv_l.append(jnp.stack(wqkv_t))
        bqkv_l.append(jnp.stack(bqkv_t))
        wo_l.append(jnp.stack(wo_t))
        bo_l.append(jnp.stack(bo_t))
        g_l.append(jnp.stack(g_t))
        b_l.append(jnp.stack(b_t))
    return (jnp.stack(wqkv_l), jnp.stack(bqkv_l), jnp.stack(wo_l),
            jnp.stack(bo_l), jnp.stack(g_l), jnp.stack(b_l))


def _build_edge_static(edge_index_dict, present_ets, n_pad):
    """Static (trace-time, numpy) edge structure -> dense-block gather maps; no XLA scatter."""
    edge_maps = {}
    struct_mask = np.zeros((n_pad, n_pad), np.float32)
    for et in present_ets:
        edges = edge_index_dict[et]
        n_e = len(edges)
        perm = np.full((n_pad * n_pad,), n_e, np.int32)       # sentinel -> appended zero row
        present = np.zeros((n_pad * n_pad, 1), np.float32)
        for e, (src, dst) in enumerate(edges):
            perm[dst * n_pad + src] = e
            present[dst * n_pad + src, 0] = 1.0
            struct_mask[dst, src] = 1.0
        edge_maps[et] = (perm, present)
    return edge_maps, struct_mask


# --------------------------- Forward ---------------------------

def rho_nn_forward(params, X, node_index_dict, A, E, edge_index_dict,
                   num_heads, head_dim, n_total):
    out_dim = num_heads * head_dim
    assert out_dim <= LANE
    n_pad = max(8, pl.cdiv(n_total, 8) * 8)

    # Node-type row ranges must be contiguous [AGENT | OBJECT] so we can use plain
    # concatenation / slicing instead of XLA scatter-gather.
    agent_idx = list(node_index_dict.get(NodeType.AGENT, []))
    object_idx = list(node_index_dict.get(NodeType.OBJECT, []))
    n_agent = len(agent_idx)
    assert agent_idx == list(range(0, n_agent))
    assert object_idx == list(range(n_agent, n_total))
    # TODO(synk): support non-contiguous node orderings via a one-time static permutation.

    xs = []
    if NodeType.AGENT in X:
        xs.append(X[NodeType.AGENT].astype(jnp.float32))
    if NodeType.OBJECT in X:
        xs.append(X[NodeType.OBJECT].astype(jnp.float32))
    x_all = jnp.concatenate(xs, axis=0)
    in_dim = x_all.shape[1]
    assert in_dim <= LANE
    x_all = jnp.pad(x_all, ((0, n_pad - x_all.shape[0]), (0, LANE - in_dim)))

    # Static edge structure (numpy at trace time) -> gather maps + structural mask.
    present_ets = [et for et in EDGE_TYPES if et in E and et in edge_index_dict]
    edge_maps, struct_mask = _build_edge_static(edge_index_dict, present_ets, n_pad)

    A_pad = jnp.pad(A.astype(jnp.float32),
                    ((0, n_pad - n_total), (0, n_pad - n_total)))
    mask = jnp.asarray(struct_mask) * A_pad.T          # mask[dst, src]

    # Dense per-edge-type feature blocks (static-index gather, shared by both layers).
    eblocks = []
    for et in present_ets:
        perm, present = edge_maps[et]
        e_feat = E[et].astype(jnp.float32)
        e_feat = jnp.concatenate([e_feat, jnp.zeros((1, e_feat.shape[1]), jnp.float32)], axis=0)
        eblocks.append((et, e_feat[jnp.asarray(perm)], jnp.asarray(present)))

    # Per-layer additive attention-logit bias  [2, H, n_pad, n_pad]  (dst-major).
    biases = []
    for lkey in ("l1", "l2"):
        bflat = jnp.zeros((n_pad * n_pad, num_heads), jnp.float32)
        for et, eb, present in eblocks:
            pe = params[lkey]["edge"][et.name]
            bflat = bflat + eb @ pe["We"] + present * pe["be"]
        biases.append(bflat.reshape(n_pad, n_pad, num_heads).transpose(2, 0, 1))
    bias = jnp.stack(biases)

    wqkv, bqkv, wo, bo, gamma, beta = _pack_params(params)

    out = _call_fused(x_all, mask, bias, wqkv, bqkv, wo, bo, gamma, beta,
                      n_agent=n_agent, n_valid=n_total, d_real=out_dim,
                      num_heads=num_heads, head_dim=head_dim,
                      add_residual_first=(in_dim == out_dim))

    z = {}
    if NodeType.AGENT in X:
        z[NodeType.AGENT] = out[0:n_agent, 0:out_dim]
    if NodeType.OBJECT in X:
        z[NodeType.OBJECT] = out[n_agent:n_total, 0:out_dim]
    return z


# --------------------------- Pure-JAX reference (for verification) ---------------------------

def _reference_forward(params, X, node_index_dict, A, E, edge_index_dict,
                       num_heads, head_dim, n_total):
    out_dim = num_heads * head_dim
    Af = A.astype(jnp.float32)

    def attention(lp, Xd):
        Q = jnp.zeros((n_total, out_dim), jnp.float32)
        K = jnp.zeros((n_total, out_dim), jnp.float32)
        V = jnp.zeros((n_total, out_dim), jnp.float32)
        for nt in NODE_TYPES:
            if nt not in Xd:
                continue
            idx = jnp.asarray(node_index_dict[nt], jnp.int32)
            p = lp["node"][nt.name]
            xv = Xd[nt].astype(jnp.float32)
            Q = Q.at[idx].set(xv @ p["Wq"] + p["bq"])
            K = K.at[idx].set(xv @ p["Wk"] + p["bk"])
            V = V.at[idx].set(xv @ p["Wv"] + p["bv"])
        bias = jnp.zeros((num_heads, n_total, n_total), jnp.float32)
        mask = jnp.zeros((n_total, n_total), jnp.float32)
        for et in EDGE_TYPES:
            if et not in E or et not in edge_index_dict:
                continue
            pe = lp["edge"][et.name]
            eidx = jnp.asarray(edge_index_dict[et], jnp.int32)
            elog = E[et].astype(jnp.float32) @ pe["We"] + pe["be"]
            bias = bias.at[:, eidx[:, 1], eidx[:, 0]].add(elog.T)
            mask = mask.at[eidx[:, 1], eidx[:, 0]].set(1.0)
        mask = mask * Af.T
        qh = Q.reshape(n_total, num_heads, head_dim).transpose(1, 0, 2)
        kh = K.reshape(n_total, num_heads, head_dim).transpose(1, 0, 2)
        vh = V.reshape(n_total, num_heads, head_dim).transpose(1, 0, 2)
        logits = jnp.einsum("hnd,hmd->hnm", qh, kh) / float(head_dim) ** 0.5 + bias
        logits = jnp.where(mask[None] > 0, logits, -NEG_BIG)
        attw = jax.nn.softmax(logits, axis=-1) * mask[None]
        attn = jnp.einsum("hnm,hmd->hnd", attw, vh).transpose(1, 0, 2).reshape(n_total, out_dim)
        z = {}
        for nt in NODE_TYPES:
            if nt not in Xd:
                continue
            idx = jnp.asarray(node_index_dict[nt], jnp.int32)
            po = lp["out"][nt.name]
            z[nt] = attn[idx] @ po["Wo"] + po["bo"]
        return z

    def resblock(lnp, Xd, z):
        out = {}
        for nt, zv in z.items():
            g = lnp[nt.name]
            mean = zv.mean(-1, keepdims=True)
            var = ((zv - mean) ** 2).mean(-1, keepdims=True)
            normed = (zv - mean) / jnp.sqrt(var + 1e-5) * g["gamma"] + g["beta"]
            if nt in Xd and Xd[nt].shape == normed.shape:
                normed = normed + Xd[nt]
            out[nt] = normed
        return out

    z1 = resblock(params["ln1"], X, attention(params["l1"], X))
    z2 = resblock(params["ln2"], z1, attention(params["l2"], z1))
    return z2


# --------------------------- Demo ---------------------------

if __name__ == "__main__":
    num_att_heads, head_dim = 4, 8
    out_dim = num_att_heads * head_dim
    in_dim = out_dim          # matching shapes -> residuals taken in both blocks
    edge_dim = 8
    n_agent, n_object = 4, 8
    N = n_agent + n_object

    key = jax.random.PRNGKey(0)
    key, kx1, kx2, ke1, ke2, ke3, kp = jax.random.split(key, 7)

    X = {
        NodeType.AGENT: jax.random.normal(kx1, (n_agent, in_dim), jnp.float32),
        NodeType.OBJECT: jax.random.normal(kx2, (n_object, in_dim), jnp.float32),
    }
    node_index_dict = {
        NodeType.AGENT: list(range(0, n_agent)),
        NodeType.OBJECT: list(range(n_agent, N)),
    }
    agent_ids = node_index_dict[NodeType.AGENT]
    obj_ids = node_index_dict[NodeType.OBJECT]
    edge_index_dict = {
        EdgeType.AGENT_TO_AGENT: [(s, d) for s in agent_ids for d in agent_ids],
        EdgeType.OBJECT_TO_AGENT: [(s, d) for s in obj_ids for d in agent_ids],
        EdgeType.OBJECT_TO_OBJECT: [(s, d) for s in obj_ids for d in obj_ids],
    }
    E = {
        EdgeType.AGENT_TO_AGENT: jax.random.normal(
            ke1, (len(edge_index_dict[EdgeType.AGENT_TO_AGENT]), edge_dim), jnp.float32),
        EdgeType.OBJECT_TO_AGENT: jax.random.normal(
            ke2, (len(edge_index_dict[EdgeType.OBJECT_TO_AGENT]), edge_dim), jnp.float32),
        EdgeType.OBJECT_TO_OBJECT: jax.random.normal(
            ke3, (len(edge_index_dict[EdgeType.OBJECT_TO_OBJECT]), edge_dim), jnp.float32),
    }
    A = jnp.ones((N, N), jnp.float32)   # A[src, dst] = 1 means connection allowed

    params = init_rho_nn(kp, num_att_heads, head_dim, in_dim, edge_dim)

    z = rho_nn_forward(params, X, node_index_dict, A, E, edge_index_dict,
                       num_att_heads, head_dim, N)
    for v in z.values():
        jax.block_until_ready(v)

    ref = _reference_forward(params, X, node_index_dict, A, E, edge_index_dict,
                             num_att_heads, head_dim, N)

    for nt, v in z.items():
        assert v.shape == (len(node_index_dict[nt]), out_dim)
        assert bool(jnp.all(jnp.isfinite(v)))
        np.testing.assert_allclose(np.asarray(v), np.asarray(ref[nt]),
                                   rtol=5e-2, atol=5e-2)
    print("KERNEL_OK")
</pallas_src>

<mosaic_0001>
module attributes {stable_mosaic.version = 11 : i64} {
  func.func @_rho_fused_kernel(%arg0: memref<16x128xf32, #tpu.memory_space<vmem>>, %arg1: memref<16x16xf32, #tpu.memory_space<vmem>>, %arg2: memref<2x4x16x16xf32, #tpu.memory_space<vmem>>, %arg3: memref<2x2x128x384xf32, #tpu.memory_space<vmem>>, %arg4: memref<2x2x1x384xf32, #tpu.memory_space<vmem>>, %arg5: memref<2x2x128x128xf32, #tpu.memory_space<vmem>>, %arg6: memref<2x2x1x128xf32, #tpu.memory_space<vmem>>, %arg7: memref<2x2x1x128xf32, #tpu.memory_space<vmem>>, %arg8: memref<2x2x1x128xf32, #tpu.memory_space<vmem>>, %arg9: memref<16x128xf32, #tpu.memory_space<vmem>>) attributes {dimension_semantics = [], scalar_prefetch = 0 : i64, scratch_operands = 0 : i64, tpu.core_type = #tpu.core_type<tc>} {
    %0 = tpu.iota {dimensions = array<i32: 1>} : vector<1x128xi32>
    %1 = tpu.iota {dimensions = array<i32: 0>} : vector<16x1xi32>
    %c32_i32 = arith.constant 32 : i32
    %2 = vector.broadcast %c32_i32 : i32 to vector<1x128xi32>
    %3 = arith.cmpi slt, %0, %2 : vector<1x128xi32>
    %4 = arith.extui %3 : vector<1x128xi1> to vector<1x128xi32>
    %5 = arith.sitofp %4 : vector<1x128xi32> to vector<1x128xf32>
    %c4_i32 = arith.constant 4 : i32
    %6 = vector.broadcast %c4_i32 : i32 to vector<16x1xi32>
    %7 = arith.cmpi slt, %1, %6 : vector<16x1xi32>
    %8 = arith.extui %7 : vector<16x1xi1> to vector<16x1xi32>
    %9 = arith.sitofp %8 : vector<16x1xi32> to vector<16x1xf32>
    %c4_i32_0 = arith.constant 4 : i32
    %10 = vector.broadcast %c4_i32_0 : i32 to vector<16x1xi32>
    %11 = arith.cmpi sge, %1, %10 : vector<16x1xi32>
    %c12_i32 = arith.constant 12 : i32
    %12 = vector.broadcast %c12_i32 : i32 to vector<16x1xi32>
    %13 = arith.cmpi slt, %1, %12 : vector<16x1xi32>
    %14 = arith.andi %11, %13 : vector<16x1xi1>
    %15 = arith.extui %14 : vector<16x1xi1> to vector<16x1xi32>
    %16 = arith.sitofp %15 : vector<16x1xi32> to vector<16x1xf32>
    %c0_i32 = arith.constant 0 : i32
    %17 = vector.broadcast %c0_i32 : i32 to vector<1x128xi32>
    %18 = arith.cmpi sge, %0, %17 : vector<1x128xi32>
    %c8_i32 = arith.constant 8 : i32
    %19 = vector.broadcast %c8_i32 : i32 to vector<1x128xi32>
    %20 = arith.cmpi slt, %0, %19 : vector<1x128xi32>
    %21 = arith.andi %18, %20 : vector<1x128xi1>
    %22 = arith.extui %21 : vector<1x128xi1> to vector<1x128xi32>
    %23 = arith.sitofp %22 : vector<1x128xi32> to vector<1x128xf32>
    %c8_i32_1 = arith.constant 8 : i32
    %24 = vector.broadcast %c8_i32_1 : i32 to vector<1x128xi32>
    %25 = arith.cmpi sge, %0, %24 : vector<1x128xi32>
    %c16_i32 = arith.constant 16 : i32
    %26 = vector.broadcast %c16_i32 : i32 to vector<1x128xi32>
    %27 = arith.cmpi slt, %0, %26 : vector<1x128xi32>
    %28 = arith.andi %25, %27 : vector<1x128xi1>
    %29 = arith.extui %28 : vector<1x128xi1> to vector<1x128xi32>
    %30 = arith.sitofp %29 : vector<1x128xi32> to vector<1x128xf32>
    %c16_i32_2 = arith.constant 16 : i32
    %31 = vector.broadcast %c16_i32_2 : i32 to vector<1x128xi32>
    %32 = arith.cmpi sge, %0, %31 : vector<1x128xi32>
    %c24_i32 = arith.constant 24 : i32
    %33 = vector.broadcast %c24_i32 : i32 to vector<1x128xi32>
    %34 = arith.cmpi slt, %0, %33 : vector<1x128xi32>
    %35 = arith.andi %32, %34 : vector<1x128xi1>
    %36 = arith.extui %35 : vector<1x128xi1> to vector<1x128xi32>
    %37 = arith.sitofp %36 : vector<1x128xi32> to vector<1x128xf32>
    %c24_i32_3 = arith.constant 24 : i32
    %38 = vector.broadcast %c24_i32_3 : i32 to vector<1x128xi32>
    %39 = arith.cmpi sge, %0, %38 : vector<1x128xi32>
    %c32_i32_4 = arith.constant 32 : i32
    %40 = vector.broadcast %c32_i32_4 : i32 to vector<1x128xi32>
    %41 = arith.cmpi slt, %0, %40 : vector<1x128xi32>
    %42 = arith.andi %39, %41 : vector<1x128xi1>
    %43 = arith.extui %42 : vector<1x128xi1> to vector<1x128xi32>
    %44 = arith.sitofp %43 : vector<1x128xi32> to vector<1x128xf32>
    %c0 = arith.constant 0 : index
    %c0_5 = arith.constant 0 : index
    %45 = vector.load %arg1[%c0, %c0_5] : memref<16x16xf32, #tpu.memory_space<vmem>>, vector<16x16xf32>
    %cst = arith.constant 1.000000e+00 : f32
    %46 = vector.broadcast %cst : f32 to vector<16x16xf32>
    %47 = arith.subf %45, %46 : vector<16x16xf32>
    %cst_6 = arith.constant 1.000000e+09 : f32
    %48 = vector.broadcast %cst_6 : f32 to vector<16x16xf32>
    %49 = arith.mulf %47, %48 : vector<16x16xf32>
    %c0_7 = arith.constant 0 : index
    %c0_8 = arith.constant 0 : index
    %50 = vector.load %arg0[%c0_7, %c0_8] : memref<16x128xf32, #tpu.memory_space<vmem>>, vector<16x128xf32>
    %c0_9 = arith.constant 0 : index
    %c0_10 = arith.constant 0 : index
    %c0_11 = arith.constant 0 : index
    %c0_12 = arith.constant 0 : index
    %51 = vector.load %arg3[%c0_9, %c0_10, %c0_11, %c0_12] : memref<2x2x128x384xf32, #tpu.memory_space<vmem>>, vector<1x1x128x384xf32>
    %52 = vector.shape_cast %51 : vector<1x1x128x384xf32> to vector<128x384xf32>
    %cst_13 = arith.constant dense<0.000000e+00> : vector<16x384xf32>
    %53 = tpu.matmul %50, %52, %cst_13 {dimension_numbers = #tpu.dot_dimension_numbers<[1], [0], [0], [1], [0, 0, 1, 1], [], []>} : vector<16x128xf32>, vector<128x384xf32>, vector<16x384xf32> -> vector<16x384xf32>
    %c0_14 = arith.constant 0 : index
    %c0_15 = arith.constant 0 : index
    %c0_16 = arith.constant 0 : index
    %c0_17 = arith.constant 0 : index
    %54 = vector.load %arg4[%c0_14, %c0_15, %c0_16, %c0_17] : memref<2x2x1x384xf32, #tpu.memory_space<vmem>>, vector<1x1x1x384xf32>
    %55 = vector.shape_cast %54 : vector<1x1x1x384xf32> to vector<1x384xf32>
    %56 = vector.broadcast %55 : vector<1x384xf32> to vector<16x384xf32>
    %57 = arith.addf %53, %56 : vector<16x384xf32>
    %58 = vector.broadcast %9 : vector<16x1xf32> to vector<16x384xf32>
    %59 = arith.mulf %58, %57 : vector<16x384xf32>
    %c0_18 = arith.constant 0 : index
    %c1 = arith.constant 1 : index
    %c0_19 = arith.constant 0 : index
    %c0_20 = arith.constant 0 : index
    %60 = vector.load %arg3[%c0_18, %c1, %c0_19, %c0_20] : memref<2x2x128x384xf32, #tpu.memory_space<vmem>>, vector<1x1x128x384xf32>
    %61 = vector.shape_cast %60 : vector<1x1x128x384xf32> to vector<128x384xf32>
    %cst_21 = arith.constant dense<0.000000e+00> : vector<16x384xf32>
    %62 = tpu.matmul %50, %61, %cst_21 {dimension_numbers = #tpu.dot_dimension_numbers<[1], [0], [0], [1], [0, 0, 1, 1], [], []>} : vector<16x128xf32>, vector<128x384xf32>, vector<16x384xf32> -> vector<16x384xf32>
    %c0_22 = arith.constant 0 : index
    %c1_23 = arith.constant 1 : index
    %c0_24 = arith.constant 0 : index
    %c0_25 = arith.constant 0 : index
    %63 = vector.load %arg4[%c0_22, %c1_23, %c0_24, %c0_25] : memref<2x2x1x384xf32, #tpu.memory_space<vmem>>, vector<1x1x1x384xf32>
    %64 = vector.shape_cast %63 : vector<1x1x1x384xf32> to vector<1x384xf32>
    %65 = vector.broadcast %64 : vector<1x384xf32> to vector<16x384xf32>
    %66 = arith.addf %62, %65 : vector<16x384xf32>
    %67 = vector.broadcast %16 : vector<16x1xf32> to vector<16x384xf32>
    %68 = arith.mulf %67, %66 : vector<16x384xf32>
    %69 = arith.addf %59, %68 : vector<16x384xf32>
    %70 = vector.extract_strided_slice %69 {offsets = [0, 0], sizes = [16, 128], strides = [1, 1]} : vector<16x384xf32> to vector<16x128xf32>
    %71 = vector.extract_strided_slice %69 {offsets = [0, 128], sizes = [16, 128], strides = [1, 1]} : vector<16x384xf32> to vector<16x128xf32>
    %72 = vector.extract_strided_slice %69 {offsets = [0, 256], sizes = [16, 128], strides = [1, 1]} : vector<16x384xf32> to vector<16x128xf32>
    %cst_26 = arith.constant 0.000000e+00 : f32
    %73 = vector.broadcast %cst_26 : f32 to vector<16x128xf32>
    %74 = vector.broadcast %23 : vector<1x128xf32> to vector<16x128xf32>
    %75 = arith.mulf %70, %74 : vector<16x128xf32>
    %cst_27 = arith.constant dense<0.000000e+00> : vector<16x16xf32>
    %76 = tpu.matmul %75, %71, %cst_27 {dimension_numbers = #tpu.dot_dimension_numbers<[1], [1], [0], [0], [0, 0, 1, 0], [], []>} : vector<16x128xf32>, vector<16x128xf32>, vector<16x16xf32> -> vector<16x16xf32>
    %cst_28 = arith.constant 0.353553385 : f32
    %77 = vector.broadcast %cst_28 : f32 to vector<16x16xf32>
    %78 = arith.mulf %76, %77 : vector<16x16xf32>
    %c0_29 = arith.constant 0 : index
    %c0_30 = arith.constant 0 : index
    %c0_31 = arith.constant 0 : index
    %c0_32 = arith.constant 0 : index
    %79 = vector.load %arg2[%c0_29, %c0_30, %c0_31, %c0_32] : memref<2x4x16x16xf32, #tpu.memory_space<vmem>>, vector<1x1x16x16xf32>
    %80 = vector.shape_cast %79 : vector<1x1x16x16xf32> to vector<16x16xf32>
    %81 = arith.addf %78, %80 : vector<16x16xf32>
    %82 = arith.addf %81, %49 : vector<16x16xf32>
    %cst_33 = arith.constant dense<0xFF800000> : vector<16xf32>
    %83 = vector.multi_reduction <maximumf>, %82, %cst_33 [1] : vector<16x16xf32> to vector<16xf32>
    %84 = vector.shape_cast %83 : vector<16xf32> to vector<16x1xf32>
    %85 = vector.broadcast %84 : vector<16x1xf32> to vector<16x16xf32>
    %86 = arith.subf %82, %85 : vector<16x16xf32>
    %87 = math.exp %86 : vector<16x16xf32>
    %cst_34 = arith.constant dense<0.000000e+00> : vector<16xf32>
    %88 = vector.multi_reduction <add>, %87, %cst_34 [1] : vector<16x16xf32> to vector<16xf32>
    %89 = vector.shape_cast %88 : vector<16xf32> to vector<16x1xf32>
    %90 = tpu.reciprocal %89 {approx = true} : vector<16x1xf32> -> vector<16x1xf32>
    %91 = vector.broadcast %90 : vector<16x1xf32> to vector<16x16xf32>
    %92 = arith.mulf %87, %91 : vector<16x16xf32>
    %93 = arith.mulf %92, %45 : vector<16x16xf32>
    %94 = vector.broadcast %23 : vector<1x128xf32> to vector<16x128xf32>
    %95 = arith.mulf %72, %94 : vector<16x128xf32>
    %cst_35 = arith.constant dense<0.000000e+00> : vector<16x128xf32>
    %96 = tpu.matmul %93, %95, %cst_35 {dimension_numbers = #tpu.dot_dimension_numbers<[1], [0], [0], [1], [0, 0, 1, 1], [], []>} : vector<16x16xf32>, vector<16x128xf32>, vector<16x128xf32> -> vector<16x128xf32>
    %97 = arith.addf %73, %96 : vector<16x128xf32>
    %98 = vector.broadcast %30 : vector<1x128xf32> to vector<16x128xf32>
    %99 = arith.mulf %70, %98 : vector<16x128xf32>
    %cst_36 = arith.constant dense<0.000000e+00> : vector<16x16xf32>
    %100 = tpu.matmul %99, %71, %cst_36 {dimension_numbers = #tpu.dot_dimension_numbers<[1], [1], [0], [0], [0, 0, 1, 0], [], []>} : vector<16x128xf32>, vector<16x128xf32>, vector<16x16xf32> -> vector<16x16xf32>
    %cst_37 = arith.constant 0.353553385 : f32
    %101 = vector.broadcast %cst_37 : f32 to vector<16x16xf32>
    %102 = arith.mulf %100, %101 : vector<16x16xf32>
    %c0_38 = arith.constant 0 : index
    %c1_39 = arith.constant 1 : index
    %c0_40 = arith.constant 0 : index
    %c0_41 = arith.constant 0 : index
    %103 = vector.load %arg2[%c0_38, %c1_39, %c0_40, %c0_41] : memref<2x4x16x16xf32, #tpu.memory_space<vmem>>, vector<1x1x16x16xf32>
    %104 = vector.shape_cast %103 : vector<1x1x16x16xf32> to vector<16x16xf32>
    %105 = arith.addf %102, %104 : vector<16x16xf32>
    %106 = arith.addf %105, %49 : vector<16x16xf32>
    %cst_42 = arith.constant dense<0xFF800000> : vector<16xf32>
    %107 = vector.multi_reduction <maximumf>, %106, %cst_42 [1] : vector<16x16xf32> to vector<16xf32>
    %108 = vector.shape_cast %107 : vector<16xf32> to vector<16x1xf32>
    %109 = vector.broadcast %108 : vector<16x1xf32> to vector<16x16xf32>
    %110 = arith.subf %106, %109 : vector<16x16xf32>
    %111 = math.exp %110 : vector<16x16xf32>
    %cst_43 = arith.constant dense<0.000000e+00> : vector<16xf32>
    %112 = vector.multi_reduction <add>, %111, %cst_43 [1] : vector<16x16xf32> to vector<16xf32>
    %113 = vector.shape_cast %112 : vector<16xf32> to vector<16x1xf32>
    %114 = tpu.reciprocal %113 {approx = true} : vector<16x1xf32> -> vector<16x1xf32>
    %115 = vector.broadcast %114 : vector<16x1xf32> to vector<16x16xf32>
    %116 = arith.mulf %111, %115 : vector<16x16xf32>
    %117 = arith.mulf %116, %45 : vector<16x16xf32>
    %118 = vector.broadcast %30 : vector<1x128xf32> to vector<16x128xf32>
    %119 = arith.mulf %72, %118 : vector<16x128xf32>
    %cst_44 = arith.constant dense<0.000000e+00> : vector<16x128xf32>
    %120 = tpu.matmul %117, %119, %cst_44 {dimension_numbers = #tpu.dot_dimension_numbers<[1], [0], [0], [1], [0, 0, 1, 1], [], []>} : vector<16x16xf32>, vector<16x128xf32>, vector<16x128xf32> -> vector<16x128xf32>
    %121 = arith.addf %97, %120 : vector<16x128xf32>
    %122 = vector.broadcast %37 : vector<1x128xf32> to vector<16x128xf32>
    %123 = arith.mulf %70, %122 : vector<16x128xf32>
    %cst_45 = arith.constant dense<0.000000e+00> : vector<16x16xf32>
    %124 = tpu.matmul %123, %71, %cst_45 {dimension_numbers = #tpu.dot_dimension_numbers<[1], [1], [0], [0], [0, 0, 1, 0], [], []>} : vector<16x128xf32>, vector<16x128xf32>, vector<16x16xf32> -> vector<16x16xf32>
    %cst_46 = arith.constant 0.353553385 : f32
    %125 = vector.broadcast %cst_46 : f32 to vector<16x16xf32>
    %126 = arith.mulf %124, %125 : vector<16x16xf32>
    %c0_47 = arith.constant 0 : index
    %c2 = arith.constant 2 : index
    %c0_48 = arith.constant 0 : index
    %c0_49 = arith.constant 0 : index
    %127 = vector.load %arg2[%c0_47, %c2, %c0_48, %c0_49] : memref<2x4x16x16xf32, #tpu.memory_space<vmem>>, vector<1x1x16x16xf32>
    %128 = vector.shape_cast %127 : vector<1x1x16x16xf32> to vector<16x16xf32>
    %129 = arith.addf %126, %128 : vector<16x16xf32>
    %130 = arith.addf %129, %49 : vector<16x16xf32>
    %cst_50 = arith.constant dense<0xFF800000> : vector<16xf32>
    %131 = vector.multi_reduction <maximumf>, %130, %cst_50 [1] : vector<16x16xf32> to vector<16xf32>
    %132 = vector.shape_cast %131 : vector<16xf32> to vector<16x1xf32>
    %133 = vector.broadcast %132 : vector<16x1xf32> to vector<16x16xf32>
    %134 = arith.subf %130, %133 : vector<16x16xf32>
    %135 = math.exp %134 : vector<16x16xf32>
    %cst_51 = arith.constant dense<0.000000e+00> : vector<16xf32>
    %136 = vector.multi_reduction <add>, %135, %cst_51 [1] : vector<16x16xf32> to vector<16xf32>
    %137 = vector.shape_cast %136 : vector<16xf32> to vector<16x1xf32>
    %138 = tpu.reciprocal %137 {approx = true} : vector<16x1xf32> -> vector<16x1xf32>
    %139 = vector.broadcast %138 : vector<16x1xf32> to vector<16x16xf32>
    %140 = arith.mulf %135, %139 : vector<16x16xf32>
    %141 = arith.mulf %140, %45 : vector<16x16xf32>
    %142 = vector.broadcast %37 : vector<1x128xf32> to vector<16x128xf32>
    %143 = arith.mulf %72, %142 : vector<16x128xf32>
    %cst_52 = arith.constant dense<0.000000e+00> : vector<16x128xf32>
    %144 = tpu.matmul %141, %143, %cst_52 {dimension_numbers = #tpu.dot_dimension_numbers<[1], [0], [0], [1], [0, 0, 1, 1], [], []>} : vector<16x16xf32>, vector<16x128xf32>, vector<16x128xf32> -> vector<16x128xf32>
    %145 = arith.addf %121, %144 : vector<16x128xf32>
    %146 = vector.broadcast %44 : vector<1x128xf32> to vector<16x128xf32>
    %147 = arith.mulf %70, %146 : vector<16x128xf32>
    %cst_53 = arith.constant dense<0.000000e+00> : vector<16x16xf32>
    %148 = tpu.matmul %147, %71, %cst_53 {dimension_numbers = #tpu.dot_dimension_numbers<[1], [1], [0], [0], [0, 0, 1, 0], [], []>} : vector<16x128xf32>, vector<16x128xf32>, vector<16x16xf32> -> vector<16x16xf32>
    %cst_54 = arith.constant 0.353553385 : f32
    %149 = vector.broadcast %cst_54 : f32 to vector<16x16xf32>
    %150 = arith.mulf %148, %149 : vector<16x16xf32>
    %c0_55 = arith.constant 0 : index
    %c3 = arith.constant 3 : index
    %c0_56 = arith.constant 0 : index
    %c0_57 = arith.constant 0 : index
    %151 = vector.load %arg2[%c0_55, %c3, %c0_56, %c0_57] : memref<2x4x16x16xf32, #tpu.memory_space<vmem>>, vector<1x1x16x16xf32>
    %152 = vector.shape_cast %151 : vector<1x1x16x16xf32> to vector<16x16xf32>
    %153 = arith.addf %150, %152 : vector<16x16xf32>
    %154 = arith.addf %153, %49 : vector<16x16xf32>
    %cst_58 = arith.constant dense<0xFF800000> : vector<16xf32>
    %155 = vector.multi_reduction <maximumf>, %154, %cst_58 [1] : vector<16x16xf32> to vector<16xf32>
    %156 = vector.shape_cast %155 : vector<16xf32> to vector<16x1xf32>
    %157 = vector.broadcast %156 : vector<16x1xf32> to vector<16x16xf32>
    %158 = arith.subf %154, %157 : vector<16x16xf32>
    %159 = math.exp %158 : vector<16x16xf32>
    %cst_59 = arith.constant dense<0.000000e+00> : vector<16xf32>
    %160 = vector.multi_reduction <add>, %159, %cst_59 [1] : vector<16x16xf32> to vector<16xf32>
    %161 = vector.shape_cast %160 : vector<16xf32> to vector<16x1xf32>
    %162 = tpu.reciprocal %161 {approx = true} : vector<16x1xf32> -> vector<16x1xf32>
    %163 = vector.broadcast %162 : vector<16x1xf32> to vector<16x16xf32>
    %164 = arith.mulf %159, %163 : vector<16x16xf32>
    %165 = arith.mulf %164, %45 : vector<16x16xf32>
    %166 = vector.broadcast %44 : vector<1x128xf32> to vector<16x128xf32>
    %167 = arith.mulf %72, %166 : vector<16x128xf32>
    %cst_60 = arith.constant dense<0.000000e+00> : vector<16x128xf32>
    %168 = tpu.matmul %165, %167, %cst_60 {dimension_numbers = #tpu.dot_dimension_numbers<[1], [0], [0], [1], [0, 0, 1, 1], [], []>} : vector<16x16xf32>, vector<16x128xf32>, vector<16x128xf32> -> vector<16x128xf32>
    %169 = arith.addf %145, %168 : vector<16x128xf32>
    %c0_61 = arith.constant 0 : index
    %c0_62 = arith.constant 0 : index
    %c0_63 = arith.constant 0 : index
    %c0_64 = arith.constant 0 : index
    %170 = vector.load %arg5[%c0_61, %c0_62, %c0_63, %c0_64] : memref<2x2x128x128xf32, #tpu.memory_space<vmem>>, vector<1x1x128x128xf32>
    %171 = vector.shape_cast %170 : vector<1x1x128x128xf32> to vector<128x128xf32>
    %cst_65 = arith.constant dense<0.000000e+00> : vector<16x128xf32>
    %172 = tpu.matmul %169, %171, %cst_65 {dimension_numbers = #tpu.dot_dimension_numbers<[1], [0], [0], [1], [0, 0, 1, 1], [], []>} : vector<16x128xf32>, vector<128x128xf32>, vector<16x128xf32> -> vector<16x128xf32>
    %c0_66 = arith.constant 0 : index
    %c0_67 = arith.constant 0 : index
    %c0_68 = arith.constant 0 : index
    %c0_69 = arith.constant 0 : index
    %173 = vector.load %arg6[%c0_66, %c0_67, %c0_68, %c0_69] : memref<2x2x1x128xf32, #tpu.memory_space<vmem>>, vector<1x1x1x128xf32>
    %174 = vector.shape_cast %173 : vector<1x1x1x128xf32> to vector<1x128xf32>
    %175 = vector.broadcast %174 : vector<1x128xf32> to vector<16x128xf32>
    %176 = arith.addf %172, %175 : vector<16x128xf32>
    %177 = vector.broadcast %9 : vector<16x1xf32> to vector<16x128xf32>
    %178 = arith.mulf %177, %176 : vector<16x128xf32>
    %c0_70 = arith.constant 0 : index
    %c1_71 = arith.constant 1 : index
    %c0_72 = arith.constant 0 : index
    %c0_73 = arith.constant 0 : index
    %179 = vector.load %arg5[%c0_70, %c1_71, %c0_72, %c0_73] : memref<2x2x128x128xf32, #tpu.memory_space<vmem>>, vector<1x1x128x128xf32>
    %180 = vector.shape_cast %179 : vector<1x1x128x128xf32> to vector<128x128xf32>
    %cst_74 = arith.constant dense<0.000000e+00> : vector<16x128xf32>
    %181 = tpu.matmul %169, %180, %cst_74 {dimension_numbers = #tpu.dot_dimension_numbers<[1], [0], [0], [1], [0, 0, 1, 1], [], []>} : vector<16x128xf32>, vector<128x128xf32>, vector<16x128xf32> -> vector<16x128xf32>
    %c0_75 = arith.constant 0 : index
    %c1_76 = arith.constant 1 : index
    %c0_77 = arith.constant 0 : index
    %c0_78 = arith.constant 0 : index
    %182 = vector.load %arg6[%c0_75, %c1_76, %c0_77, %c0_78] : memref<2x2x1x128xf32, #tpu.memory_space<vmem>>, vector<1x1x1x128xf32>
    %183 = vector.shape_cast %182 : vector<1x1x1x128xf32> to vector<1x128xf32>
    %184 = vector.broadcast %183 : vector<1x128xf32> to vector<16x128xf32>
    %185 = arith.addf %181, %184 : vector<16x128xf32>
    %186 = vector.broadcast %16 : vector<16x1xf32> to vector<16x128xf32>
    %187 = arith.mulf %186, %185 : vector<16x128xf32>
    %188 = arith.addf %178, %187 : vector<16x128xf32>
    %189 = vector.broadcast %5 : vector<1x128xf32> to vector<16x128xf32>
    %190 = arith.mulf %188, %189 : vector<16x128xf32>
    %cst_79 = arith.constant dense<0.000000e+00> : vector<16xf32>
    %191 = vector.multi_reduction <add>, %190, %cst_79 [1] : vector<16x128xf32> to vector<16xf32>
    %192 = vector.shape_cast %191 : vector<16xf32> to vector<16x1xf32>
    %cst_80 = arith.constant 3.125000e-02 : f32
    %193 = vector.broadcast %cst_80 : f32 to vector<16x1xf32>
    %194 = arith.mulf %192, %193 : vector<16x1xf32>
    %195 = vector.broadcast %194 : vector<16x1xf32> to vector<16x128xf32>
    %196 = arith.subf %188, %195 : vector<16x128xf32>
    %197 = vector.broadcast %5 : vector<1x128xf32> to vector<16x128xf32>
    %198 = arith.mulf %196, %197 : vector<16x128xf32>
    %199 = arith.mulf %198, %198 : vector<16x128xf32>
    %cst_81 = arith.constant dense<0.000000e+00> : vector<16xf32>
    %200 = vector.multi_reduction <add>, %199, %cst_81 [1] : vector<16x128xf32> to vector<16xf32>
    %201 = vector.shape_cast %200 : vector<16xf32> to vector<16x1xf32>
    %cst_82 = arith.constant 3.125000e-02 : f32
    %202 = vector.broadcast %cst_82 : f32 to vector<16x1xf32>
    %203 = arith.mulf %201, %202 : vector<16x1xf32>
    %cst_83 = arith.constant 9.99999974E-6 : f32
    %204 = vector.broadcast %cst_83 : f32 to vector<16x1xf32>
    %205 = arith.addf %203, %204 : vector<16x1xf32>
    %206 = math.rsqrt %205 : vector<16x1xf32>
    %207 = vector.broadcast %206 : vector<16x1xf32> to vector<16x128xf32>
    %208 = arith.mulf %198, %207 : vector<16x128xf32>
    %c0_84 = arith.constant 0 : index
    %c0_85 = arith.constant 0 : index
    %c0_86 = arith.constant 0 : index
    %c0_87 = arith.constant 0 : index
    %209 = vector.load %arg7[%c0_84, %c0_85, %c0_86, %c0_87] : memref<2x2x1x128xf32, #tpu.memory_space<vmem>>, vector<1x1x1x128xf32>
    %210 = vector.shape_cast %209 : vector<1x1x1x128xf32> to vector<1x128xf32>
    %211 = vector.broadcast %210 : vector<1x128xf32> to vector<16x128xf32>
    %212 = arith.mulf %208, %211 : vector<16x128xf32>
    %c0_88 = arith.constant 0 : index
    %c0_89 = arith.constant 0 : index
    %c0_90 = arith.constant 0 : index
    %c0_91 = arith.constant 0 : index
    %213 = vector.load %arg8[%c0_88, %c0_89, %c0_90, %c0_91] : memref<2x2x1x128xf32, #tpu.memory_space<vmem>>, vector<1x1x1x128xf32>
    %214 = vector.shape_cast %213 : vector<1x1x1x128xf32> to vector<1x128xf32>
    %215 = vector.broadcast %214 : vector<1x128xf32> to vector<16x128xf32>
    %216 = arith.addf %212, %215 : vector<16x128xf32>
    %217 = vector.broadcast %9 : vector<16x1xf32> to vector<16x128xf32>
    %218 = arith.mulf %217, %216 : vector<16x128xf32>
    %c0_92 = arith.constant 0 : index
    %c1_93 = arith.constant 1 : index
    %c0_94 = arith.constant 0 : index
    %c0_95 = arith.constant 0 : index
    %219 = vector.load %arg7[%c0_92, %c1_93, %c0_94, %c0_95] : memref<2x2x1x128xf32, #tpu.memory_space<vmem>>, vector<1x1x1x128xf32>
    %220 = vector.shape_cast %219 : vector<1x1x1x128xf32> to vector<1x128xf32>
    %221 = vector.broadcast %220 : vector<1x128xf32> to vector<16x128xf32>
    %222 = arith.mulf %208, %221 : vector<16x128xf32>
    %c0_96 = arith.constant 0 : index
    %c1_97 = arith.constant 1 : index
    %c0_98 = arith.constant 0 : index
    %c0_99 = arith.constant 0 : index
    %223 = vector.load %arg8[%c0_96, %c1_97, %c0_98, %c0_99] : memref<2x2x1x128xf32, #tpu.memory_space<vmem>>, vector<1x1x1x128xf32>
    %224 = vector.shape_cast %223 : vector<1x1x1x128xf32> to vector<1x128xf32>
    %225 = vector.broadcast %224 : vector<1x128xf32> to vector<16x128xf32>
    %226 = arith.addf %222, %225 : vector<16x128xf32>
    %227 = vector.broadcast %16 : vector<16x1xf32> to vector<16x128xf32>
    %228 = arith.mulf %227, %226 : vector<16x128xf32>
    %229 = arith.addf %218, %228 : vector<16x128xf32>
    %230 = arith.addf %229, %50 : vector<16x128xf32>
    %c1_100 = arith.constant 1 : index
    %c0_101 = arith.constant 0 : index
    %c0_102 = arith.constant 0 : index
    %c0_103 = arith.constant 0 : index
    %231 = vector.load %arg3[%c1_100, %c0_101, %c0_102, %c0_103] : memref<2x2x128x384xf32, #tpu.memory_space<vmem>>, vector<1x1x128x384xf32>
    %232 = vector.shape_cast %231 : vector<1x1x128x384xf32> to vector<128x384xf32>
    %cst_104 = arith.constant dense<0.000000e+00> : vector<16x384xf32>
    %233 = tpu.matmul %230, %232, %cst_104 {dimension_numbers = #tpu.dot_dimension_numbers<[1], [0], [0], [1], [0, 0, 1, 1], [], []>} : vector<16x128xf32>, vector<128x384xf32>, vector<16x384xf32> -> vector<16x384xf32>
    %c1_105 = arith.constant 1 : index
    %c0_106 = arith.constant 0 : index
    %c0_107 = arith.constant 0 : index
    %c0_108 = arith.constant 0 : index
    %234 = vector.load %arg4[%c1_105, %c0_106, %c0_107, %c0_108] : memref<2x2x1x384xf32, #tpu.memory_space<vmem>>, vector<1x1x1x384xf32>
    %235 = vector.shape_cast %234 : vector<1x1x1x384xf32> to vector<1x384xf32>
    %236 = vector.broadcast %235 : vector<1x384xf32> to vector<16x384xf32>
    %237 = arith.addf %233, %236 : vector<16x384xf32>
    %238 = vector.broadcast %9 : vector<16x1xf32> to vector<16x384xf32>
    %239 = arith.mulf %238, %237 : vector<16x384xf32>
    %c1_109 = arith.constant 1 : index
    %c1_110 = arith.constant 1 : index
    %c0_111 = arith.constant 0 : index
    %c0_112 = arith.constant 0 : index
    %240 = vector.load %arg3[%c1_109, %c1_110, %c0_111, %c0_112] : memref<2x2x128x384xf32, #tpu.memory_space<vmem>>, vector<1x1x128x384xf32>
    %241 = vector.shape_cast %240 : vector<1x1x128x384xf32> to vector<128x384xf32>
    %cst_113 = arith.constant dense<0.000000e+00> : vector<16x384xf32>
    %242 = tpu.matmul %230, %241, %cst_113 {dimension_numbers = #tpu.dot_dimension_numbers<[1], [0], [0], [1], [0, 0, 1, 1], [], []>} : vector<16x128xf32>, vector<128x384xf32>, vector<16x384xf32> -> vector<16x384xf32>
    %c1_114 = arith.constant 1 : index
    %c1_115 = arith.constant 1 : index
    %c0_116 = arith.constant 0 : index
    %c0_117 = arith.constant 0 : index
    %243 = vector.load %arg4[%c1_114, %c1_115, %c0_116, %c0_117] : memref<2x2x1x384xf32, #tpu.memory_space<vmem>>, vector<1x1x1x384xf32>
    %244 = vector.shape_cast %243 : vector<1x1x1x384xf32> to vector<1x384xf32>
    %245 = vector.broadcast %244 : vector<1x384xf32> to vector<16x384xf32>
    %246 = arith.addf %242, %245 : vector<16x384xf32>
    %247 = vector.broadcast %16 : vector<16x1xf32> to vector<16x384xf32>
    %248 = arith.mulf %247, %246 : vector<16x384xf32>
    %249 = arith.addf %239, %248 : vector<16x384xf32>
    %250 = vector.extract_strided_slice %249 {offsets = [0, 0], sizes = [16, 128], strides = [1, 1]} : vector<16x384xf32> to vector<16x128xf32>
    %251 = vector.extract_strided_slice %249 {offsets = [0, 128], sizes = [16, 128], strides = [1, 1]} : vector<16x384xf32> to vector<16x128xf32>
    %252 = vector.extract_strided_slice %249 {offsets = [0, 256], sizes = [16, 128], strides = [1, 1]} : vector<16x384xf32> to vector<16x128xf32>
    %cst_118 = arith.constant 0.000000e+00 : f32
    %253 = vector.broadcast %cst_118 : f32 to vector<16x128xf32>
    %254 = vector.broadcast %23 : vector<1x128xf32> to vector<16x128xf32>
    %255 = arith.mulf %250, %254 : vector<16x128xf32>
    %cst_119 = arith.constant dense<0.000000e+00> : vector<16x16xf32>
    %256 = tpu.matmul %255, %251, %cst_119 {dimension_numbers = #tpu.dot_dimension_numbers<[1], [1], [0], [0], [0, 0, 1, 0], [], []>} : vector<16x128xf32>, vector<16x128xf32>, vector<16x16xf32> -> vector<16x16xf32>
    %cst_120 = arith.constant 0.353553385 : f32
    %257 = vector.broadcast %cst_120 : f32 to vector<16x16xf32>
    %258 = arith.mulf %256, %257 : vector<16x16xf32>
    %c1_121 = arith.constant 1 : index
    %c0_122 = arith.constant 0 : index
    %c0_123 = arith.constant 0 : index
    %c0_124 = arith.constant 0 : index
    %259 = vector.load %arg2[%c1_121, %c0_122, %c0_123, %c0_124] : memref<2x4x16x16xf32, #tpu.memory_space<vmem>>, vector<1x1x16x16xf32>
    %260 = vector.shape_cast %259 : vector<1x1x16x16xf32> to vector<16x16xf32>
    %261 = arith.addf %258, %260 : vector<16x16xf32>
    %262 = arith.addf %261, %49 : vector<16x16xf32>
    %cst_125 = arith.constant dense<0xFF800000> : vector<16xf32>
    %263 = vector.multi_reduction <maximumf>, %262, %cst_125 [1] : vector<16x16xf32> to vector<16xf32>
    %264 = vector.shape_cast %263 : vector<16xf32> to vector<16x1xf32>
    %265 = vector.broadcast %264 : vector<16x1xf32> to vector<16x16xf32>
    %266 = arith.subf %262, %265 : vector<16x16xf32>
    %267 = math.exp %266 : vector<16x16xf32>
    %cst_126 = arith.constant dense<0.000000e+00> : vector<16xf32>
    %268 = vector.multi_reduction <add>, %267, %cst_126 [1] : vector<16x16xf32> to vector<16xf32>
    %269 = vector.shape_cast %268 : vector<16xf32> to vector<16x1xf32>
    %270 = tpu.reciprocal %269 {approx = true} : vector<16x1xf32> -> vector<16x1xf32>
    %271 = vector.broadcast %270 : vector<16x1xf32> to vector<16x16xf32>
    %272 = arith.mulf %267, %271 : vector<16x16xf32>
    %273 = arith.mulf %272, %45 : vector<16x16xf32>
    %274 = vector.broadcast %23 : vector<1x128xf32> to vector<16x128xf32>
    %275 = arith.mulf %252, %274 : vector<16x128xf32>
    %cst_127 = arith.constant dense<0.000000e+00> : vector<16x128xf32>
    %276 = tpu.matmul %273, %275, %cst_127 {dimension_numbers = #tpu.dot_dimension_numbers<[1], [0], [0], [1], [0, 0, 1, 1], [], []>} : vector<16x16xf32>, vector<16x128xf32>, vector<16x128xf32> -> vector<16x128xf32>
    %277 = arith.addf %253, %276 : vector<16x128xf32>
    %278 = vector.broadcast %30 : vector<1x128xf32> to vector<16x128xf32>
    %279 = arith.mulf %250, %278 : vector<16x128xf32>
    %cst_128 = arith.constant dense<0.000000e+00> : vector<16x16xf32>
    %280 = tpu.matmul %279, %251, %cst_128 {dimension_numbers = #tpu.dot_dimension_numbers<[1], [1], [0], [0], [0, 0, 1, 0], [], []>} : vector<16x128xf32>, vector<16x128xf32>, vector<16x16xf32> -> vector<16x16xf32>
    %cst_129 = arith.constant 0.353553385 : f32
    %281 = vector.broadcast %cst_129 : f32 to vector<16x16xf32>
    %282 = arith.mulf %280, %281 : vector<16x16xf32>
    %c1_130 = arith.constant 1 : index
    %c1_131 = arith.constant 1 : index
    %c0_132 = arith.constant 0 : index
    %c0_133 = arith.constant 0 : index
    %283 = vector.load %arg2[%c1_130, %c1_131, %c0_132, %c0_133] : memref<2x4x16x16xf32, #tpu.memory_space<vmem>>, vector<1x1x16x16xf32>
    %284 = vector.shape_cast %283 : vector<1x1x16x16xf32> to vector<16x16xf32>
    %285 = arith.addf %282, %284 : vector<16x16xf32>
    %286 = arith.addf %285, %49 : vector<16x16xf32>
    %cst_134 = arith.constant dense<0xFF800000> : vector<16xf32>
    %287 = vector.multi_reduction <maximumf>, %286, %cst_134 [1] : vector<16x16xf32> to vector<16xf32>
    %288 = vector.shape_cast %287 : vector<16xf32> to vector<16x1xf32>
    %289 = vector.broadcast %288 : vector<16x1xf32> to vector<16x16xf32>
    %290 = arith.subf %286, %289 : vector<16x16xf32>
    %291 = math.exp %290 : vector<16x16xf32>
    %cst_135 = arith.constant dense<0.000000e+00> : vector<16xf32>
    %292 = vector.multi_reduction <add>, %291, %cst_135 [1] : vector<16x16xf32> to vector<16xf32>
    %293 = vector.shape_cast %292 : vector<16xf32> to vector<16x1xf32>
    %294 = tpu.reciprocal %293 {approx = true} : vector<16x1xf32> -> vector<16x1xf32>
    %295 = vector.broadcast %294 : vector<16x1xf32> to vector<16x16xf32>
    %296 = arith.mulf %291, %295 : vector<16x16xf32>
    %297 = arith.mulf %296, %45 : vector<16x16xf32>
    %298 = vector.broadcast %30 : vector<1x128xf32> to vector<16x128xf32>
    %299 = arith.mulf %252, %298 : vector<16x128xf32>
    %cst_136 = arith.constant dense<0.000000e+00> : vector<16x128xf32>
    %300 = tpu.matmul %297, %299, %cst_136 {dimension_numbers = #tpu.dot_dimension_numbers<[1], [0], [0], [1], [0, 0, 1, 1], [], []>} : vector<16x16xf32>, vector<16x128xf32>, vector<16x128xf32> -> vector<16x128xf32>
    %301 = arith.addf %277, %300 : vector<16x128xf32>
    %302 = vector.broadcast %37 : vector<1x128xf32> to vector<16x128xf32>
    %303 = arith.mulf %250, %302 : vector<16x128xf32>
    %cst_137 = arith.constant dense<0.000000e+00> : vector<16x16xf32>
    %304 = tpu.matmul %303, %251, %cst_137 {dimension_numbers = #tpu.dot_dimension_numbers<[1], [1], [0], [0], [0, 0, 1, 0], [], []>} : vector<16x128xf32>, vector<16x128xf32>, vector<16x16xf32> -> vector<16x16xf32>
    %cst_138 = arith.constant 0.353553385 : f32
    %305 = vector.broadcast %cst_138 : f32 to vector<16x16xf32>
    %306 = arith.mulf %304, %305 : vector<16x16xf32>
    %c1_139 = arith.constant 1 : index
    %c2_140 = arith.constant 2 : index
    %c0_141 = arith.constant 0 : index
    %c0_142 = arith.constant 0 : index
    %307 = vector.load %arg2[%c1_139, %c2_140, %c0_141, %c0_142] : memref<2x4x16x16xf32, #tpu.memory_space<vmem>>, vector<1x1x16x16xf32>
    %308 = vector.shape_cast %307 : vector<1x1x16x16xf32> to vector<16x16xf32>
    %309 = arith.addf %306, %308 : vector<16x16xf32>
    %310 = arith.addf %309, %49 : vector<16x16xf32>
    %cst_143 = arith.constant dense<0xFF800000> : vector<16xf32>
    %311 = vector.multi_reduction <maximumf>, %310, %cst_143 [1] : vector<16x16xf32> to vector<16xf32>
    %312 = vector.shape_cast %311 : vector<16xf32> to vector<16x1xf32>
    %313 = vector.broadcast %312 : vector<16x1xf32> to vector<16x16xf32>
    %314 = arith.subf %310, %313 : vector<16x16xf32>
    %315 = math.exp %314 : vector<16x16xf32>
    %cst_144 = arith.constant dense<0.000000e+00> : vector<16xf32>
    %316 = vector.multi_reduction <add>, %315, %cst_144 [1] : vector<16x16xf32> to vector<16xf32>
    %317 = vector.shape_cast %316 : vector<16xf32> to vector<16x1xf32>
    %318 = tpu.reciprocal %317 {approx = true} : vector<16x1xf32> -> vector<16x1xf32>
    %319 = vector.broadcast %318 : vector<16x1xf32> to vector<16x16xf32>
    %320 = arith.mulf %315, %319 : vector<16x16xf32>
    %321 = arith.mulf %320, %45 : vector<16x16xf32>
    %322 = vector.broadcast %37 : vector<1x128xf32> to vector<16x128xf32>
    %323 = arith.mulf %252, %322 : vector<16x128xf32>
    %cst_145 = arith.constant dense<0.000000e+00> : vector<16x128xf32>
    %324 = tpu.matmul %321, %323, %cst_145 {dimension_numbers = #tpu.dot_dimension_numbers<[1], [0], [0], [1], [0, 0, 1, 1], [], []>} : vector<16x16xf32>, vector<16x128xf32>, vector<16x128xf32> -> vector<16x128xf32>
    %325 = arith.addf %301, %324 : vector<16x128xf32>
    %326 = vector.broadcast %44 : vector<1x128xf32> to vector<16x128xf32>
    %327 = arith.mulf %250, %326 : vector<16x128xf32>
    %cst_146 = arith.constant dense<0.000000e+00> : vector<16x16xf32>
    %328 = tpu.matmul %327, %251, %cst_146 {dimension_numbers = #tpu.dot_dimension_numbers<[1], [1], [0], [0], [0, 0, 1, 0], [], []>} : vector<16x128xf32>, vector<16x128xf32>, vector<16x16xf32> -> vector<16x16xf32>
    %cst_147 = arith.constant 0.353553385 : f32
    %329 = vector.broadcast %cst_147 : f32 to vector<16x16xf32>
    %330 = arith.mulf %328, %329 : vector<16x16xf32>
    %c1_148 = arith.constant 1 : index
    %c3_149 = arith.constant 3 : index
    %c0_150 = arith.constant 0 : index
    %c0_151 = arith.constant 0 : index
    %331 = vector.load %arg2[%c1_148, %c3_149, %c0_150, %c0_151] : memref<2x4x16x16xf32, #tpu.memory_space<vmem>>, vector<1x1x16x16xf32>
    %332 = vector.shape_cast %331 : vector<1x1x16x16xf32> to vector<16x16xf32>
    %333 = arith.addf %330, %332 : vector<16x16xf32>
    %334 = arith.addf %333, %49 : vector<16x16xf32>
    %cst_152 = arith.constant dense<0xFF800000> : vector<16xf32>
    %335 = vector.multi_reduction <maximumf>, %334, %cst_152 [1] : vector<16x16xf32> to vector<16xf32>
    %336 = vector.shape_cast %335 : vector<16xf32> to vector<16x1xf32>
    %337 = vector.broadcast %336 : vector<16x1xf32> to vector<16x16xf32>
    %338 = arith.subf %334, %337 : vector<16x16xf32>
    %339 = math.exp %338 : vector<16x16xf32>
    %cst_153 = arith.constant dense<0.000000e+00> : vector<16xf32>
    %340 = vector.multi_reduction <add>, %339, %cst_153 [1] : vector<16x16xf32> to vector<16xf32>
    %341 = vector.shape_cast %340 : vector<16xf32> to vector<16x1xf32>
    %342 = tpu.reciprocal %341 {approx = true} : vector<16x1xf32> -> vector<16x1xf32>
    %343 = vector.broadcast %342 : vector<16x1xf32> to vector<16x16xf32>
    %344 = arith.mulf %339, %343 : vector<16x16xf32>
    %345 = arith.mulf %344, %45 : vector<16x16xf32>
    %346 = vector.broadcast %44 : vector<1x128xf32> to vector<16x128xf32>
    %347 = arith.mulf %252, %346 : vector<16x128xf32>
    %cst_154 = arith.constant dense<0.000000e+00> : vector<16x128xf32>
    %348 = tpu.matmul %345, %347, %cst_154 {dimension_numbers = #tpu.dot_dimension_numbers<[1], [0], [0], [1], [0, 0, 1, 1], [], []>} : vector<16x16xf32>, vector<16x128xf32>, vector<16x128xf32> -> vector<16x128xf32>
    %349 = arith.addf %325, %348 : vector<16x128xf32>
    %c1_155 = arith.constant 1 : index
    %c0_156 = arith.constant 0 : index
    %c0_157 = arith.constant 0 : index
    %c0_158 = arith.constant 0 : index
    %350 = vector.load %arg5[%c1_155, %c0_156, %c0_157, %c0_158] : memref<2x2x128x128xf32, #tpu.memory_space<vmem>>, vector<1x1x128x128xf32>
    %351 = vector.shape_cast %350 : vector<1x1x128x128xf32> to vector<128x128xf32>
    %cst_159 = arith.constant dense<0.000000e+00> : vector<16x128xf32>
    %352 = tpu.matmul %349, %351, %cst_159 {dimension_numbers = #tpu.dot_dimension_numbers<[1], [0], [0], [1], [0, 0, 1, 1], [], []>} : vector<16x128xf32>, vector<128x128xf32>, vector<16x128xf32> -> vector<16x128xf32>
    %c1_160 = arith.constant 1 : index
    %c0_161 = arith.constant 0 : index
    %c0_162 = arith.constant 0 : index
    %c0_163 = arith.constant 0 : index
    %353 = vector.load %arg6[%c1_160, %c0_161, %c0_162, %c0_163] : memref<2x2x1x128xf32, #tpu.memory_space<vmem>>, vector<1x1x1x128xf32>
    %354 = vector.shape_cast %353 : vector<1x1x1x128xf32> to vector<1x128xf32>
    %355 = vector.broadcast %354 : vector<1x128xf32> to vector<16x128xf32>
    %356 = arith.addf %352, %355 : vector<16x128xf32>
    %357 = vector.broadcast %9 : vector<16x1xf32> to vector<16x128xf32>
    %358 = arith.mulf %357, %356 : vector<16x128xf32>
    %c1_164 = arith.constant 1 : index
    %c1_165 = arith.constant 1 : index
    %c0_166 = arith.constant 0 : index
    %c0_167 = arith.constant 0 : index
    %359 = vector.load %arg5[%c1_164, %c1_165, %c0_166, %c0_167] : memref<2x2x128x128xf32, #tpu.memory_space<vmem>>, vector<1x1x128x128xf32>
    %360 = vector.shape_cast %359 : vector<1x1x128x128xf32> to vector<128x128xf32>
    %cst_168 = arith.constant dense<0.000000e+00> : vector<16x128xf32>
    %361 = tpu.matmul %349, %360, %cst_168 {dimension_numbers = #tpu.dot_dimension_numbers<[1], [0], [0], [1], [0, 0, 1, 1], [], []>} : vector<16x128xf32>, vector<128x128xf32>, vector<16x128xf32> -> vector<16x128xf32>
    %c1_169 = arith.constant 1 : index
    %c1_170 = arith.constant 1 : index
    %c0_171 = arith.constant 0 : index
    %c0_172 = arith.constant 0 : index
    %362 = vector.load %arg6[%c1_169, %c1_170, %c0_171, %c0_172] : memref<2x2x1x128xf32, #tpu.memory_space<vmem>>, vector<1x1x1x128xf32>
    %363 = vector.shape_cast %362 : vector<1x1x1x128xf32> to vector<1x128xf32>
    %364 = vector.broadcast %363 : vector<1x128xf32> to vector<16x128xf32>
    %365 = arith.addf %361, %364 : vector<16x128xf32>
    %366 = vector.broadcast %16 : vector<16x1xf32> to vector<16x128xf32>
    %367 = arith.mulf %366, %365 : vector<16x128xf32>
    %368 = arith.addf %358, %367 : vector<16x128xf32>
    %369 = vector.broadcast %5 : vector<1x128xf32> to vector<16x128xf32>
    %370 = arith.mulf %368, %369 : vector<16x128xf32>
    %cst_173 = arith.constant dense<0.000000e+00> : vector<16xf32>
    %371 = vector.multi_reduction <add>, %370, %cst_173 [1] : vector<16x128xf32> to vector<16xf32>
    %372 = vector.shape_cast %371 : vector<16xf32> to vector<16x1xf32>
    %cst_174 = arith.constant 3.125000e-02 : f32
    %373 = vector.broadcast %cst_174 : f32 to vector<16x1xf32>
    %374 = arith.mulf %372, %373 : vector<16x1xf32>
    %375 = vector.broadcast %374 : vector<16x1xf32> to vector<16x128xf32>
    %376 = arith.subf %368, %375 : vector<16x128xf32>
    %377 = vector.broadcast %5 : vector<1x128xf32> to vector<16x128xf32>
    %378 = arith.mulf %376, %377 : vector<16x128xf32>
    %379 = arith.mulf %378, %378 : vector<16x128xf32>
    %cst_175 = arith.constant dense<0.000000e+00> : vector<16xf32>
    %380 = vector.multi_reduction <add>, %379, %cst_175 [1] : vector<16x128xf32> to vector<16xf32>
    %381 = vector.shape_cast %380 : vector<16xf32> to vector<16x1xf32>
    %cst_176 = arith.constant 3.125000e-02 : f32
    %382 = vector.broadcast %cst_176 : f32 to vector<16x1xf32>
    %383 = arith.mulf %381, %382 : vector<16x1xf32>
    %cst_177 = arith.constant 9.99999974E-6 : f32
    %384 = vector.broadcast %cst_177 : f32 to vector<16x1xf32>
    %385 = arith.addf %383, %384 : vector<16x1xf32>
    %386 = math.rsqrt %385 : vector<16x1xf32>
    %387 = vector.broadcast %386 : vector<16x1xf32> to vector<16x128xf32>
    %388 = arith.mulf %378, %387 : vector<16x128xf32>
    %c1_178 = arith.constant 1 : index
    %c0_179 = arith.constant 0 : index
    %c0_180 = arith.constant 0 : index
    %c0_181 = arith.constant 0 : index
    %389 = vector.load %arg7[%c1_178, %c0_179, %c0_180, %c0_181] : memref<2x2x1x128xf32, #tpu.memory_space<vmem>>, vector<1x1x1x128xf32>
    %390 = vector.shape_cast %389 : vector<1x1x1x128xf32> to vector<1x128xf32>
    %391 = vector.broadcast %390 : vector<1x128xf32> to vector<16x128xf32>
    %392 = arith.mulf %388, %391 : vector<16x128xf32>
    %c1_182 = arith.constant 1 : index
    %c0_183 = arith.constant 0 : index
    %c0_184 = arith.constant 0 : index
    %c0_185 = arith.constant 0 : index
    %393 = vector.load %arg8[%c1_182, %c0_183, %c0_184, %c0_185] : memref<2x2x1x128xf32, #tpu.memory_space<vmem>>, vector<1x1x1x128xf32>
    %394 = vector.shape_cast %393 : vector<1x1x1x128xf32> to vector<1x128xf32>
    %395 = vector.broadcast %394 : vector<1x128xf32> to vector<16x128xf32>
    %396 = arith.addf %392, %395 : vector<16x128xf32>
    %397 = vector.broadcast %9 : vector<16x1xf32> to vector<16x128xf32>
    %398 = arith.mulf %397, %396 : vector<16x128xf32>
    %c1_186 = arith.constant 1 : index
    %c1_187 = arith.constant 1 : index
    %c0_188 = arith.constant 0 : index
    %c0_189 = arith.constant 0 : index
    %399 = vector.load %arg7[%c1_186, %c1_187, %c0_188, %c0_189] : memref<2x2x1x128xf32, #tpu.memory_space<vmem>>, vector<1x1x1x128xf32>
    %400 = vector.shape_cast %399 : vector<1x1x1x128xf32> to vector<1x128xf32>
    %401 = vector.broadcast %400 : vector<1x128xf32> to vector<16x128xf32>
    %402 = arith.mulf %388, %401 : vector<16x128xf32>
    %c1_190 = arith.constant 1 : index
    %c1_191 = arith.constant 1 : index
    %c0_192 = arith.constant 0 : index
    %c0_193 = arith.constant 0 : index
    %403 = vector.load %arg8[%c1_190, %c1_191, %c0_192, %c0_193] : memref<2x2x1x128xf32, #tpu.memory_space<vmem>>, vector<1x1x1x128xf32>
    %404 = vector.shape_cast %403 : vector<1x1x1x128xf32> to vector<1x128xf32>
    %405 = vector.broadcast %404 : vector<1x128xf32> to vector<16x128xf32>
    %406 = arith.addf %402, %405 : vector<16x128xf32>
    %407 = vector.broadcast %16 : vector<16x1xf32> to vector<16x128xf32>
    %408 = arith.mulf %407, %406 : vector<16x128xf32>
    %409 = arith.addf %398, %408 : vector<16x128xf32>
    %410 = arith.addf %409, %230 : vector<16x128xf32>
    %c0_194 = arith.constant 0 : index
    %c0_195 = arith.constant 0 : index
    %411 = vector.load %arg9[%c0_194, %c0_195] : memref<16x128xf32, #tpu.memory_space<vmem>>, vector<16x128xf32>
    tpu.vector_store %arg9[%c0_194, %c0_195], %410 {strides = array<i32>} : memref<16x128xf32, #tpu.memory_space<vmem>>, vector<16x128xf32>,
    return
  }
}

</mosaic_0001>

<llo_original>
// kernel: tpu_custom_call.1
$region0: #{tpu_custom_call.1}
  #allocation0 [shape = 'u32[]', space=smem, size = 0x4, offset = 0x4, fixed_abs, tag = 'smem constant byte address 0x4 - core index']
  #allocation1 [shape = 'u32[144,128]{1,0:T(1,128)}', space=vmem, size = 0x12000, scoped, tag = 'internal scratch']
  %s0 = inlined_call_operand.hbm [shape: f32[16,128], index: 0, kind: input, shape index: {}]
  %s1 = inlined_call_operand.hbm [shape: f32[16,16], index: 1, kind: input, shape index: {}]
  %s2 = inlined_call_operand.hbm [shape: f32[2,4,16,16], index: 2, kind: input, shape index: {}]
  %s3 = inlined_call_operand.hbm [shape: f32[2,2,128,384], index: 3, kind: input, shape index: {}]
  %s4 = inlined_call_operand.vmem [shape: f32[2,2,1,384], index: 4, kind: input, shape index: {}]
  %s5 = inlined_call_operand.hbm [shape: f32[2,2,128,128], index: 5, kind: input, shape index: {}]
  %s6 = inlined_call_operand.vmem [shape: f32[2,2,1,128], index: 6, kind: input, shape index: {}]
  %s7 = inlined_call_operand.vmem [shape: f32[2,2,1,128], index: 7, kind: input, shape index: {}]
  %s8 = inlined_call_operand.vmem [shape: f32[2,2,1,128], index: 8, kind: input, shape index: {}]
  %s9 = inlined_call_operand.hbm [shape: f32[16,128], index: 9, kind: output, shape index: {}]
  %s10 = sld [smem:[#allocation0]]
  $region66: #{tpu_custom_call.1} parent=0
    _
  %s12 = ssub.s32 1, %s10
  %s13 = scalar_select 0, %s12, %s10
  $region1: #{tpu_custom_call.1} parent=0
    #allocation2 [shape = 'u8[8192]{0}', space=vmem, size = 0x2000, scoped, tag = 'input window, operand 0, single buffered']
    #allocation3 [shape = 's32[1]{0}', space=sflag, size = 0x4, scoped, tag = 'scoped memory for tpu_custom_call.1']
    #allocation4 [shape = 's32[1]{0}', space=sflag, size = 0x4, scoped, tag = 'scoped memory for tpu_custom_call.1']
    #allocation5 [shape = 'u8[8192]{0}', space=vmem, size = 0x2000, scoped, tag = 'input window, operand 1, single buffered']
    #allocation6 [shape = 's32[1]{0}', space=sflag, size = 0x4, scoped, tag = 'scoped memory for tpu_custom_call.1']
    #allocation7 [shape = 'u8[65536]{0}', space=vmem, size = 0x10000, scoped, tag = 'input window, operand 2, single buffered']
    #allocation8 [shape = 'u8[786432]{0}', space=vmem, size = 0xc0000, scoped, tag = 'input window, operand 3, single buffered']
    #allocation9 [shape = 's32[1]{0}', space=sflag, size = 0x4, scoped, tag = 'scoped memory for tpu_custom_call.1']
    #allocation10 [shape = 'u8[262144]{0}', space=vmem, size = 0x40000, scoped, tag = 'input window, operand 5, single buffered']
    #allocation11 [shape = 'u8[8192]{0}', space=vmem, size = 0x2000, scoped, tag = 'output window, operand 0, single buffered']
    %14 = vsyncpa [#allocation3], 0
    %15 = vsyncpa [#allocation6], 0
    %16 = vsyncpa [#allocation9], 0
    %17 = vsyncpa [#allocation4], 0
    // Predicated region
    $region2: #{tpu_custom_call.1} parent=1 // pred_check
      _
    $region3: #{tpu_custom_call.1} parent=1 // pred_check_branch
      %19 = sbr.rel (0) target = $region5
    $region4: #{tpu_custom_call.1} parent=1 // pred_region
      %s21 = ssub.s32 256, 256
      %22 = vsyncadd [#allocation3], %s21
      %s23 = sshll.u32 [#allocation2], 4
      %s24 = int_to_ptr.vmem [resolvable:$true] %s23
      %29 = dma.hbm_to_vmem [thread:$0]  %s0, 256, %s24, [#allocation3], 128, 128, 8
    $region5: #{tpu_custom_call.1} parent=1 // pred_fallthru
      _
    // Predicated region
    $region6: #{tpu_custom_call.1} parent=1 // pred_check
      _
    $region7: #{tpu_custom_call.1} parent=1 // pred_check_branch
      %31 = sbr.rel (0) target = $region9
    $region8: #{tpu_custom_call.1} parent=1 // pred_region
      %s33 = ssub.s32 256, 256
      %34 = vsyncadd [#allocation6], %s33
      %s35 = sshll.u32 [#allocation5], 4
      %s36 = int_to_ptr.vmem [resolvable:$true] %s35
      %41 = dma.hbm_to_vmem [thread:$0]  %s1, 256, %s36, [#allocation6], 128, 128, 8
    $region9: #{tpu_custom_call.1} parent=1 // pred_fallthru
      _
    // Predicated region
    $region10: #{tpu_custom_call.1} parent=1 // pred_check
      _
    $region11: #{tpu_custom_call.1} parent=1 // pred_check_branch
      %43 = sbr.rel (0) target = $region13
    $region12: #{tpu_custom_call.1} parent=1 // pred_region
      %s45 = ssub.s32 2048, 2048
      %46 = vsyncadd [#allocation6], %s45
      %s47 = sshll.u32 [#allocation7], 4
      %s48 = int_to_ptr.vmem [resolvable:$true] %s47
      %53 = dma.hbm_to_vmem [thread:$0]  %s2, 2048, %s48, [#allocation6], 128, 128, 8
    $region13: #{tpu_custom_call.1} parent=1 // pred_fallthru
      _
    // Predicated region
    $region14: #{tpu_custom_call.1} parent=1 // pred_check
      _
    $region15: #{tpu_custom_call.1} parent=1 // pred_check_branch
      %55 = sbr.rel (0) target = $region17
    $region16: #{tpu_custom_call.1} parent=1 // pred_region
      %s57 = ssub.s32 24576, 24576
      %58 = vsyncadd [#allocation9], %s57
      %s59 = sshll.u32 [#allocation8], 4
      %s60 = int_to_ptr.vmem [resolvable:$true] %s59
      %65 = dma.hbm_to_vmem [thread:$0]  %s3, 24576, %s60, [#allocation9], 384, 384, 24
    $region17: #{tpu_custom_call.1} parent=1 // pred_fallthru
      _
    // Predicated region
    $region18: #{tpu_custom_call.1} parent=1 // pred_check
      _
    $region19: #{tpu_custom_call.1} parent=1 // pred_check_branch
      %67 = sbr.rel (0) target = $region21
    $region20: #{tpu_custom_call.1} parent=1 // pred_region
      _
    $region21: #{tpu_custom_call.1} parent=1 // pred_fallthru
      _
    // Predicated region
    $region22: #{tpu_custom_call.1} parent=1 // pred_check
      _
    $region23: #{tpu_custom_call.1} parent=1 // pred_check_branch
      %69 = sbr.rel (0) target = $region25
    $region24: #{tpu_custom_call.1} parent=1 // pred_region
      %s71 = ssub.s32 8192, 8192
      %72 = vsyncadd [#allocation9], %s71
      %s73 = sshll.u32 [#allocation10], 4
      %s74 = int_to_ptr.vmem [resolvable:$true] %s73
      %79 = dma.hbm_to_vmem [thread:$0]  %s5, 8192, %s74, [#allocation9], 128, 128, 8
    $region25: #{tpu_custom_call.1} parent=1 // pred_fallthru
      _
    // Predicated region
    $region26: #{tpu_custom_call.1} parent=1 // pred_check
      _
    $region27: #{tpu_custom_call.1} parent=1 // pred_check_branch
      %81 = sbr.rel (0) target = $region29
    $region28: #{tpu_custom_call.1} parent=1 // pred_region
      _
    $region29: #{tpu_custom_call.1} parent=1 // pred_fallthru
      _
    // Predicated region
    $region30: #{tpu_custom_call.1} parent=1 // pred_check
      _
    $region31: #{tpu_custom_call.1} parent=1 // pred_check_branch
      %83 = sbr.rel (0) target = $region33
    $region32: #{tpu_custom_call.1} parent=1 // pred_region
      _
    $region33: #{tpu_custom_call.1} parent=1 // pred_fallthru
      _
    // Predicated region
    $region34: #{tpu_custom_call.1} parent=1 // pred_check
      _
    $region35: #{tpu_custom_call.1} parent=1 // pred_check_branch
      %85 = sbr.rel (0) target = $region37
    $region36: #{tpu_custom_call.1} parent=1 // pred_region
      _
    $region37: #{tpu_custom_call.1} parent=1 // pred_fallthru
      _
    // Predicated region
    $region38: #{tpu_custom_call.1} parent=1 // pred_check
      _
    $region39: #{tpu_custom_call.1} parent=1 // pred_check_branch
      %87 = sbr.rel (0) target = $region41
    $region40: #{tpu_custom_call.1} parent=1 // pred_region
      %88 = dma.done [#allocation3], 256
    $region41: #{tpu_custom_call.1} parent=1 // pred_fallthru
      _
    // Predicated region
    $region42: #{tpu_custom_call.1} parent=1 // pred_check
      _
    $region43: #{tpu_custom_call.1} parent=1 // pred_check_branch
      %90 = sbr.rel (0) target = $region45
    $region44: #{tpu_custom_call.1} parent=1 // pred_region
      %91 = dma.done [#allocation6], 256
    $region45: #{tpu_custom_call.1} parent=1 // pred_fallthru
      _
    // Predicated region
    $region46: #{tpu_custom_call.1} parent=1 // pred_check
      _
    $region47: #{tpu_custom_call.1} parent=1 // pred_check_branch
      %93 = sbr.rel (0) target = $region49
    $region48: #{tpu_custom_call.1} parent=1 // pred_region
      %94 = dma.done [#allocation6], 2048
    $region49: #{tpu_custom_call.1} parent=1 // pred_fallthru
      _
    // Predicated region
    $region50: #{tpu_custom_call.1} parent=1 // pred_check
      _
    $region51: #{tpu_custom_call.1} parent=1 // pred_check_branch
      %96 = sbr.rel (0) target = $region53
    $region52: #{tpu_custom_call.1} parent=1 // pred_region
      %97 = dma.done [#allocation9], 24576
    $region53: #{tpu_custom_call.1} parent=1 // pred_fallthru
      _
    // Predicated region
    $region54: #{tpu_custom_call.1} parent=1 // pred_check
      _
    $region55: #{tpu_custom_call.1} parent=1 // pred_check_branch
      %99 = sbr.rel (0) target = $region57
    $region56: #{tpu_custom_call.1} parent=1 // pred_region
      %100 = dma.done [#allocation9], 8192
    $region57: #{tpu_custom_call.1} parent=1 // pred_fallthru
      _
    %v101 = vlaneseq
    %v102 = vand.u32 %v101, 127
    %v103 = vlaneseq
    %v104 = vshrl.u32 %v103, 7
    %v105 = vadd.s32 %v104, 8
    %vm106 = vcmp.lt.s32.totalorder %v102, 32
    %v107 = vsel %vm106, 1, 0
    %v108 = vcvt.s32.f32 %v107
    %vm109 = vcmp.lt.s32.totalorder %v104, 4
    %vm110 = vcmp.lt.s32.totalorder %v105, 4
    %v111 = vsel %vm109, 1, 0
    %v112 = vsel %vm110, 1, 0
    %v113 = vcvt.s32.f32 %v111
    %v114 = vcvt.s32.f32 %v112
    %vm115 = vcmp.ge.s32.totalorder %v104, 4
    %vm116 = vcmp.ge.s32.totalorder %v105, 4
    %vm117 = vcmp.lt.s32.totalorder %v104, 12
    %vm118 = vcmp.lt.s32.totalorder %v105, 12
    %vm119 = vmand %vm115, %vm117
    %vm120 = vmand %vm116, %vm118
    %v121 = vsel %vm119, 1, 0
    %v122 = vsel %vm120, 1, 0
    %v123 = vcvt.s32.f32 %v121
    %v124 = vcvt.s32.f32 %v122
    %vm125 = vcmp.ge.s32.totalorder %v102, 0
    %vm126 = vcmp.lt.s32.totalorder %v102, 8
    %vm127 = vmand %vm125, %vm126
    %v128 = vsel %vm127, 1, 0
    %v129 = vcvt.s32.f32 %v128
    %vm130 = vcmp.ge.s32.totalorder %v102, 8
    %vm131 = vcmp.lt.s32.totalorder %v102, 16
    %vm132 = vmand %vm130, %vm131
    %v133 = vsel %vm132, 1, 0
    %v134 = vcvt.s32.f32 %v133
    %vm135 = vcmp.ge.s32.totalorder %v102, 16
    %vm136 = vcmp.lt.s32.totalorder %v102, 24
    %vm137 = vmand %vm135, %vm136
    %v138 = vsel %vm137, 1, 0
    %v139 = vcvt.s32.f32 %v138
    %vm140 = vcmp.ge.s32.totalorder %v102, 24
    %vm141 = vmand %vm140, %vm106
    %v142 = vsel %vm141, 1, 0
    %v143 = vcvt.s32.f32 %v142
    %v144 = vld [vmem:[#allocation5] sm:$0xff]
    %v145 = vld [vmem:[#allocation5 + $0x8] sm:$0xff]
    %v146 = vsub.f32 %v144, 1.0
    %v147 = vsub.f32 %v145, 1.0
    %v148 = vmul.f32 %v146, 1e+09
    %v149 = vmul.f32 %v147, 1e+09
    %v150 = vld [vmem:[#allocation2] sm:$0xff]
    %v151 = vld [vmem:[#allocation2 + $0x8] sm:$0xff]
    %v152 = vld [vmem:[#allocation8] sm:$0xff]
    %v153 = vld [vmem:[#allocation8 + $0x8] sm:$0xff]
    %v154 = vld [vmem:[#allocation8 + $0x10] sm:$0xff]
    %v155 = vld [vmem:[#allocation8 + $0x18] sm:$0xff]
    %v156 = vld [vmem:[#allocation8 + $0x20] sm:$0xff]
    %v157 = vld [vmem:[#allocation8 + $0x28] sm:$0xff]
    %v158 = vld [vmem:[#allocation8 + $0x30] sm:$0xff]
    %v159 = vld [vmem:[#allocation8 + $0x38] sm:$0xff]
    %v160 = vld [vmem:[#allocation8 + $0x40] sm:$0xff]
    %v161 = vld [vmem:[#allocation8 + $0x48] sm:$0xff]
    %v162 = vld [vmem:[#allocation8 + $0x50] sm:$0xff]
    %v163 = vld [vmem:[#allocation8 + $0x58] sm:$0xff]
    %v164 = vld [vmem:[#allocation8 + $0x60] sm:$0xff]
    %v165 = vld [vmem:[#allocation8 + $0x68] sm:$0xff]
    %v166 = vld [vmem:[#allocation8 + $0x70] sm:$0xff]
    %v167 = vld [vmem:[#allocation8 + $0x78] sm:$0xff]
    %v168 = vld [vmem:[#allocation8 + $0x80] sm:$0xff]
    %v169 = vld [vmem:[#allocation8 + $0x88] sm:$0xff]
    %v170 = vld [vmem:[#allocation8 + $0x90] sm:$0xff]
    %v171 = vld [vmem:[#allocation8 + $0x98] sm:$0xff]
    %v172 = vld [vmem:[#allocation8 + $0xa0] sm:$0xff]
    %v173 = vld [vmem:[#allocation8 + $0xa8] sm:$0xff]
    %v174 = vld [vmem:[#allocation8 + $0xb0] sm:$0xff]
    %v175 = vld [vmem:[#allocation8 + $0xb8] sm:$0xff]
    %v176 = vld [vmem:[#allocation8 + $0xc0] sm:$0xff]
    %v177 = vld [vmem:[#allocation8 + $0xc8] sm:$0xff]
    %v178 = vld [vmem:[#allocation8 + $0xd0] sm:$0xff]
    %v179 = vld [vmem:[#allocation8 + $0xd8] sm:$0xff]
    %v180 = vld [vmem:[#allocation8 + $0xe0] sm:$0xff]
    %v181 = vld [vmem:[#allocation8 + $0xe8] sm:$0xff]
    %v182 = vld [vmem:[#allocation8 + $0xf0] sm:$0xff]
    %v183 = vld [vmem:[#allocation8 + $0xf8] sm:$0xff]
    %v184 = vld [vmem:[#allocation8 + $0x100] sm:$0xff]
    %v185 = vld [vmem:[#allocation8 + $0x108] sm:$0xff]
    %v186 = vld [vmem:[#allocation8 + $0x110] sm:$0xff]
    %v187 = vld [vmem:[#allocation8 + $0x118] sm:$0xff]
    %v188 = vld [vmem:[#allocation8 + $0x120] sm:$0xff]
    %v189 = vld [vmem:[#allocation8 + $0x128] sm:$0xff]
    %v190 = vld [vmem:[#allocation8 + $0x130] sm:$0xff]
    %v191 = vld [vmem:[#allocation8 + $0x138] sm:$0xff]
    %v192 = vld [vmem:[#allocation8 + $0x140] sm:$0xff]
    %v193 = vld [vmem:[#allocation8 + $0x148] sm:$0xff]
    %v194 = vld [vmem:[#allocation8 + $0x150] sm:$0xff]
    %v195 = vld [vmem:[#allocation8 + $0x158] sm:$0xff]
    %v196 = vld [vmem:[#allocation8 + $0x160] sm:$0xff]
    %v197 = vld [vmem:[#allocation8 + $0x168] sm:$0xff]
    %v198 = vld [vmem:[#allocation8 + $0x170] sm:$0xff]
    %v199 = vld [vmem:[#allocation8 + $0x178] sm:$0xff]
    %v200 = vld [vmem:[%s4] sm:$0x7]
    %v202 = vlaneseq
    %v203 = vshrl.u32 %v202, 7
    %v204 = vsub.s32 0, %v203
    %v205 = vrot.slane %v200, %v204
    %v206 = vlaneseq
    %v207 = vshrl.u32 %v206, 7
    %v208 = vsub.s32 1, %v207
    %v209 = vrot.slane %v200, %v208
    %v210 = vlaneseq
    %v211 = vshrl.u32 %v210, 7
    %v212 = vsub.s32 2, %v211
    %v213 = vrot.slane %v200, %v212
    %217 = vmatprep.subr.mxu0 %v153
    %218 = vmatpush1.msra.mxu0 %v152
    %219 = vmatprep.subr.mxu0 %v156
    %220 = vmatpush1.msra.mxu0 %v155
    %221 = vmatprep.subr.mxu0 %v159
    %222 = vmatpush1.msra.mxu0 %v158
    %223 = vmatprep.subr.mxu0 %v162
    %224 = vmatpush1.msra.mxu0 %v161
    %225 = vmatprep.subr.mxu0 %v165
    %226 = vmatpush1.msra.mxu0 %v164
    %227 = vmatprep.subr.mxu0 %v168
    %228 = vmatpush1.msra.mxu0 %v167
    %229 = vmatprep.subr.mxu0 %v171
    %230 = vmatpush1.msra.mxu0 %v170
    %231 = vmatprep.subr.mxu0 %v174
    %232 = vmatpush1.msra.mxu0 %v173
    %233 = vmatprep.subr.mxu0 %v177
    %234 = vmatpush1.msra.mxu0 %v176
    %235 = vmatprep.subr.mxu0 %v180
    %236 = vmatpush1.msra.mxu0 %v179
    %237 = vmatprep.subr.mxu0 %v183
    %238 = vmatpush1.msra.mxu0 %v182
    %239 = vmatprep.subr.mxu0 %v186
    %240 = vmatpush1.msra.mxu0 %v185
    %241 = vmatprep.subr.mxu0 %v189
    %242 = vmatpush1.msra.mxu0 %v188
    %243 = vmatprep.subr.mxu0 %v192
    %244 = vmatpush1.msra.mxu0 %v191
    %245 = vmatprep.subr.mxu0 %v195
    %246 = vmatpush1.msra.mxu0 %v194
    %247 = vmatprep.subr.mxu0 %v198
    %248 = vmatpush1.msra.mxu0 %v197
    %249 = vmatprep.subr.mxu0 0.0
    %250 = vmatpush1.msra.mxu0 0.0
    %251 = vmatprep.subr.mxu0 0.0
    %252 = vmatpush1.msra.mxu0 0.0
    %253 = vmatprep.subr.mxu0 0.0
    %254 = vmatpush1.msra.mxu0 0.0
    %255 = vmatprep.subr.mxu0 0.0
    %256 = vmatpush1.msra.mxu0 0.0
    %257 = vmatprep.subr.mxu0 0.0
    %258 = vmatpush1.msra.mxu0 0.0
    %259 = vmatprep.subr.mxu0 0.0
    %260 = vmatpush1.msra.mxu0 0.0
    %261 = vmatprep.subr.mxu0 0.0
    %262 = vmatpush1.msra.mxu0 0.0
    %263 = vmatprep.subr.mxu0 0.0
    %264 = vmatpush1.msra.mxu0 0.0
    %265 = vmatprep.subr.mxu0 0.0
    %266 = vmatpush1.msra.mxu0 0.0
    %267 = vmatprep.subr.mxu0 0.0
    %268 = vmatpush1.msra.mxu0 0.0
    %269 = vmatprep.subr.mxu0 0.0
    %270 = vmatpush1.msra.mxu0 0.0
    %271 = vmatprep.subr.mxu0 0.0
    %272 = vmatpush1.msra.mxu0 0.0
    %273 = vmatprep.subr.mxu0 0.0
    %274 = vmatpush1.msra.mxu0 0.0
    %275 = vmatprep.subr.mxu0 0.0
    %276 = vmatpush1.msra.mxu0 0.0
    %277 = vmatprep.subr.mxu0 0.0
    %278 = vmatpush1.msra.mxu0 0.0
    %279 = vmatprep.subr.mxu0 0.0
    %280 = vmatpush1.msra.mxu0 0.0
    %281 = vmatprep.mubr.f32.mxu0 0.0
    %282 = vmatmul.mubr.f32.gmra.mrb[0].mxu0 %v150
    %v283 = vpop.f32.mrb[0].mxu0
    %v284 = vadd.f32 %v205, %v283
    %v285 = vpop.f32.mrb[0].mxu0
    %v286 = vadd.f32 %v209, %v285
    %287 = vmatprep.mubr.f32.mxu0 0.0
    %288 = vmatmul.mubr.f32.gmra.mrb[0].mxu0 %v151
    %v289 = vpop.f32.mrb[0].mxu0
    %v290 = vadd.f32 %v205, %v289
    %v291 = vpop.f32.mrb[0].mxu0
    %v292 = vadd.f32 %v209, %v291
    %293 = vdwg.mxu0
    %294 = vmatprep.subr.mxu0 0.0
    %295 = vmatpush1.msra.mxu0 %v154
    %296 = vmatprep.subr.mxu0 0.0
    %297 = vmatpush1.msra.mxu0 %v157
    %298 = vmatprep.subr.mxu0 0.0
    %299 = vmatpush1.msra.mxu0 %v160
    %300 = vmatprep.subr.mxu0 0.0
    %301 = vmatpush1.msra.mxu0 %v163
    %302 = vmatprep.subr.mxu0 0.0
    %303 = vmatpush1.msra.mxu0 %v166
    %304 = vmatprep.subr.mxu0 0.0
    %305 = vmatpush1.msra.mxu0 %v169
    %306 = vmatprep.subr.mxu0 0.0
    %307 = vmatpush1.msra.mxu0 %v172
    %308 = vmatprep.subr.mxu0 0.0
    %309 = vmatpush1.msra.mxu0 %v175
    %310 = vmatprep.subr.mxu0 0.0
    %311 = vmatpush1.msra.mxu0 %v178
    %312 = vmatprep.subr.mxu0 0.0
    %313 = vmatpush1.msra.mxu0 %v181
    %314 = vmatprep.subr.mxu0 0.0
    %315 = vmatpush1.msra.mxu0 %v184
    %316 = vmatprep.subr.mxu0 0.0
    %317 = vmatpush1.msra.mxu0 %v187
    %318 = vmatprep.subr.mxu0 0.0
    %319 = vmatpush1.msra.mxu0 %v190
    %320 = vmatprep.subr.mxu0 0.0
    %321 = vmatpush1.msra.mxu0 %v193
    %322 = vmatprep.subr.mxu0 0.0
    %323 = vmatpush1.msra.mxu0 %v196
    %324 = vmatprep.subr.mxu0 0.0
    %325 = vmatpush1.msra.mxu0 %v199
    %326 = vmatprep.subr.mxu0 0.0
    %327 = vmatpush1.msra.mxu0 0.0
    %328 = vmatprep.subr.mxu0 0.0
    %329 = vmatpush1.msra.mxu0 0.0
    %330 = vmatprep.subr.mxu0 0.0
    %331 = vmatpush1.msra.mxu0 0.0
    %332 = vmatprep.subr.mxu0 0.0
    %333 = vmatpush1.msra.mxu0 0.0
    %334 = vmatprep.subr.mxu0 0.0
    %335 = vmatpush1.msra.mxu0 0.0
    %336 = vmatprep.subr.mxu0 0.0
    %337 = vmatpush1.msra.mxu0 0.0
    %338 = vmatprep.subr.mxu0 0.0
    %339 = vmatpush1.msra.mxu0 0.0
    %340 = vmatprep.subr.mxu0 0.0
    %341 = vmatpush1.msra.mxu0 0.0
    %342 = vmatprep.subr.mxu0 0.0
    %343 = vmatpush1.msra.mxu0 0.0
    %344 = vmatprep.subr.mxu0 0.0
    %345 = vmatpush1.msra.mxu0 0.0
    %346 = vmatprep.subr.mxu0 0.0
    %347 = vmatpush1.msra.mxu0 0.0
    %348 = vmatprep.subr.mxu0 0.0
    %349 = vmatpush1.msra.mxu0 0.0
    %350 = vmatprep.subr.mxu0 0.0
    %351 = vmatpush1.msra.mxu0 0.0
    %352 = vmatprep.subr.mxu0 0.0
    %353 = vmatpush1.msra.mxu0 0.0
    %354 = vmatprep.subr.mxu0 0.0
    %355 = vmatpush1.msra.mxu0 0.0
    %356 = vmatprep.subr.mxu0 0.0
    %357 = vmatpush1.msra.mxu0 0.0
    %358 = vmatprep.mubr.f32.mxu0 0.0
    %359 = vmatmul.mubr.f32.gmra.mrb[0].mxu0 %v150
    %v360 = vpop.f32.mrb[0].mxu0
    %v361 = vadd.f32 %v213, %v360
    %v362 = vpop.f32.mrb[0].mxu0
    %363 = vmatprep.mubr.f32.mxu0 0.0
    %364 = vmatmul.mubr.f32.gmra.mrb[0].mxu0 %v151
    %v365 = vpop.f32.mrb[0].mxu0
    %v366 = vadd.f32 %v213, %v365
    %v367 = vpop.f32.mrb[0].mxu0
    %368 = vdwg.mxu0
    %v369 = vmul.f32 %v113, %v284
    %v370 = vmul.f32 %v113, %v286
    %v371 = vmul.f32 %v113, %v361
    %v372 = vmul.f32 %v114, %v290
    %v373 = vmul.f32 %v114, %v292
    %v374 = vmul.f32 %v114, %v366
    %s375 = scalar_lea.vmem [#allocation8], 384
    %v376 = vld [vmem:[%s375] sm:$0xff]
    %v377 = vld [vmem:[%s375 + $0x8] sm:$0xff]
    %v378 = vld [vmem:[%s375 + $0x10] sm:$0xff]
    %v379 = vld [vmem:[%s375 + $0x18] sm:$0xff]
    %v380 = vld [vmem:[%s375 + $0x20] sm:$0xff]
    %v381 = vld [vmem:[%s375 + $0x28] sm:$0xff]
    %v382 = vld [vmem:[%s375 + $0x30] sm:$0xff]
    %v383 = vld [vmem:[%s375 + $0x38] sm:$0xff]
    %v384 = vld [vmem:[%s375 + $0x40] sm:$0xff]
    %v385 = vld [vmem:[%s375 + $0x48] sm:$0xff]
    %v386 = vld [vmem:[%s375 + $0x50] sm:$0xff]
    %v387 = vld [vmem:[%s375 + $0x58] sm:$0xff]
    %v388 = vld [vmem:[%s375 + $0x60] sm:$0xff]
    %v389 = vld [vmem:[%s375 + $0x68] sm:$0xff]
    %v390 = vld [vmem:[%s375 + $0x70] sm:$0xff]
    %v391 = vld [vmem:[%s375 + $0x78] sm:$0xff]
    %v392 = vld [vmem:[%s375 + $0x80] sm:$0xff]
    %v393 = vld [vmem:[%s375 + $0x88] sm:$0xff]
    %v394 = vld [vmem:[%s375 + $0x90] sm:$0xff]
    %v395 = vld [vmem:[%s375 + $0x98] sm:$0xff]
    %v396 = vld [vmem:[%s375 + $0xa0] sm:$0xff]
    %v397 = vld [vmem:[%s375 + $0xa8] sm:$0xff]
    %v398 = vld [vmem:[%s375 + $0xb0] sm:$0xff]
    %v399 = vld [vmem:[%s375 + $0xb8] sm:$0xff]
    %v400 = vld [vmem:[%s375 + $0xc0] sm:$0xff]
    %v401 = vld [vmem:[%s375 + $0xc8] sm:$0xff]
    %v402 = vld [vmem:[%s375 + $0xd0] sm:$0xff]
    %v403 = vld [vmem:[%s375 + $0xd8] sm:$0xff]
    %v404 = vld [vmem:[%s375 + $0xe0] sm:$0xff]
    %v405 = vld [vmem:[%s375 + $0xe8] sm:$0xff]
    %v406 = vld [vmem:[%s375 + $0xf0] sm:$0xff]
    %v407 = vld [vmem:[%s375 + $0xf8] sm:$0xff]
    %v408 = vld [vmem:[%s375 + $0x100] sm:$0xff]
    %v409 = vld [vmem:[%s375 + $0x108] sm:$0xff]
    %v410 = vld [vmem:[%s375 + $0x110] sm:$0xff]
    %v411 = vld [vmem:[%s375 + $0x118] sm:$0xff]
    %v412 = vld [vmem:[%s375 + $0x120] sm:$0xff]
    %v413 = vld [vmem:[%s375 + $0x128] sm:$0xff]
    %v414 = vld [vmem:[%s375 + $0x130] sm:$0xff]
    %v415 = vld [vmem:[%s375 + $0x138] sm:$0xff]
    %v416 = vld [vmem:[%s375 + $0x140] sm:$0xff]
    %v417 = vld [vmem:[%s375 + $0x148] sm:$0xff]
    %v418 = vld [vmem:[%s375 + $0x150] sm:$0xff]
    %v419 = vld [vmem:[%s375 + $0x158] sm:$0xff]
    %v420 = vld [vmem:[%s375 + $0x160] sm:$0xff]
    %v421 = vld [vmem:[%s375 + $0x168] sm:$0xff]
    %v422 = vld [vmem:[%s375 + $0x170] sm:$0xff]
    %v423 = vld [vmem:[%s375 + $0x178] sm:$0xff]
    %s424 = scalar_lea.vmem %s4, 3
    %v425 = vld [vmem:[%s424] sm:$0x7]
    %v427 = vlaneseq
    %v428 = vshrl.u32 %v427, 7
    %v429 = vsub.s32 0, %v428
    %v430 = vrot.slane %v425, %v429
    %v431 = vlaneseq
    %v432 = vshrl.u32 %v431, 7
    %v433 = vsub.s32 1, %v432
    %v434 = vrot.slane %v425, %v433
    %v435 = vlaneseq
    %v436 = vshrl.u32 %v435, 7
    %v437 = vsub.s32 2, %v436
    %v438 = vrot.slane %v425, %v437
    %442 = vmatprep.subr.mxu0 %v377
    %443 = vmatpush1.msra.mxu0 %v376
    %444 = vmatprep.subr.mxu0 %v380
    %445 = vmatpush1.msra.mxu0 %v379
    %446 = vmatprep.subr.mxu0 %v383
    %447 = vmatpush1.msra.mxu0 %v382
    %448 = vmatprep.subr.mxu0 %v386
    %449 = vmatpush1.msra.mxu0 %v385
    %450 = vmatprep.subr.mxu0 %v389
    %451 = vmatpush1.msra.mxu0 %v388
    %452 = vmatprep.subr.mxu0 %v392
    %453 = vmatpush1.msra.mxu0 %v391
    %454 = vmatprep.subr.mxu0 %v395
    %455 = vmatpush1.msra.mxu0 %v394
    %456 = vmatprep.subr.mxu0 %v398
    %457 = vmatpush1.msra.mxu0 %v397
    %458 = vmatprep.subr.mxu0 %v401
    %459 = vmatpush1.msra.mxu0 %v400
    %460 = vmatprep.subr.mxu0 %v404
    %461 = vmatpush1.msra.mxu0 %v403
    %462 = vmatprep.subr.mxu0 %v407
    %463 = vmatpush1.msra.mxu0 %v406
    %464 = vmatprep.subr.mxu0 %v410
    %465 = vmatpush1.msra.mxu0 %v409
    %466 = vmatprep.subr.mxu0 %v413
    %467 = vmatpush1.msra.mxu0 %v412
    %468 = vmatprep.subr.mxu0 %v416
    %469 = vmatpush1.msra.mxu0 %v415
    %470 = vmatprep.subr.mxu0 %v419
    %471 = vmatpush1.msra.mxu0 %v418
    %472 = vmatprep.subr.mxu0 %v422
    %473 = vmatpush1.msra.mxu0 %v421
    %474 = vmatprep.subr.mxu0 0.0
    %475 = vmatpush1.msra.mxu0 0.0
    %476 = vmatprep.subr.mxu0 0.0
    %477 = vmatpush1.msra.mxu0 0.0
    %478 = vmatprep.subr.mxu0 0.0
    %479 = vmatpush1.msra.mxu0 0.0
    %480 = vmatprep.subr.mxu0 0.0
    %481 = vmatpush1.msra.mxu0 0.0
    %482 = vmatprep.subr.mxu0 0.0
    %483 = vmatpush1.msra.mxu0 0.0
    %484 = vmatprep.subr.mxu0 0.0
    %485 = vmatpush1.msra.mxu0 0.0
    %486 = vmatprep.subr.mxu0 0.0
    %487 = vmatpush1.msra.mxu0 0.0
    %488 = vmatprep.subr.mxu0 0.0
    %489 = vmatpush1.msra.mxu0 0.0
    %490 = vmatprep.subr.mxu0 0.0
    %491 = vmatpush1.msra.mxu0 0.0
    %492 = vmatprep.subr.mxu0 0.0
    %493 = vmatpush1.msra.mxu0 0.0
    %494 = vmatprep.subr.mxu0 0.0
    %495 = vmatpush1.msra.mxu0 0.0
    %496 = vmatprep.subr.mxu0 0.0
    %497 = vmatpush1.msra.mxu0 0.0
    %498 = vmatprep.subr.mxu0 0.0
    %499 = vmatpush1.msra.mxu0 0.0
    %500 = vmatprep.subr.mxu0 0.0
    %501 = vmatpush1.msra.mxu0 0.0
    %502 = vmatprep.subr.mxu0 0.0
    %503 = vmatpush1.msra.mxu0 0.0
    %504 = vmatprep.subr.mxu0 0.0
    %505 = vmatpush1.msra.mxu0 0.0
    %506 = vmatprep.mubr.f32.mxu0 0.0
    %507 = vmatmul.mubr.f32.gmra.mrb[0].mxu0 %v150
    %v508 = vpop.f32.mrb[0].mxu0
    %v509 = vadd.f32 %v430, %v508
    %v510 = vpop.f32.mrb[0].mxu0
    %v511 = vadd.f32 %v434, %v510
    %512 = vmatprep.mubr.f32.mxu0 0.0
    %513 = vmatmul.mubr.f32.gmra.mrb[0].mxu0 %v151
    %v514 = vpop.f32.mrb[0].mxu0
    %v515 = vadd.f32 %v430, %v514
    %v516 = vpop.f32.mrb[0].mxu0
    %v517 = vadd.f32 %v434, %v516
    %518 = vdwg.mxu0
    %519 = vmatprep.subr.mxu0 0.0
    %520 = vmatpush1.msra.mxu0 %v378
    %521 = vmatprep.subr.mxu0 0.0
    %522 = vmatpush1.msra.mxu0 %v381
    %523 = vmatprep.subr.mxu0 0.0
    %524 = vmatpush1.msra.mxu0 %v384
    %525 = vmatprep.subr.mxu0 0.0
    %526 = vmatpush1.msra.mxu0 %v387
    %527 = vmatprep.subr.mxu0 0.0
    %528 = vmatpush1.msra.mxu0 %v390
    %529 = vmatprep.subr.mxu0 0.0
    %530 = vmatpush1.msra.mxu0 %v393
    %531 = vmatprep.subr.mxu0 0.0
    %532 = vmatpush1.msra.mxu0 %v396
    %533 = vmatprep.subr.mxu0 0.0
    %534 = vmatpush1.msra.mxu0 %v399
    %535 = vmatprep.subr.mxu0 0.0
    %536 = vmatpush1.msra.mxu0 %v402
    %537 = vmatprep.subr.mxu0 0.0
    %538 = vmatpush1.msra.mxu0 %v405
    %539 = vmatprep.subr.mxu0 0.0
    %540 = vmatpush1.msra.mxu0 %v408
    %541 = vmatprep.subr.mxu0 0.0
    %542 = vmatpush1.msra.mxu0 %v411
    %543 = vmatprep.subr.mxu0 0.0
    %544 = vmatpush1.msra.mxu0 %v414
    %545 = vmatprep.subr.mxu0 0.0
    %546 = vmatpush1.msra.mxu0 %v417
    %547 = vmatprep.subr.mxu0 0.0
    %548 = vmatpush1.msra.mxu0 %v420
    %549 = vmatprep.subr.mxu0 0.0
    %550 = vmatpush1.msra.mxu0 %v423
    %551 = vmatprep.subr.mxu0 0.0
    %552 = vmatpush1.msra.mxu0 0.0
    %553 = vmatprep.subr.mxu0 0.0
    %554 = vmatpush1.msra.mxu0 0.0
    %555 = vmatprep.subr.mxu0 0.0
    %556 = vmatpush1.msra.mxu0 0.0
    %557 = vmatprep.subr.mxu0 0.0
    %558 = vmatpush1.msra.mxu0 0.0
    %559 = vmatprep.subr.mxu0 0.0
    %560 = vmatpush1.msra.mxu0 0.0
    %561 = vmatprep.subr.mxu0 0.0
    %562 = vmatpush1.msra.mxu0 0.0
    %563 = vmatprep.subr.mxu0 0.0
    %564 = vmatpush1.msra.mxu0 0.0
    %565 = vmatprep.subr.mxu0 0.0
    %566 = vmatpush1.msra.mxu0 0.0
    %567 = vmatprep.subr.mxu0 0.0
    %568 = vmatpush1.msra.mxu0 0.0
    %569 = vmatprep.subr.mxu0 0.0
    %570 = vmatpush1.msra.mxu0 0.0
    %571 = vmatprep.subr.mxu0 0.0
    %572 = vmatpush1.msra.mxu0 0.0
    %573 = vmatprep.subr.mxu0 0.0
    %574 = vmatpush1.msra.mxu0 0.0
    %575 = vmatprep.subr.mxu0 0.0
    %576 = vmatpush1.msra.mxu0 0.0
    %577 = vmatprep.subr.mxu0 0.0
    %578 = vmatpush1.msra.mxu0 0.0
    %579 = vmatprep.subr.mxu0 0.0
    %580 = vmatpush1.msra.mxu0 0.0
    %581 = vmatprep.subr.mxu0 0.0
    %582 = vmatpush1.msra.mxu0 0.0
    %583 = vmatprep.mubr.f32.mxu0 0.0
    %584 = vmatmul.mubr.f32.gmra.mrb[0].mxu0 %v150
    %v585 = vpop.f32.mrb[0].mxu0
    %v586 = vadd.f32 %v438, %v585
    %v587 = vpop.f32.mrb[0].mxu0
    %588 = vmatprep.mubr.f32.mxu0 0.0
    %589 = vmatmul.mubr.f32.gmra.mrb[0].mxu0 %v151
    %v590 = vpop.f32.mrb[0].mxu0
    %v591 = vadd.f32 %v438, %v590
    %v592 = vpop.f32.mrb[0].mxu0
    %593 = vdwg.mxu0
    %v594 = vmul.f32 %v123, %v509
    %v595 = vmul.f32 %v123, %v511
    %v596 = vmul.f32 %v123, %v586
    %v597 = vmul.f32 %v124, %v515
    %v598 = vmul.f32 %v124, %v517
    %v599 = vmul.f32 %v124, %v591
    %v600 = vadd.f32 %v369, %v594
    %v601 = vadd.f32 %v370, %v595
    %v602 = vadd.f32 %v371, %v596
    %v603 = vadd.f32 %v372, %v597
    %v604 = vadd.f32 %v373, %v598
    %v605 = vadd.f32 %v374, %v599
    %v606 = vmul.f32 %v600, %v129
    %v607 = vmul.f32 %v603, %v129
    %608 = vmatprep.subr.mxu0 0.0
    %609 = vmatpush1.xpose.msra.mxu0 %v601
    %610 = vmatprep.subr.mxu0 0.0
    %611 = vmatpush1.xpose.msra.mxu0 %v604
    %612 = vmatprep.subr.mxu0 0.0
    %613 = vmatpush1.xpose.msra.mxu0 0.0
    %614 = vmatprep.subr.mxu0 0.0
    %615 = vmatpush1.xpose.msra.mxu0 0.0
    %616 = vmatprep.subr.mxu0 0.0
    %617 = vmatpush1.xpose.msra.mxu0 0.0
    %618 = vmatprep.subr.mxu0 0.0
    %619 = vmatpush1.xpose.msra.mxu0 0.0
    %620 = vmatprep.subr.mxu0 0.0
    %621 = vmatpush1.xpose.msra.mxu0 0.0
    %622 = vmatprep.subr.mxu0 0.0
    %623 = vmatpush1.xpose.msra.mxu0 0.0
    %624 = vmatprep.subr.mxu0 0.0
    %625 = vmatpush1.xpose.msra.mxu0 0.0
    %626 = vmatprep.subr.mxu0 0.0
    %627 = vmatpush1.xpose.msra.mxu0 0.0
    %628 = vmatprep.subr.mxu0 0.0
    %629 = vmatpush1.xpose.msra.mxu0 0.0
    %630 = vmatprep.subr.mxu0 0.0
    %631 = vmatpush1.xpose.msra.mxu0 0.0
    %632 = vmatprep.subr.mxu0 0.0
    %633 = vmatpush1.xpose.msra.mxu0 0.0
    %634 = vmatprep.subr.mxu0 0.0
    %635 = vmatpush1.xpose.msra.mxu0 0.0
    %636 = vmatprep.subr.mxu0 0.0
    %637 = vmatpush1.xpose.msra.mxu0 0.0
    %638 = vmatprep.subr.mxu0 0.0
    %639 = vmatpush1.xpose.msra.mxu0 0.0
    %640 = vmatprep.subr.mxu0 0.0
    %641 = vmatpush1.xpose.msra.mxu0 0.0
    %642 = vmatprep.subr.mxu0 0.0
    %643 = vmatpush1.xpose.msra.mxu0 0.0
    %644 = vmatprep.subr.mxu0 0.0
    %645 = vmatpush1.xpose.msra.mxu0 0.0
    %646 = vmatprep.subr.mxu0 0.0
    %647 = vmatpush1.xpose.msra.mxu0 0.0
    %648 = vmatprep.subr.mxu0 0.0
    %649 = vmatpush1.xpose.msra.mxu0 0.0
    %650 = vmatprep.subr.mxu0 0.0
    %651 = vmatpush1.xpose.msra.mxu0 0.0
    %652 = vmatprep.subr.mxu0 0.0
    %653 = vmatpush1.xpose.msra.mxu0 0.0
    %654 = vmatprep.subr.mxu0 0.0
    %655 = vmatpush1.xpose.msra.mxu0 0.0
    %656 = vmatprep.subr.mxu0 0.0
    %657 = vmatpush1.xpose.msra.mxu0 0.0
    %658 = vmatprep.subr.mxu0 0.0
    %659 = vmatpush1.xpose.msra.mxu0 0.0
    %660 = vmatprep.subr.mxu0 0.0
    %661 = vmatpush1.xpose.msra.mxu0 0.0
    %662 = vmatprep.subr.mxu0 0.0
    %663 = vmatpush1.xpose.msra.mxu0 0.0
    %664 = vmatprep.subr.mxu0 0.0
    %665 = vmatpush1.xpose.msra.mxu0 0.0
    %666 = vmatprep.subr.mxu0 0.0
    %667 = vmatpush1.xpose.msra.mxu0 0.0
    %668 = vmatprep.subr.mxu0 0.0
    %669 = vmatpush1.xpose.msra.mxu0 0.0
    %670 = vmatprep.subr.mxu0 0.0
    %671 = vmatpush1.xpose.msra.mxu0 0.0
    %672 = vmatprep.mubr.f32.mxu0 0.0
    %673 = vmatmul.mubr.f32.gmra.mrb[0].mxu0 %v606
    %v674 = vpop.f32.mrb[0].mxu0
    %v675 = vadd.f32 0.0, %v674
    %v676 = vpop.f32.mrb[0].mxu0
    %677 = vmatprep.mubr.f32.mxu0 0.0
    %678 = vmatmul.mubr.f32.gmra.mrb[0].mxu0 %v607
    %v679 = vpop.f32.mrb[0].mxu0
    %v680 = vadd.f32 0.0, %v679
    %v681 = vpop.f32.mrb[0].mxu0
    %682 = vdwg.mxu0
    %v683 = vmul.f32 %v675, 0.35355338
    %v684 = vmul.f32 %v680, 0.35355338
    %v685 = vld [vmem:[#allocation7] sm:$0xff]
    %v686 = vld [vmem:[#allocation7 + $0x8] sm:$0xff]
    %v687 = vadd.f32 %v683, %v685
    %v688 = vadd.f32 %v684, %v686
    %v689 = vadd.f32 %v687, %v148
    %v690 = vadd.f32 %v688, %v149
    %vm691 = vcmask 130048
    %v692 = vsel %vm691, %v689, -inf
    %693 = vmax.xlane.f32.xlu0 %v692
    %v694 = vpop.xlane.xlu0 %693
    %v695 = vsel %vm691, %v690, -inf
    %696 = vmax.xlane.f32.xlu0 %v695
    %v697 = vpop.xlane.xlu0 %696
    %v698 = vsub.f32 %v689, %v694
    %v699 = vsub.f32 %v690, %v697
    %v700 = vmul.f32 %v698, 1.442695
    %v701 = vpow.pop %v700
    %v702 = vmul.f32 %v699, 1.442695
    %v703 = vpow.pop %v702
    %v704 = vsel %vm691, %v701, 0.0
    %705 = vadd.xlane.f32.xlu0 %v704
    %v706 = vpop.xlane.xlu0 %705
    %v707 = vsel %vm691, %v703, 0.0
    %708 = vadd.xlane.f32.xlu0 %v707
    %v709 = vpop.xlane.xlu0 %708
    %v710 = vrcp.pop %v706
    %v711 = vrcp.pop %v709
    %v712 = vmul.f32 %v701, %v710
    %v713 = vmul.f32 %v703, %v711
    %v714 = vmul.f32 %v712, %v144
    %v715 = vmul.f32 %v713, %v145
    %v716 = vmul.f32 %v602, %v129
    %v717 = vmul.f32 %v605, %v129
    %v718 = vmul.f32 %v600, %v134
    %v719 = vmul.f32 %v603, %v134
    %720 = vmatprep.subr.mxu0 0.0
    %721 = vmatpush1.xpose.msra.mxu0 %v601
    %722 = vmatprep.subr.mxu0 0.0
    %723 = vmatpush1.xpose.msra.mxu0 %v604
    %724 = vmatprep.subr.mxu0 0.0
    %725 = vmatpush1.xpose.msra.mxu0 0.0
    %726 = vmatprep.subr.mxu0 0.0
    %727 = vmatpush1.xpose.msra.mxu0 0.0
    %728 = vmatprep.subr.mxu0 0.0
    %729 = vmatpush1.xpose.msra.mxu0 0.0
    %730 = vmatprep.subr.mxu0 0.0
    %731 = vmatpush1.xpose.msra.mxu0 0.0
    %732 = vmatprep.subr.mxu0 0.0
    %733 = vmatpush1.xpose.msra.mxu0 0.0
    %734 = vmatprep.subr.mxu0 0.0
    %735 = vmatpush1.xpose.msra.mxu0 0.0
    %736 = vmatprep.subr.mxu0 0.0
    %737 = vmatpush1.xpose.msra.mxu0 0.0
    %738 = vmatprep.subr.mxu0 0.0
    %739 = vmatpush1.xpose.msra.mxu0 0.0
    %740 = vmatprep.subr.mxu0 0.0
    %741 = vmatpush1.xpose.msra.mxu0 0.0
    %742 = vmatprep.subr.mxu0 0.0
    %743 = vmatpush1.xpose.msra.mxu0 0.0
    %744 = vmatprep.subr.mxu0 0.0
    %745 = vmatpush1.xpose.msra.mxu0 0.0
    %746 = vmatprep.subr.mxu0 0.0
    %747 = vmatpush1.xpose.msra.mxu0 0.0
    %748 = vmatprep.subr.mxu0 0.0
    %749 = vmatpush1.xpose.msra.mxu0 0.0
    %750 = vmatprep.subr.mxu0 0.0
    %751 = vmatpush1.xpose.msra.mxu0 0.0
    %752 = vmatprep.subr.mxu0 0.0
    %753 = vmatpush1.xpose.msra.mxu0 0.0
    %754 = vmatprep.subr.mxu0 0.0
    %755 = vmatpush1.xpose.msra.mxu0 0.0
    %756 = vmatprep.subr.mxu0 0.0
    %757 = vmatpush1.xpose.msra.mxu0 0.0
    %758 = vmatprep.subr.mxu0 0.0
    %759 = vmatpush1.xpose.msra.mxu0 0.0
    %760 = vmatprep.subr.mxu0 0.0
    %761 = vmatpush1.xpose.msra.mxu0 0.0
    %762 = vmatprep.subr.mxu0 0.0
    %763 = vmatpush1.xpose.msra.mxu0 0.0
    %764 = vmatprep.subr.mxu0 0.0
    %765 = vmatpush1.xpose.msra.mxu0 0.0
    %766 = vmatprep.subr.mxu0 0.0
    %767 = vmatpush1.xpose.msra.mxu0 0.0
    %768 = vmatprep.subr.mxu0 0.0
    %769 = vmatpush1.xpose.msra.mxu0 0.0
    %770 = vmatprep.subr.mxu0 0.0
    %771 = vmatpush1.xpose.msra.mxu0 0.0
    %772 = vmatprep.subr.mxu0 0.0
    %773 = vmatpush1.xpose.msra.mxu0 0.0
    %774 = vmatprep.subr.mxu0 0.0
    %775 = vmatpush1.xpose.msra.mxu0 0.0
    %776 = vmatprep.subr.mxu0 0.0
    %777 = vmatpush1.xpose.msra.mxu0 0.0
    %778 = vmatprep.subr.mxu0 0.0
    %779 = vmatpush1.xpose.msra.mxu0 0.0
    %780 = vmatprep.subr.mxu0 0.0
    %781 = vmatpush1.xpose.msra.mxu0 0.0
    %782 = vmatprep.subr.mxu0 0.0
    %783 = vmatpush1.xpose.msra.mxu0 0.0
    %784 = vmatprep.mubr.f32.mxu0 0.0
    %785 = vmatmul.mubr.f32.gmra.mrb[0].mxu0 %v718
    %v786 = vpop.f32.mrb[0].mxu0
    %v787 = vadd.f32 0.0, %v786
    %v788 = vpop.f32.mrb[0].mxu0
    %789 = vmatprep.mubr.f32.mxu0 0.0
    %790 = vmatmul.mubr.f32.gmra.mrb[0].mxu0 %v719
    %v791 = vpop.f32.mrb[0].mxu0
    %v792 = vadd.f32 0.0, %v791
    %v793 = vpop.f32.mrb[0].mxu0
    %794 = vdwg.mxu0
    %v795 = vmul.f32 %v787, 0.35355338
    %v796 = vmul.f32 %v792, 0.35355338
    %s797 = scalar_lea.vmem [#allocation7], 16
    %v798 = vld [vmem:[%s797] sm:$0xff]
    %v799 = vld [vmem:[%s797 + $0x8] sm:$0xff]
    %v800 = vadd.f32 %v795, %v798
    %v801 = vadd.f32 %v796, %v799
    %v802 = vadd.f32 %v800, %v148
    %v803 = vadd.f32 %v801, %v149
    %v804 = vsel %vm691, %v802, -inf
    %805 = vmax.xlane.f32.xlu0 %v804
    %v806 = vpop.xlane.xlu0 %805
    %v807 = vsel %vm691, %v803, -inf
    %808 = vmax.xlane.f32.xlu0 %v807
    %v809 = vpop.xlane.xlu0 %808
    %v810 = vsub.f32 %v802, %v806
    %v811 = vsub.f32 %v803, %v809
    %v812 = vmul.f32 %v810, 1.442695
    %v813 = vpow.pop %v812
    %v814 = vmul.f32 %v811, 1.442695
    %v815 = vpow.pop %v814
    %v816 = vsel %vm691, %v813, 0.0
    %817 = vadd.xlane.f32.xlu0 %v816
    %v818 = vpop.xlane.xlu0 %817
    %v819 = vsel %vm691, %v815, 0.0
    %820 = vadd.xlane.f32.xlu0 %v819
    %v821 = vpop.xlane.xlu0 %820
    %v822 = vrcp.pop %v818
    %v823 = vrcp.pop %v821
    %v824 = vmul.f32 %v813, %v822
    %v825 = vmul.f32 %v815, %v823
    %v826 = vmul.f32 %v824, %v144
    %v827 = vmul.f32 %v825, %v145
    %v828 = vmul.f32 %v602, %v134
    %v829 = vmul.f32 %v605, %v134
    %v831 = vsel %vm691, %v826, 0
    %v834 = vsel %vm691, %v827, 0
    %836 = vmatprep.subr.mxu0 0.0
    %837 = vmatpush1.msra.mxu0 %v828
    %838 = vmatprep.subr.mxu0 0.0
    %839 = vmatpush1.msra.mxu0 %v829
    %840 = vmatprep.subr.mxu0 0.0
    %841 = vmatpush1.msra.mxu0 0.0
    %842 = vmatprep.subr.mxu0 0.0
    %843 = vmatpush1.msra.mxu0 0.0
    %844 = vmatprep.subr.mxu0 0.0
    %845 = vmatpush1.msra.mxu0 0.0
    %846 = vmatprep.subr.mxu0 0.0
    %847 = vmatpush1.msra.mxu0 0.0
    %848 = vmatprep.subr.mxu0 0.0
    %849 = vmatpush1.msra.mxu0 0.0
    %850 = vmatprep.subr.mxu0 0.0
    %851 = vmatpush1.msra.mxu0 0.0
    %852 = vmatprep.subr.mxu0 0.0
    %853 = vmatpush1.msra.mxu0 0.0
    %854 = vmatprep.subr.mxu0 0.0
    %855 = vmatpush1.msra.mxu0 0.0
    %856 = vmatprep.subr.mxu0 0.0
    %857 = vmatpush1.msra.mxu0 0.0
    %858 = vmatprep.subr.mxu0 0.0
    %859 = vmatpush1.msra.mxu0 0.0
    %860 = vmatprep.subr.mxu0 0.0
    %861 = vmatpush1.msra.mxu0 0.0
    %862 = vmatprep.subr.mxu0 0.0
    %863 = vmatpush1.msra.mxu0 0.0
    %864 = vmatprep.subr.mxu0 0.0
    %865 = vmatpush1.msra.mxu0 0.0
    %866 = vmatprep.subr.mxu0 0.0
    %867 = vmatpush1.msra.mxu0 0.0
    %868 = vmatprep.subr.mxu0 0.0
    %869 = vmatpush1.msra.mxu0 0.0
    %870 = vmatprep.subr.mxu0 0.0
    %871 = vmatpush1.msra.mxu0 0.0
    %872 = vmatprep.subr.mxu0 0.0
    %873 = vmatpush1.msra.mxu0 0.0
    %874 = vmatprep.subr.mxu0 0.0
    %875 = vmatpush1.msra.mxu0 0.0
    %876 = vmatprep.subr.mxu0 0.0
    %877 = vmatpush1.msra.mxu0 0.0
    %878 = vmatprep.subr.mxu0 0.0
    %879 = vmatpush1.msra.mxu0 0.0
    %880 = vmatprep.subr.mxu0 0.0
    %881 = vmatpush1.msra.mxu0 0.0
    %882 = vmatprep.subr.mxu0 0.0
    %883 = vmatpush1.msra.mxu0 0.0
    %884 = vmatprep.subr.mxu0 0.0
    %885 = vmatpush1.msra.mxu0 0.0
    %886 = vmatprep.subr.mxu0 0.0
    %887 = vmatpush1.msra.mxu0 0.0
    %888 = vmatprep.subr.mxu0 0.0
    %889 = vmatpush1.msra.mxu0 0.0
    %890 = vmatprep.subr.mxu0 0.0
    %891 = vmatpush1.msra.mxu0 0.0
    %892 = vmatprep.subr.mxu0 0.0
    %893 = vmatpush1.msra.mxu0 0.0
    %894 = vmatprep.subr.mxu0 0.0
    %895 = vmatpush1.msra.mxu0 0.0
    %896 = vmatprep.subr.mxu0 0.0
    %897 = vmatpush1.msra.mxu0 0.0
    %898 = vmatprep.subr.mxu0 0.0
    %899 = vmatpush1.msra.mxu0 0.0
    %900 = vmatprep.mubr.f32.mxu0 0.0
    %901 = vmatmul.mubr.f32.gmra.mrb[0].mxu0 %v831
    %v902 = vpop.f32.mrb[0].mxu0
    %v903 = vadd.f32 0.0, %v902
    %v904 = vpop.f32.mrb[0].mxu0
    %905 = vmatprep.mubr.f32.mxu0 0.0
    %906 = vmatmul.mubr.f32.gmra.mrb[0].mxu0 %v834
    %v907 = vpop.f32.mrb[0].mxu0
    %v908 = vadd.f32 0.0, %v907
    %v909 = vpop.f32.mrb[0].mxu0
    %910 = vdwg.mxu0
    %v912 = vsel %vm691, %v714, 0
    %v915 = vsel %vm691, %v715, 0
    %917 = vmatprep.subr.mxu0 0.0
    %918 = vmatpush1.msra.mxu0 %v716
    %919 = vmatprep.subr.mxu0 0.0
    %920 = vmatpush1.msra.mxu0 %v717
    %921 = vmatprep.subr.mxu0 0.0
    %922 = vmatpush1.msra.mxu0 0.0
    %923 = vmatprep.subr.mxu0 0.0
    %924 = vmatpush1.msra.mxu0 0.0
    %925 = vmatprep.subr.mxu0 0.0
    %926 = vmatpush1.msra.mxu0 0.0
    %927 = vmatprep.subr.mxu0 0.0
    %928 = vmatpush1.msra.mxu0 0.0
    %929 = vmatprep.subr.mxu0 0.0
    %930 = vmatpush1.msra.mxu0 0.0
    %931 = vmatprep.subr.mxu0 0.0
    %932 = vmatpush1.msra.mxu0 0.0
    %933 = vmatprep.subr.mxu0 0.0
    %934 = vmatpush1.msra.mxu0 0.0
    %935 = vmatprep.subr.mxu0 0.0
    %936 = vmatpush1.msra.mxu0 0.0
    %937 = vmatprep.subr.mxu0 0.0
    %938 = vmatpush1.msra.mxu0 0.0
    %939 = vmatprep.subr.mxu0 0.0
    %940 = vmatpush1.msra.mxu0 0.0
    %941 = vmatprep.subr.mxu0 0.0
    %942 = vmatpush1.msra.mxu0 0.0
    %943 = vmatprep.subr.mxu0 0.0
    %944 = vmatpush1.msra.mxu0 0.0
    %945 = vmatprep.subr.mxu0 0.0
    %946 = vmatpush1.msra.mxu0 0.0
    %947 = vmatprep.subr.mxu0 0.0
    %948 = vmatpush1.msra.mxu0 0.0
    %949 = vmatprep.subr.mxu0 0.0
    %950 = vmatpush1.msra.mxu0 0.0
    %951 = vmatprep.subr.mxu0 0.0
    %952 = vmatpush1.msra.mxu0 0.0
    %953 = vmatprep.subr.mxu0 0.0
    %954 = vmatpush1.msra.mxu0 0.0
    %955 = vmatprep.subr.mxu0 0.0
    %956 = vmatpush1.msra.mxu0 0.0
    %957 = vmatprep.subr.mxu0 0.0
    %958 = vmatpush1.msra.mxu0 0.0
    %959 = vmatprep.subr.mxu0 0.0
    %960 = vmatpush1.msra.mxu0 0.0
    %961 = vmatprep.subr.mxu0 0.0
    %962 = vmatpush1.msra.mxu0 0.0
    %963 = vmatprep.subr.mxu0 0.0
    %964 = vmatpush1.msra.mxu0 0.0
    %965 = vmatprep.subr.mxu0 0.0
    %966 = vmatpush1.msra.mxu0 0.0
    %967 = vmatprep.subr.mxu0 0.0
    %968 = vmatpush1.msra.mxu0 0.0
    %969 = vmatprep.subr.mxu0 0.0
    %970 = vmatpush1.msra.mxu0 0.0
    %971 = vmatprep.subr.mxu0 0.0
    %972 = vmatpush1.msra.mxu0 0.0
    %973 = vmatprep.subr.mxu0 0.0
    %974 = vmatpush1.msra.mxu0 0.0
    %975 = vmatprep.subr.mxu0 0.0
    %976 = vmatpush1.msra.mxu0 0.0
    %977 = vmatprep.subr.mxu0 0.0
    %978 = vmatpush1.msra.mxu0 0.0
    %979 = vmatprep.subr.mxu0 0.0
    %980 = vmatpush1.msra.mxu0 0.0
    %981 = vmatprep.mubr.f32.mxu0 0.0
    %982 = vmatmul.mubr.f32.gmra.mrb[0].mxu0 %v912
    %v983 = vpop.f32.mrb[0].mxu0
    %v984 = vadd.f32 %v903, %v983
    %v985 = vpop.f32.mrb[0].mxu0
    %986 = vmatprep.mubr.f32.mxu0 0.0
    %987 = vmatmul.mubr.f32.gmra.mrb[0].mxu0 %v915
    %v988 = vpop.f32.mrb[0].mxu0
    %v989 = vadd.f32 %v908, %v988
    %v990 = vpop.f32.mrb[0].mxu0
    %991 = vdwg.mxu0
    %v992 = vmul.f32 %v600, %v139
    %v993 = vmul.f32 %v603, %v139
    %994 = vmatprep.subr.mxu0 0.0
    %995 = vmatpush1.xpose.msra.mxu0 %v601
    %996 = vmatprep.subr.mxu0 0.0
    %997 = vmatpush1.xpose.msra.mxu0 %v604
    %998 = vmatprep.subr.mxu0 0.0
    %999 = vmatpush1.xpose.msra.mxu0 0.0
    %1000 = vmatprep.subr.mxu0 0.0
    %1001 = vmatpush1.xpose.msra.mxu0 0.0
    %1002 = vmatprep.subr.mxu0 0.0
    %1003 = vmatpush1.xpose.msra.mxu0 0.0
    %1004 = vmatprep.subr.mxu0 0.0
    %1005 = vmatpush1.xpose.msra.mxu0 0.0
    %1006 = vmatprep.subr.mxu0 0.0
    %1007 = vmatpush1.xpose.msra.mxu0 0.0
    %1008 = vmatprep.subr.mxu0 0.0
    %1009 = vmatpush1.xpose.msra.mxu0 0.0
    %1010 = vmatprep.subr.mxu0 0.0
    %1011 = vmatpush1.xpose.msra.mxu0 0.0
    %1012 = vmatprep.subr.mxu0 0.0
    %1013 = vmatpush1.xpose.msra.mxu0 0.0
    %1014 = vmatprep.subr.mxu0 0.0
    %1015 = vmatpush1.xpose.msra.mxu0 0.0
    %1016 = vmatprep.subr.mxu0 0.0
    %1017 = vmatpush1.xpose.msra.mxu0 0.0
    %1018 = vmatprep.subr.mxu0 0.0
    %1019 = vmatpush1.xpose.msra.mxu0 0.0
    %1020 = vmatprep.subr.mxu0 0.0
    %1021 = vmatpush1.xpose.msra.mxu0 0.0
    %1022 = vmatprep.subr.mxu0 0.0
    %1023 = vmatpush1.xpose.msra.mxu0 0.0
    %1024 = vmatprep.subr.mxu0 0.0
    %1025 = vmatpush1.xpose.msra.mxu0 0.0
    %1026 = vmatprep.subr.mxu0 0.0
    %1027 = vmatpush1.xpose.msra.mxu0 0.0
    %1028 = vmatprep.subr.mxu0 0.0
    %1029 = vmatpush1.xpose.msra.mxu0 0.0
    %1030 = vmatprep.subr.mxu0 0.0
    %1031 = vmatpush1.xpose.msra.mxu0 0.0
    %1032 = vmatprep.subr.mxu0 0.0
    %1033 = vmatpush1.xpose.msra.mxu0 0.0
    %1034 = vmatprep.subr.mxu0 0.0
    %1035 = vmatpush1.xpose.msra.mxu0 0.0
    %1036 = vmatprep.subr.mxu0 0.0
    %1037 = vmatpush1.xpose.msra.mxu0 0.0
    %1038 = vmatprep.subr.mxu0 0.0
    %1039 = vmatpush1.xpose.msra.mxu0 0.0
    %1040 = vmatprep.subr.mxu0 0.0
    %1041 = vmatpush1.xpose.msra.mxu0 0.0
    %1042 = vmatprep.subr.mxu0 0.0
    %1043 = vmatpush1.xpose.msra.mxu0 0.0
    %1044 = vmatprep.subr.mxu0 0.0
    %1045 = vmatpush1.xpose.msra.mxu0 0.0
    %1046 = vmatprep.subr.mxu0 0.0
    %1047 = vmatpush1.xpose.msra.mxu0 0.0
    %1048 = vmatprep.subr.mxu0 0.0
    %1049 = vmatpush1.xpose.msra.mxu0 0.0
    %1050 = vmatprep.subr.mxu0 0.0
    %1051 = vmatpush1.xpose.msra.mxu0 0.0
    %1052 = vmatprep.subr.mxu0 0.0
    %1053 = vmatpush1.xpose.msra.mxu0 0.0
    %1054 = vmatprep.subr.mxu0 0.0
    %1055 = vmatpush1.xpose.msra.mxu0 0.0
    %1056 = vmatprep.subr.mxu0 0.0
    %1057 = vmatpush1.xpose.msra.mxu0 0.0
    %1058 = vmatprep.mubr.f32.mxu0 0.0
    %1059 = vmatmul.mubr.f32.gmra.mrb[0].mxu0 %v992
    %v1060 = vpop.f32.mrb[0].mxu0
    %v1061 = vadd.f32 0.0, %v1060
    %v1062 = vpop.f32.mrb[0].mxu0
    %1063 = vmatprep.mubr.f32.mxu0 0.0
    %1064 = vmatmul.mubr.f32.gmra.mrb[0].mxu0 %v993
    %v1065 = vpop.f32.mrb[0].mxu0
    %v1066 = vadd.f32 0.0, %v1065
    %v1067 = vpop.f32.mrb[0].mxu0
    %1068 = vdwg.mxu0
    %v1069 = vmul.f32 %v1061, 0.35355338
    %v1070 = vmul.f32 %v1066, 0.35355338
    %s1071 = scalar_lea.vmem [#allocation7], 32
    %v1072 = vld [vmem:[%s1071] sm:$0xff]
    %v1073 = vld [vmem:[%s1071 + $0x8] sm:$0xff]
    %v1074 = vadd.f32 %v1069, %v1072
    %v1075 = vadd.f32 %v1070, %v1073
    %v1076 = vadd.f32 %v1074, %v148
    %v1077 = vadd.f32 %v1075, %v149
    %v1078 = vsel %vm691, %v1076, -inf
    %1079 = vmax.xlane.f32.xlu0 %v1078
    %v1080 = vpop.xlane.xlu0 %1079
    %v1081 = vsel %vm691, %v1077, -inf
    %1082 = vmax.xlane.f32.xlu0 %v1081
    %v1083 = vpop.xlane.xlu0 %1082
    %v1084 = vsub.f32 %v1076, %v1080
    %v1085 = vsub.f32 %v1077, %v1083
    %v1086 = vmul.f32 %v1084, 1.442695
    %v1087 = vpow.pop %v1086
    %v1088 = vmul.f32 %v1085, 1.442695
    %v1089 = vpow.pop %v1088
    %v1090 = vsel %vm691, %v1087, 0.0
    %1091 = vadd.xlane.f32.xlu0 %v1090
    %v1092 = vpop.xlane.xlu0 %1091
    %v1093 = vsel %vm691, %v1089, 0.0
    %1094 = vadd.xlane.f32.xlu0 %v1093
    %v1095 = vpop.xlane.xlu0 %1094
    %v1096 = vrcp.pop %v1092
    %v1097 = vrcp.pop %v1095
    %v1098 = vmul.f32 %v1087, %v1096
    %v1099 = vmul.f32 %v1089, %v1097
    %v1100 = vmul.f32 %v1098, %v144
    %v1101 = vmul.f32 %v1099, %v145
    %v1102 = vmul.f32 %v602, %v139
    %v1103 = vmul.f32 %v605, %v139
    %v1105 = vsel %vm691, %v1100, 0
    %v1108 = vsel %vm691, %v1101, 0
    %1110 = vmatprep.subr.mxu0 0.0
    %1111 = vmatpush1.msra.mxu0 %v1102
    %1112 = vmatprep.subr.mxu0 0.0
    %1113 = vmatpush1.msra.mxu0 %v1103
    %1114 = vmatprep.subr.mxu0 0.0
    %1115 = vmatpush1.msra.mxu0 0.0
    %1116 = vmatprep.subr.mxu0 0.0
    %1117 = vmatpush1.msra.mxu0 0.0
    %1118 = vmatprep.subr.mxu0 0.0
    %1119 = vmatpush1.msra.mxu0 0.0
    %1120 = vmatprep.subr.mxu0 0.0
    %1121 = vmatpush1.msra.mxu0 0.0
    %1122 = vmatprep.subr.mxu0 0.0
    %1123 = vmatpush1.msra.mxu0 0.0
    %1124 = vmatprep.subr.mxu0 0.0
    %1125 = vmatpush1.msra.mxu0 0.0
    %1126 = vmatprep.subr.mxu0 0.0
    %1127 = vmatpush1.msra.mxu0 0.0
    %1128 = vmatprep.subr.mxu0 0.0
    %1129 = vmatpush1.msra.mxu0 0.0
    %1130 = vmatprep.subr.mxu0 0.0
    %1131 = vmatpush1.msra.mxu0 0.0
    %1132 = vmatprep.subr.mxu0 0.0
    %1133 = vmatpush1.msra.mxu0 0.0
    %1134 = vmatprep.subr.mxu0 0.0
    %1135 = vmatpush1.msra.mxu0 0.0
    %1136 = vmatprep.subr.mxu0 0.0
    %1137 = vmatpush1.msra.mxu0 0.0
    %1138 = vmatprep.subr.mxu0 0.0
    %1139 = vmatpush1.msra.mxu0 0.0
    %1140 = vmatprep.subr.mxu0 0.0
    %1141 = vmatpush1.msra.mxu0 0.0
    %1142 = vmatprep.subr.mxu0 0.0
    %1143 = vmatpush1.msra.mxu0 0.0
    %1144 = vmatprep.subr.mxu0 0.0
    %1145 = vmatpush1.msra.mxu0 0.0
    %1146 = vmatprep.subr.mxu0 0.0
    %1147 = vmatpush1.msra.mxu0 0.0
    %1148 = vmatprep.subr.mxu0 0.0
    %1149 = vmatpush1.msra.mxu0 0.0
    %1150 = vmatprep.subr.mxu0 0.0
    %1151 = vmatpush1.msra.mxu0 0.0
    %1152 = vmatprep.subr.mxu0 0.0
    %1153 = vmatpush1.msra.mxu0 0.0
    %1154 = vmatprep.subr.mxu0 0.0
    %1155 = vmatpush1.msra.mxu0 0.0
    %1156 = vmatprep.subr.mxu0 0.0
    %1157 = vmatpush1.msra.mxu0 0.0
    %1158 = vmatprep.subr.mxu0 0.0
    %1159 = vmatpush1.msra.mxu0 0.0
    %1160 = vmatprep.subr.mxu0 0.0
    %1161 = vmatpush1.msra.mxu0 0.0
    %1162 = vmatprep.subr.mxu0 0.0
    %1163 = vmatpush1.msra.mxu0 0.0
    %1164 = vmatprep.subr.mxu0 0.0
    %1165 = vmatpush1.msra.mxu0 0.0
    %1166 = vmatprep.subr.mxu0 0.0
    %1167 = vmatpush1.msra.mxu0 0.0
    %1168 = vmatprep.subr.mxu0 0.0
    %1169 = vmatpush1.msra.mxu0 0.0
    %1170 = vmatprep.subr.mxu0 0.0
    %1171 = vmatpush1.msra.mxu0 0.0
    %1172 = vmatprep.subr.mxu0 0.0
    %1173 = vmatpush1.msra.mxu0 0.0
    %1174 = vmatprep.mubr.f32.mxu0 0.0
    %1175 = vmatmul.mubr.f32.gmra.mrb[0].mxu0 %v1105
    %v1176 = vpop.f32.mrb[0].mxu0
    %v1177 = vadd.f32 0.0, %v1176
    %v1178 = vpop.f32.mrb[0].mxu0
    %1179 = vmatprep.mubr.f32.mxu0 0.0
    %1180 = vmatmul.mubr.f32.gmra.mrb[0].mxu0 %v1108
    %v1181 = vpop.f32.mrb[0].mxu0
    %v1182 = vadd.f32 0.0, %v1181
    %v1183 = vpop.f32.mrb[0].mxu0
    %1184 = vdwg.mxu0
    %v1185 = vadd.f32 %v984, %v1177
    %v1186 = vadd.f32 %v989, %v1182
    %v1187 = vmul.f32 %v600, %v143
    %v1188 = vmul.f32 %v603, %v143
    %1189 = vmatprep.subr.mxu0 0.0
    %1190 = vmatpush1.xpose.msra.mxu0 %v601
    %1191 = vmatprep.subr.mxu0 0.0
    %1192 = vmatpush1.xpose.msra.mxu0 %v604
    %1193 = vmatprep.subr.mxu0 0.0
    %1194 = vmatpush1.xpose.msra.mxu0 0.0
    %1195 = vmatprep.subr.mxu0 0.0
    %1196 = vmatpush1.xpose.msra.mxu0 0.0
    %1197 = vmatprep.subr.mxu0 0.0
    %1198 = vmatpush1.xpose.msra.mxu0 0.0
    %1199 = vmatprep.subr.mxu0 0.0
    %1200 = vmatpush1.xpose.msra.mxu0 0.0
    %1201 = vmatprep.subr.mxu0 0.0
    %1202 = vmatpush1.xpose.msra.mxu0 0.0
    %1203 = vmatprep.subr.mxu0 0.0
    %1204 = vmatpush1.xpose.msra.mxu0 0.0
    %1205 = vmatprep.subr.mxu0 0.0
    %1206 = vmatpush1.xpose.msra.mxu0 0.0
    %1207 = vmatprep.subr.mxu0 0.0
    %1208 = vmatpush1.xpose.msra.mxu0 0.0
    %1209 = vmatprep.subr.mxu0 0.0
    %1210 = vmatpush1.xpose.msra.mxu0 0.0
    %1211 = vmatprep.subr.mxu0 0.0
    %1212 = vmatpush1.xpose.msra.mxu0 0.0
    %1213 = vmatprep.subr.mxu0 0.0
    %1214 = vmatpush1.xpose.msra.mxu0 0.0
    %1215 = vmatprep.subr.mxu0 0.0
    %1216 = vmatpush1.xpose.msra.mxu0 0.0
    %1217 = vmatprep.subr.mxu0 0.0
    %1218 = vmatpush1.xpose.msra.mxu0 0.0
    %1219 = vmatprep.subr.mxu0 0.0
    %1220 = vmatpush1.xpose.msra.mxu0 0.0
    %1221 = vmatprep.subr.mxu0 0.0
    %1222 = vmatpush1.xpose.msra.mxu0 0.0
    %1223 = vmatprep.subr.mxu0 0.0
    %1224 = vmatpush1.xpose.msra.mxu0 0.0
    %1225 = vmatprep.subr.mxu0 0.0
    %1226 = vmatpush1.xpose.msra.mxu0 0.0
    %1227 = vmatprep.subr.mxu0 0.0
    %1228 = vmatpush1.xpose.msra.mxu0 0.0
    %1229 = vmatprep.subr.mxu0 0.0
    %1230 = vmatpush1.xpose.msra.mxu0 0.0
    %1231 = vmatprep.subr.mxu0 0.0
    %1232 = vmatpush1.xpose.msra.mxu0 0.0
    %1233 = vmatprep.subr.mxu0 0.0
    %1234 = vmatpush1.xpose.msra.mxu0 0.0
    %1235 = vmatprep.subr.mxu0 0.0
    %1236 = vmatpush1.xpose.msra.mxu0 0.0
    %1237 = vmatprep.subr.mxu0 0.0
    %1238 = vmatpush1.xpose.msra.mxu0 0.0
    %1239 = vmatprep.subr.mxu0 0.0
    %1240 = vmatpush1.xpose.msra.mxu0 0.0
    %1241 = vmatprep.subr.mxu0 0.0
    %1242 = vmatpush1.xpose.msra.mxu0 0.0
    %1243 = vmatprep.subr.mxu0 0.0
    %1244 = vmatpush1.xpose.msra.mxu0 0.0
    %1245 = vmatprep.subr.mxu0 0.0
    %1246 = vmatpush1.xpose.msra.mxu0 0.0
    %1247 = vmatprep.subr.mxu0 0.0
    %1248 = vmatpush1.xpose.msra.mxu0 0.0
    %1249 = vmatprep.subr.mxu0 0.0
    %1250 = vmatpush1.xpose.msra.mxu0 0.0
    %1251 = vmatprep.subr.mxu0 0.0
    %1252 = vmatpush1.xpose.msra.mxu0 0.0
    %1253 = vmatprep.mubr.f32.mxu0 0.0
    %1254 = vmatmul.mubr.f32.gmra.mrb[0].mxu0 %v1187
    %v1255 = vpop.f32.mrb[0].mxu0
    %v1256 = vadd.f32 0.0, %v1255
    %v1257 = vpop.f32.mrb[0].mxu0
    %1258 = vmatprep.mubr.f32.mxu0 0.0
    %1259 = vmatmul.mubr.f32.gmra.mrb[0].mxu0 %v1188
    %v1260 = vpop.f32.mrb[0].mxu0
    %v1261 = vadd.f32 0.0, %v1260
    %v1262 = vpop.f32.mrb[0].mxu0
    %1263 = vdwg.mxu0
    %v1264 = vmul.f32 %v1256, 0.35355338
    %v1265 = vmul.f32 %v1261, 0.35355338
    %s1266 = scalar_lea.vmem [#allocation7], 48
    %v1267 = vld [vmem:[%s1266] sm:$0xff]
    %v1268 = vld [vmem:[%s1266 + $0x8] sm:$0xff]
    %v1269 = vadd.f32 %v1264, %v1267
    %v1270 = vadd.f32 %v1265, %v1268
    %v1271 = vadd.f32 %v1269, %v148
    %v1272 = vadd.f32 %v1270, %v149
    %v1273 = vsel %vm691, %v1271, -inf
    %1274 = vmax.xlane.f32.xlu0 %v1273
    %v1275 = vpop.xlane.xlu0 %1274
    %v1276 = vsel %vm691, %v1272, -inf
    %1277 = vmax.xlane.f32.xlu0 %v1276
    %v1278 = vpop.xlane.xlu0 %1277
    %v1279 = vsub.f32 %v1271, %v1275
    %v1280 = vsub.f32 %v1272, %v1278
    %v1281 = vmul.f32 %v1279, 1.442695
    %v1282 = vpow.pop %v1281
    %v1283 = vmul.f32 %v1280, 1.442695
    %v1284 = vpow.pop %v1283
    %v1285 = vsel %vm691, %v1282, 0.0
    %1286 = vadd.xlane.f32.xlu0 %v1285
    %v1287 = vpop.xlane.xlu0 %1286
    %v1288 = vsel %vm691, %v1284, 0.0
    %1289 = vadd.xlane.f32.xlu0 %v1288
    %v1290 = vpop.xlane.xlu0 %1289
    %v1291 = vrcp.pop %v1287
    %v1292 = vrcp.pop %v1290
    %v1293 = vmul.f32 %v1282, %v1291
    %v1294 = vmul.f32 %v1284, %v1292
    %v1295 = vmul.f32 %v1293, %v144
    %v1296 = vmul.f32 %v1294, %v145
    %v1297 = vmul.f32 %v602, %v143
    %v1298 = vmul.f32 %v605, %v143
    %v1300 = vsel %vm691, %v1295, 0
    %v1303 = vsel %vm691, %v1296, 0
    %1305 = vmatprep.subr.mxu0 0.0
    %1306 = vmatpush1.msra.mxu0 %v1297
    %1307 = vmatprep.subr.mxu0 0.0
    %1308 = vmatpush1.msra.mxu0 %v1298
    %1309 = vmatprep.subr.mxu0 0.0
    %1310 = vmatpush1.msra.mxu0 0.0
    %1311 = vmatprep.subr.mxu0 0.0
    %1312 = vmatpush1.msra.mxu0 0.0
    %1313 = vmatprep.subr.mxu0 0.0
    %1314 = vmatpush1.msra.mxu0 0.0
    %1315 = vmatprep.subr.mxu0 0.0
    %1316 = vmatpush1.msra.mxu0 0.0
    %1317 = vmatprep.subr.mxu0 0.0
    %1318 = vmatpush1.msra.mxu0 0.0
    %1319 = vmatprep.subr.mxu0 0.0
    %1320 = vmatpush1.msra.mxu0 0.0
    %1321 = vmatprep.subr.mxu0 0.0
    %1322 = vmatpush1.msra.mxu0 0.0
    %1323 = vmatprep.subr.mxu0 0.0
    %1324 = vmatpush1.msra.mxu0 0.0
    %1325 = vmatprep.subr.mxu0 0.0
    %1326 = vmatpush1.msra.mxu0 0.0
    %1327 = vmatprep.subr.mxu0 0.0
    %1328 = vmatpush1.msra.mxu0 0.0
    %1329 = vmatprep.subr.mxu0 0.0
    %1330 = vmatpush1.msra.mxu0 0.0
    %1331 = vmatprep.subr.mxu0 0.0
    %1332 = vmatpush1.msra.mxu0 0.0
    %1333 = vmatprep.subr.mxu0 0.0
    %1334 = vmatpush1.msra.mxu0 0.0
    %1335 = vmatprep.subr.mxu0 0.0
    %1336 = vmatpush1.msra.mxu0 0.0
    %1337 = vmatprep.subr.mxu0 0.0
    %1338 = vmatpush1.msra.mxu0 0.0
    %1339 = vmatprep.subr.mxu0 0.0
    %1340 = vmatpush1.msra.mxu0 0.0
    %1341 = vmatprep.subr.mxu0 0.0
    %1342 = vmatpush1.msra.mxu0 0.0
    %1343 = vmatprep.subr.mxu0 0.0
    %1344 = vmatpush1.msra.mxu0 0.0
    %1345 = vmatprep.subr.mxu0 0.0
    %1346 = vmatpush1.msra.mxu0 0.0
    %1347 = vmatprep.subr.mxu0 0.0
    %1348 = vmatpush1.msra.mxu0 0.0
    %1349 = vmatprep.subr.mxu0 0.0
    %1350 = vmatpush1.msra.mxu0 0.0
    %1351 = vmatprep.subr.mxu0 0.0
    %1352 = vmatpush1.msra.mxu0 0.0
    %1353 = vmatprep.subr.mxu0 0.0
    %1354 = vmatpush1.msra.mxu0 0.0
    %1355 = vmatprep.subr.mxu0 0.0
    %1356 = vmatpush1.msra.mxu0 0.0
    %1357 = vmatprep.subr.mxu0 0.0
    %1358 = vmatpush1.msra.mxu0 0.0
    %1359 = vmatprep.subr.mxu0 0.0
    %1360 = vmatpush1.msra.mxu0 0.0
    %1361 = vmatprep.subr.mxu0 0.0
    %1362 = vmatpush1.msra.mxu0 0.0
    %1363 = vmatprep.subr.mxu0 0.0
    %1364 = vmatpush1.msra.mxu0 0.0
    %1365 = vmatprep.subr.mxu0 0.0
    %1366 = vmatpush1.msra.mxu0 0.0
    %1367 = vmatprep.subr.mxu0 0.0
    %1368 = vmatpush1.msra.mxu0 0.0
    %1369 = vmatprep.mubr.f32.mxu0 0.0
    %1370 = vmatmul.mubr.f32.gmra.mrb[0].mxu0 %v1300
    %v1371 = vpop.f32.mrb[0].mxu0
    %v1372 = vadd.f32 0.0, %v1371
    %v1373 = vpop.f32.mrb[0].mxu0
    %1374 = vmatprep.mubr.f32.mxu0 0.0
    %1375 = vmatmul.mubr.f32.gmra.mrb[0].mxu0 %v1303
    %v1376 = vpop.f32.mrb[0].mxu0
    %v1377 = vadd.f32 0.0, %v1376
    %v1378 = vpop.f32.mrb[0].mxu0
    %1379 = vdwg.mxu0
    %v1380 = vadd.f32 %v1185, %v1372
    %v1381 = vadd.f32 %v1186, %v1377
    %v1382 = vld [vmem:[#allocation10] sm:$0xff]
    %v1383 = vld [vmem:[#allocation10 + $0x8] sm:$0xff]
    %v1384 = vld [vmem:[#allocation10 + $0x10] sm:$0xff]
    %v1385 = vld [vmem:[#allocation10 + $0x18] sm:$0xff]
    %v1386 = vld [vmem:[#allocation10 + $0x20] sm:$0xff]
    %v1387 = vld [vmem:[#allocation10 + $0x28] sm:$0xff]
    %v1388 = vld [vmem:[#allocation10 + $0x30] sm:$0xff]
    %v1389 = vld [vmem:[#allocation10 + $0x38] sm:$0xff]
    %v1390 = vld [vmem:[#allocation10 + $0x40] sm:$0xff]
    %v1391 = vld [vmem:[#allocation10 + $0x48] sm:$0xff]
    %v1392 = vld [vmem:[#allocation10 + $0x50] sm:$0xff]
    %v1393 = vld [vmem:[#allocation10 + $0x58] sm:$0xff]
    %v1394 = vld [vmem:[#allocation10 + $0x60] sm:$0xff]
    %v1395 = vld [vmem:[#allocation10 + $0x68] sm:$0xff]
    %v1396 = vld [vmem:[#allocation10 + $0x70] sm:$0xff]
    %v1397 = vld [vmem:[#allocation10 + $0x78] sm:$0xff]
    %v1398 = vld [vmem:[%s6] sm:$0x1]
    %v1400 = vlaneseq
    %v1401 = vshrl.u32 %v1400, 7
    %v1402 = vsub.s32 0, %v1401
    %v1403 = vrot.slane %v1398, %v1402
    %1405 = vmatprep.subr.mxu0 0.0
    %1406 = vmatpush1.msra.mxu0 %v1382
    %1407 = vmatprep.subr.mxu0 0.0
    %1408 = vmatpush1.msra.mxu0 %v1383
    %1409 = vmatprep.subr.mxu0 0.0
    %1410 = vmatpush1.msra.mxu0 %v1384
    %1411 = vmatprep.subr.mxu0 0.0
    %1412 = vmatpush1.msra.mxu0 %v1385
    %1413 = vmatprep.subr.mxu0 0.0
    %1414 = vmatpush1.msra.mxu0 %v1386
    %1415 = vmatprep.subr.mxu0 0.0
    %1416 = vmatpush1.msra.mxu0 %v1387
    %1417 = vmatprep.subr.mxu0 0.0
    %1418 = vmatpush1.msra.mxu0 %v1388
    %1419 = vmatprep.subr.mxu0 0.0
    %1420 = vmatpush1.msra.mxu0 %v1389
    %1421 = vmatprep.subr.mxu0 0.0
    %1422 = vmatpush1.msra.mxu0 %v1390
    %1423 = vmatprep.subr.mxu0 0.0
    %1424 = vmatpush1.msra.mxu0 %v1391
    %1425 = vmatprep.subr.mxu0 0.0
    %1426 = vmatpush1.msra.mxu0 %v1392
    %1427 = vmatprep.subr.mxu0 0.0
    %1428 = vmatpush1.msra.mxu0 %v1393
    %1429 = vmatprep.subr.mxu0 0.0
    %1430 = vmatpush1.msra.mxu0 %v1394
    %1431 = vmatprep.subr.mxu0 0.0
    %1432 = vmatpush1.msra.mxu0 %v1395
    %1433 = vmatprep.subr.mxu0 0.0
    %1434 = vmatpush1.msra.mxu0 %v1396
    %1435 = vmatprep.subr.mxu0 0.0
    %1436 = vmatpush1.msra.mxu0 %v1397
    %1437 = vmatprep.subr.mxu0 0.0
    %1438 = vmatpush1.msra.mxu0 0.0
    %1439 = vmatprep.subr.mxu0 0.0
    %1440 = vmatpush1.msra.mxu0 0.0
    %1441 = vmatprep.subr.mxu0 0.0
    %1442 = vmatpush1.msra.mxu0 0.0
    %1443 = vmatprep.subr.mxu0 0.0
    %1444 = vmatpush1.msra.mxu0 0.0
    %1445 = vmatprep.subr.mxu0 0.0
    %1446 = vmatpush1.msra.mxu0 0.0
    %1447 = vmatprep.subr.mxu0 0.0
    %1448 = vmatpush1.msra.mxu0 0.0
    %1449 = vmatprep.subr.mxu0 0.0
    %1450 = vmatpush1.msra.mxu0 0.0
    %1451 = vmatprep.subr.mxu0 0.0
    %1452 = vmatpush1.msra.mxu0 0.0
    %1453 = vmatprep.subr.mxu0 0.0
    %1454 = vmatpush1.msra.mxu0 0.0
    %1455 = vmatprep.subr.mxu0 0.0
    %1456 = vmatpush1.msra.mxu0 0.0
    %1457 = vmatprep.subr.mxu0 0.0
    %1458 = vmatpush1.msra.mxu0 0.0
    %1459 = vmatprep.subr.mxu0 0.0
    %1460 = vmatpush1.msra.mxu0 0.0
    %1461 = vmatprep.subr.mxu0 0.0
    %1462 = vmatpush1.msra.mxu0 0.0
    %1463 = vmatprep.subr.mxu0 0.0
    %1464 = vmatpush1.msra.mxu0 0.0
    %1465 = vmatprep.subr.mxu0 0.0
    %1466 = vmatpush1.msra.mxu0 0.0
    %1467 = vmatprep.subr.mxu0 0.0
    %1468 = vmatpush1.msra.mxu0 0.0
    %1469 = vmatprep.mubr.f32.mxu0 0.0
    %1470 = vmatmul.mubr.f32.gmra.mrb[0].mxu0 %v1380
    %v1471 = vpop.f32.mrb[0].mxu0
    %v1472 = vadd.f32 %v1403, %v1471
    %v1473 = vpop.f32.mrb[0].mxu0
    %1474 = vmatprep.mubr.f32.mxu0 0.0
    %1475 = vmatmul.mubr.f32.gmra.mrb[0].mxu0 %v1381
    %v1476 = vpop.f32.mrb[0].mxu0
    %v1477 = vadd.f32 %v1403, %v1476
    %v1478 = vpop.f32.mrb[0].mxu0
    %1479 = vdwg.mxu0
    %v1480 = vmul.f32 %v113, %v1472
    %v1481 = vmul.f32 %v114, %v1477
    %s1482 = scalar_lea.vmem [#allocation10], 128
    %v1483 = vld [vmem:[%s1482] sm:$0xff]
    %v1484 = vld [vmem:[%s1482 + $0x8] sm:$0xff]
    %v1485 = vld [vmem:[%s1482 + $0x10] sm:$0xff]
    %v1486 = vld [vmem:[%s1482 + $0x18] sm:$0xff]
    %v1487 = vld [vmem:[%s1482 + $0x20] sm:$0xff]
    %v1488 = vld [vmem:[%s1482 + $0x28] sm:$0xff]
    %v1489 = vld [vmem:[%s1482 + $0x30] sm:$0xff]
    %v1490 = vld [vmem:[%s1482 + $0x38] sm:$0xff]
    %v1491 = vld [vmem:[%s1482 + $0x40] sm:$0xff]
    %v1492 = vld [vmem:[%s1482 + $0x48] sm:$0xff]
    %v1493 = vld [vmem:[%s1482 + $0x50] sm:$0xff]
    %v1494 = vld [vmem:[%s1482 + $0x58] sm:$0xff]
    %v1495 = vld [vmem:[%s1482 + $0x60] sm:$0xff]
    %v1496 = vld [vmem:[%s1482 + $0x68] sm:$0xff]
    %v1497 = vld [vmem:[%s1482 + $0x70] sm:$0xff]
    %v1498 = vld [vmem:[%s1482 + $0x78] sm:$0xff]
    %s1499 = scalar_lea.vmem %s6, 1
    %v1500 = vld [vmem:[%s1499] sm:$0x1]
    %v1502 = vlaneseq
    %v1503 = vshrl.u32 %v1502, 7
    %v1504 = vsub.s32 0, %v1503
    %v1505 = vrot.slane %v1500, %v1504
    %1507 = vmatprep.subr.mxu0 0.0
    %1508 = vmatpush1.msra.mxu0 %v1483
    %1509 = vmatprep.subr.mxu0 0.0
    %1510 = vmatpush1.msra.mxu0 %v1484
    %1511 = vmatprep.subr.mxu0 0.0
    %1512 = vmatpush1.msra.mxu0 %v1485
    %1513 = vmatprep.subr.mxu0 0.0
    %1514 = vmatpush1.msra.mxu0 %v1486
    %1515 = vmatprep.subr.mxu0 0.0
    %1516 = vmatpush1.msra.mxu0 %v1487
    %1517 = vmatprep.subr.mxu0 0.0
    %1518 = vmatpush1.msra.mxu0 %v1488
    %1519 = vmatprep.subr.mxu0 0.0
    %1520 = vmatpush1.msra.mxu0 %v1489
    %1521 = vmatprep.subr.mxu0 0.0
    %1522 = vmatpush1.msra.mxu0 %v1490
    %1523 = vmatprep.subr.mxu0 0.0
    %1524 = vmatpush1.msra.mxu0 %v1491
    %1525 = vmatprep.subr.mxu0 0.0
    %1526 = vmatpush1.msra.mxu0 %v1492
    %1527 = vmatprep.subr.mxu0 0.0
    %1528 = vmatpush1.msra.mxu0 %v1493
    %1529 = vmatprep.subr.mxu0 0.0
    %1530 = vmatpush1.msra.mxu0 %v1494
    %1531 = vmatprep.subr.mxu0 0.0
    %1532 = vmatpush1.msra.mxu0 %v1495
    %1533 = vmatprep.subr.mxu0 0.0
    %1534 = vmatpush1.msra.mxu0 %v1496
    %1535 = vmatprep.subr.mxu0 0.0
    %1536 = vmatpush1.msra.mxu0 %v1497
    %1537 = vmatprep.subr.mxu0 0.0
    %1538 = vmatpush1.msra.mxu0 %v1498
    %1539 = vmatprep.subr.mxu0 0.0
    %1540 = vmatpush1.msra.mxu0 0.0
    %1541 = vmatprep.subr.mxu0 0.0
    %1542 = vmatpush1.msra.mxu0 0.0
    %1543 = vmatprep.subr.mxu0 0.0
    %1544 = vmatpush1.msra.mxu0 0.0
    %1545 = vmatprep.subr.mxu0 0.0
    %1546 = vmatpush1.msra.mxu0 0.0
    %1547 = vmatprep.subr.mxu0 0.0
    %1548 = vmatpush1.msra.mxu0 0.0
    %1549 = vmatprep.subr.mxu0 0.0
    %1550 = vmatpush1.msra.mxu0 0.0
    %1551 = vmatprep.subr.mxu0 0.0
    %1552 = vmatpush1.msra.mxu0 0.0
    %1553 = vmatprep.subr.mxu0 0.0
    %1554 = vmatpush1.msra.mxu0 0.0
    %1555 = vmatprep.subr.mxu0 0.0
    %1556 = vmatpush1.msra.mxu0 0.0
    %1557 = vmatprep.subr.mxu0 0.0
    %1558 = vmatpush1.msra.mxu0 0.0
    %1559 = vmatprep.subr.mxu0 0.0
    %1560 = vmatpush1.msra.mxu0 0.0
    %1561 = vmatprep.subr.mxu0 0.0
    %1562 = vmatpush1.msra.mxu0 0.0
    %1563 = vmatprep.subr.mxu0 0.0
    %1564 = vmatpush1.msra.mxu0 0.0
    %1565 = vmatprep.subr.mxu0 0.0
    %1566 = vmatpush1.msra.mxu0 0.0
    %1567 = vmatprep.subr.mxu0 0.0
    %1568 = vmatpush1.msra.mxu0 0.0
    %1569 = vmatprep.subr.mxu0 0.0
    %1570 = vmatpush1.msra.mxu0 0.0
    %1571 = vmatprep.mubr.f32.mxu0 0.0
    %1572 = vmatmul.mubr.f32.gmra.mrb[0].mxu0 %v1380
    %v1573 = vpop.f32.mrb[0].mxu0
    %v1574 = vadd.f32 %v1505, %v1573
    %v1575 = vpop.f32.mrb[0].mxu0
    %1576 = vmatprep.mubr.f32.mxu0 0.0
    %1577 = vmatmul.mubr.f32.gmra.mrb[0].mxu0 %v1381
    %v1578 = vpop.f32.mrb[0].mxu0
    %v1579 = vadd.f32 %v1505, %v1578
    %v1580 = vpop.f32.mrb[0].mxu0
    %1581 = vdwg.mxu0
    %v1582 = vmul.f32 %v123, %v1574
    %v1583 = vmul.f32 %v124, %v1579
    %v1584 = vadd.f32 %v1480, %v1582
    %v1585 = vadd.f32 %v1481, %v1583
    %v1586 = vmul.f32 %v1584, %v108
    %v1587 = vmul.f32 %v1585, %v108
    %1588 = vadd.xlane.f32.xlu0 %v1586
    %v1589 = vpop.xlane.xlu0 %1588
    %1590 = vadd.xlane.f32.xlu0 %v1587
    %v1591 = vpop.xlane.xlu0 %1590
    %v1592 = vmul.f32 %v1589, 0.03125
    %v1593 = vmul.f32 %v1591, 0.03125
    %v1594 = vsub.f32 %v1584, %v1592
    %v1595 = vsub.f32 %v1585, %v1593
    %v1596 = vmul.f32 %v1594, %v108
    %v1597 = vmul.f32 %v1595, %v108
    %v1598 = vmul.f32 %v1596, %v1596
    %v1599 = vmul.f32 %v1597, %v1597
    %1600 = vadd.xlane.f32.xlu0 %v1598
    %v1601 = vpop.xlane.xlu0 %1600
    %1602 = vadd.xlane.f32.xlu0 %v1599
    %v1603 = vpop.xlane.xlu0 %1602
    %v1604 = vmul.f32 %v1601, 0.03125
    %v1605 = vmul.f32 %v1603, 0.03125
    %v1606 = vadd.f32 %v1604, 1e-05
    %v1607 = vadd.f32 %v1605, 1e-05
    %v1608 = vrsqrt.pop %v1606
    %v1609 = vrsqrt.pop %v1607
    %v1610 = vmul.f32 %v1596, %v1608
    %v1611 = vmul.f32 %v1597, %v1609
    %v1612 = vld [vmem:[%s7] sm:$0x1]
    %v1614 = vlaneseq
    %v1615 = vshrl.u32 %v1614, 7
    %v1616 = vsub.s32 0, %v1615
    %v1617 = vrot.slane %v1612, %v1616
    %v1619 = vmul.f32 %v1610, %v1617
    %v1620 = vmul.f32 %v1611, %v1617
    %v1621 = vld [vmem:[%s8] sm:$0x1]
    %v1623 = vlaneseq
    %v1624 = vshrl.u32 %v1623, 7
    %v1625 = vsub.s32 0, %v1624
    %v1626 = vrot.slane %v1621, %v1625
    %v1628 = vadd.f32 %v1619, %v1626
    %v1629 = vadd.f32 %v1620, %v1626
    %v1630 = vmul.f32 %v113, %v1628
    %v1631 = vmul.f32 %v114, %v1629
    %s1632 = scalar_lea.vmem %s7, 1
    %v1633 = vld [vmem:[%s1632] sm:$0x1]
    %v1635 = vlaneseq
    %v1636 = vshrl.u32 %v1635, 7
    %v1637 = vsub.s32 0, %v1636
    %v1638 = vrot.slane %v1633, %v1637
    %v1640 = vmul.f32 %v1610, %v1638
    %v1641 = vmul.f32 %v1611, %v1638
    %s1642 = scalar_lea.vmem %s8, 1
    %v1643 = vld [vmem:[%s1642] sm:$0x1]
    %v1645 = vlaneseq
    %v1646 = vshrl.u32 %v1645, 7
    %v1647 = vsub.s32 0, %v1646
    %v1648 = vrot.slane %v1643, %v1647
    %v1650 = vadd.f32 %v1640, %v1648
    %v1651 = vadd.f32 %v1641, %v1648
    %v1652 = vmul.f32 %v123, %v1650
    %v1653 = vmul.f32 %v124, %v1651
    %v1654 = vadd.f32 %v1630, %v1652
    %v1655 = vadd.f32 %v1631, %v1653
    %v1656 = vadd.f32 %v1654, %v150
    %v1657 = vadd.f32 %v1655, %v151
    %s1658 = scalar_lea.vmem [#allocation8], 768
    %v1659 = vld [vmem:[%s1658] sm:$0xff]
    %v1660 = vld [vmem:[%s1658 + $0x8] sm:$0xff]
    %v1661 = vld [vmem:[%s1658 + $0x10] sm:$0xff]
    %v1662 = vld [vmem:[%s1658 + $0x18] sm:$0xff]
    %v1663 = vld [vmem:[%s1658 + $0x20] sm:$0xff]
    %v1664 = vld [vmem:[%s1658 + $0x28] sm:$0xff]
    %v1665 = vld [vmem:[%s1658 + $0x30] sm:$0xff]
    %v1666 = vld [vmem:[%s1658 + $0x38] sm:$0xff]
    %v1667 = vld [vmem:[%s1658 + $0x40] sm:$0xff]
    %v1668 = vld [vmem:[%s1658 + $0x48] sm:$0xff]
    %v1669 = vld [vmem:[%s1658 + $0x50] sm:$0xff]
    %v1670 = vld [vmem:[%s1658 + $0x58] sm:$0xff]
    %v1671 = vld [vmem:[%s1658 + $0x60] sm:$0xff]
    %v1672 = vld [vmem:[%s1658 + $0x68] sm:$0xff]
    %v1673 = vld [vmem:[%s1658 + $0x70] sm:$0xff]
    %v1674 = vld [vmem:[%s1658 + $0x78] sm:$0xff]
    %v1675 = vld [vmem:[%s1658 + $0x80] sm:$0xff]
    %v1676 = vld [vmem:[%s1658 + $0x88] sm:$0xff]
    %v1677 = vld [vmem:[%s1658 + $0x90] sm:$0xff]
    %v1678 = vld [vmem:[%s1658 + $0x98] sm:$0xff]
    %v1679 = vld [vmem:[%s1658 + $0xa0] sm:$0xff]
    %v1680 = vld [vmem:[%s1658 + $0xa8] sm:$0xff]
    %v1681 = vld [vmem:[%s1658 + $0xb0] sm:$0xff]
    %v1682 = vld [vmem:[%s1658 + $0xb8] sm:$0xff]
    %v1683 = vld [vmem:[%s1658 + $0xc0] sm:$0xff]
    %v1684 = vld [vmem:[%s1658 + $0xc8] sm:$0xff]
    %v1685 = vld [vmem:[%s1658 + $0xd0] sm:$0xff]
    %v1686 = vld [vmem:[%s1658 + $0xd8] sm:$0xff]
    %v1687 = vld [vmem:[%s1658 + $0xe0] sm:$0xff]
    %v1688 = vld [vmem:[%s1658 + $0xe8] sm:$0xff]
    %v1689 = vld [vmem:[%s1658 + $0xf0] sm:$0xff]
    %v1690 = vld [vmem:[%s1658 + $0xf8] sm:$0xff]
    %v1691 = vld [vmem:[%s1658 + $0x100] sm:$0xff]
    %v1692 = vld [vmem:[%s1658 + $0x108] sm:$0xff]
    %v1693 = vld [vmem:[%s1658 + $0x110] sm:$0xff]
    %v1694 = vld [vmem:[%s1658 + $0x118] sm:$0xff]
    %v1695 = vld [vmem:[%s1658 + $0x120] sm:$0xff]
    %v1696 = vld [vmem:[%s1658 + $0x128] sm:$0xff]
    %v1697 = vld [vmem:[%s1658 + $0x130] sm:$0xff]
    %v1698 = vld [vmem:[%s1658 + $0x138] sm:$0xff]
    %v1699 = vld [vmem:[%s1658 + $0x140] sm:$0xff]
    %v1700 = vld [vmem:[%s1658 + $0x148] sm:$0xff]
    %v1701 = vld [vmem:[%s1658 + $0x150] sm:$0xff]
    %v1702 = vld [vmem:[%s1658 + $0x158] sm:$0xff]
    %v1703 = vld [vmem:[%s1658 + $0x160] sm:$0xff]
    %v1704 = vld [vmem:[%s1658 + $0x168] sm:$0xff]
    %v1705 = vld [vmem:[%s1658 + $0x170] sm:$0xff]
    %v1706 = vld [vmem:[%s1658 + $0x178] sm:$0xff]
    %s1707 = scalar_lea.vmem %s4, 6
    %v1708 = vld [vmem:[%s1707] sm:$0x7]
    %v1710 = vlaneseq
    %v1711 = vshrl.u32 %v1710, 7
    %v1712 = vsub.s32 0, %v1711
    %v1713 = vrot.slane %v1708, %v1712
    %v1714 = vlaneseq
    %v1715 = vshrl.u32 %v1714, 7
    %v1716 = vsub.s32 1, %v1715
    %v1717 = vrot.slane %v1708, %v1716
    %v1718 = vlaneseq
    %v1719 = vshrl.u32 %v1718, 7
    %v1720 = vsub.s32 2, %v1719
    %v1721 = vrot.slane %v1708, %v1720
    %1725 = vmatprep.subr.mxu0 %v1660
    %1726 = vmatpush1.msra.mxu0 %v1659
    %1727 = vmatprep.subr.mxu0 %v1663
    %1728 = vmatpush1.msra.mxu0 %v1662
    %1729 = vmatprep.subr.mxu0 %v1666
    %1730 = vmatpush1.msra.mxu0 %v1665
    %1731 = vmatprep.subr.mxu0 %v1669
    %1732 = vmatpush1.msra.mxu0 %v1668
    %1733 = vmatprep.subr.mxu0 %v1672
    %1734 = vmatpush1.msra.mxu0 %v1671
    %1735 = vmatprep.subr.mxu0 %v1675
    %1736 = vmatpush1.msra.mxu0 %v1674
    %1737 = vmatprep.subr.mxu0 %v1678
    %1738 = vmatpush1.msra.mxu0 %v1677
    %1739 = vmatprep.subr.mxu0 %v1681
    %1740 = vmatpush1.msra.mxu0 %v1680
    %1741 = vmatprep.subr.mxu0 %v1684
    %1742 = vmatpush1.msra.mxu0 %v1683
    %1743 = vmatprep.subr.mxu0 %v1687
    %1744 = vmatpush1.msra.mxu0 %v1686
    %1745 = vmatprep.subr.mxu0 %v1690
    %1746 = vmatpush1.msra.mxu0 %v1689
    %1747 = vmatprep.subr.mxu0 %v1693
    %1748 = vmatpush1.msra.mxu0 %v1692
    %1749 = vmatprep.subr.mxu0 %v1696
    %1750 = vmatpush1.msra.mxu0 %v1695
    %1751 = vmatprep.subr.mxu0 %v1699
    %1752 = vmatpush1.msra.mxu0 %v1698
    %1753 = vmatprep.subr.mxu0 %v1702
    %1754 = vmatpush1.msra.mxu0 %v1701
    %1755 = vmatprep.subr.mxu0 %v1705
    %1756 = vmatpush1.msra.mxu0 %v1704
    %1757 = vmatprep.subr.mxu0 0.0
    %1758 = vmatpush1.msra.mxu0 0.0
    %1759 = vmatprep.subr.mxu0 0.0
    %1760 = vmatpush1.msra.mxu0 0.0
    %1761 = vmatprep.subr.mxu0 0.0
    %1762 = vmatpush1.msra.mxu0 0.0
    %1763 = vmatprep.subr.mxu0 0.0
    %1764 = vmatpush1.msra.mxu0 0.0
    %1765 = vmatprep.subr.mxu0 0.0
    %1766 = vmatpush1.msra.mxu0 0.0
    %1767 = vmatprep.subr.mxu0 0.0
    %1768 = vmatpush1.msra.mxu0 0.0
    %1769 = vmatprep.subr.mxu0 0.0
    %1770 = vmatpush1.msra.mxu0 0.0
    %1771 = vmatprep.subr.mxu0 0.0
    %1772 = vmatpush1.msra.mxu0 0.0
    %1773 = vmatprep.subr.mxu0 0.0
    %1774 = vmatpush1.msra.mxu0 0.0
    %1775 = vmatprep.subr.mxu0 0.0
    %1776 = vmatpush1.msra.mxu0 0.0
    %1777 = vmatprep.subr.mxu0 0.0
    %1778 = vmatpush1.msra.mxu0 0.0
    %1779 = vmatprep.subr.mxu0 0.0
    %1780 = vmatpush1.msra.mxu0 0.0
    %1781 = vmatprep.subr.mxu0 0.0
    %1782 = vmatpush1.msra.mxu0 0.0
    %1783 = vmatprep.subr.mxu0 0.0
    %1784 = vmatpush1.msra.mxu0 0.0
    %1785 = vmatprep.subr.mxu0 0.0
    %1786 = vmatpush1.msra.mxu0 0.0
    %1787 = vmatprep.subr.mxu0 0.0
    %1788 = vmatpush1.msra.mxu0 0.0
    %1789 = vmatprep.mubr.f32.mxu0 0.0
    %1790 = vmatmul.mubr.f32.gmra.mrb[0].mxu0 %v1656
    %v1791 = vpop.f32.mrb[0].mxu0
    %v1792 = vadd.f32 %v1713, %v1791
    %v1793 = vpop.f32.mrb[0].mxu0
    %v1794 = vadd.f32 %v1717, %v1793
    %1795 = vmatprep.mubr.f32.mxu0 0.0
    %1796 = vmatmul.mubr.f32.gmra.mrb[0].mxu0 %v1657
    %v1797 = vpop.f32.mrb[0].mxu0
    %v1798 = vadd.f32 %v1713, %v1797
    %v1799 = vpop.f32.mrb[0].mxu0
    %v1800 = vadd.f32 %v1717, %v1799
    %1801 = vdwg.mxu0
    %1802 = vmatprep.subr.mxu0 0.0
    %1803 = vmatpush1.msra.mxu0 %v1661
    %1804 = vmatprep.subr.mxu0 0.0
    %1805 = vmatpush1.msra.mxu0 %v1664
    %1806 = vmatprep.subr.mxu0 0.0
    %1807 = vmatpush1.msra.mxu0 %v1667
    %1808 = vmatprep.subr.mxu0 0.0
    %1809 = vmatpush1.msra.mxu0 %v1670
    %1810 = vmatprep.subr.mxu0 0.0
    %1811 = vmatpush1.msra.mxu0 %v1673
    %1812 = vmatprep.subr.mxu0 0.0
    %1813 = vmatpush1.msra.mxu0 %v1676
    %1814 = vmatprep.subr.mxu0 0.0
    %1815 = vmatpush1.msra.mxu0 %v1679
    %1816 = vmatprep.subr.mxu0 0.0
    %1817 = vmatpush1.msra.mxu0 %v1682
    %1818 = vmatprep.subr.mxu0 0.0
    %1819 = vmatpush1.msra.mxu0 %v1685
    %1820 = vmatprep.subr.mxu0 0.0
    %1821 = vmatpush1.msra.mxu0 %v1688
    %1822 = vmatprep.subr.mxu0 0.0
    %1823 = vmatpush1.msra.mxu0 %v1691
    %1824 = vmatprep.subr.mxu0 0.0
    %1825 = vmatpush1.msra.mxu0 %v1694
    %1826 = vmatprep.subr.mxu0 0.0
    %1827 = vmatpush1.msra.mxu0 %v1697
    %1828 = vmatprep.subr.mxu0 0.0
    %1829 = vmatpush1.msra.mxu0 %v1700
    %1830 = vmatprep.subr.mxu0 0.0
    %1831 = vmatpush1.msra.mxu0 %v1703
    %1832 = vmatprep.subr.mxu0 0.0
    %1833 = vmatpush1.msra.mxu0 %v1706
    %1834 = vmatprep.subr.mxu0 0.0
    %1835 = vmatpush1.msra.mxu0 0.0
    %1836 = vmatprep.subr.mxu0 0.0
    %1837 = vmatpush1.msra.mxu0 0.0
    %1838 = vmatprep.subr.mxu0 0.0
    %1839 = vmatpush1.msra.mxu0 0.0
    %1840 = vmatprep.subr.mxu0 0.0
    %1841 = vmatpush1.msra.mxu0 0.0
    %1842 = vmatprep.subr.mxu0 0.0
    %1843 = vmatpush1.msra.mxu0 0.0
    %1844 = vmatprep.subr.mxu0 0.0
    %1845 = vmatpush1.msra.mxu0 0.0
    %1846 = vmatprep.subr.mxu0 0.0
    %1847 = vmatpush1.msra.mxu0 0.0
    %1848 = vmatprep.subr.mxu0 0.0
    %1849 = vmatpush1.msra.mxu0 0.0
    %1850 = vmatprep.subr.mxu0 0.0
    %1851 = vmatpush1.msra.mxu0 0.0
    %1852 = vmatprep.subr.mxu0 0.0
    %1853 = vmatpush1.msra.mxu0 0.0
    %1854 = vmatprep.subr.mxu0 0.0
    %1855 = vmatpush1.msra.mxu0 0.0
    %1856 = vmatprep.subr.mxu0 0.0
    %1857 = vmatpush1.msra.mxu0 0.0
    %1858 = vmatprep.subr.mxu0 0.0
    %1859 = vmatpush1.msra.mxu0 0.0
    %1860 = vmatprep.subr.mxu0 0.0
    %1861 = vmatpush1.msra.mxu0 0.0
    %1862 = vmatprep.subr.mxu0 0.0
    %1863 = vmatpush1.msra.mxu0 0.0
    %1864 = vmatprep.subr.mxu0 0.0
    %1865 = vmatpush1.msra.mxu0 0.0
    %1866 = vmatprep.mubr.f32.mxu0 0.0
    %1867 = vmatmul.mubr.f32.gmra.mrb[0].mxu0 %v1656
    %v1868 = vpop.f32.mrb[0].mxu0
    %v1869 = vadd.f32 %v1721, %v1868
    %v1870 = vpop.f32.mrb[0].mxu0
    %1871 = vmatprep.mubr.f32.mxu0 0.0
    %1872 = vmatmul.mubr.f32.gmra.mrb[0].mxu0 %v1657
    %v1873 = vpop.f32.mrb[0].mxu0
    %v1874 = vadd.f32 %v1721, %v1873
    %v1875 = vpop.f32.mrb[0].mxu0
    %1876 = vdwg.mxu0
    %v1877 = vmul.f32 %v113, %v1792
    %v1878 = vmul.f32 %v113, %v1794
    %v1879 = vmul.f32 %v113, %v1869
    %v1880 = vmul.f32 %v114, %v1798
    %v1881 = vmul.f32 %v114, %v1800
    %v1882 = vmul.f32 %v114, %v1874
    %s1883 = scalar_lea.vmem [#allocation8], 1152
    %v1884 = vld [vmem:[%s1883] sm:$0xff]
    %v1885 = vld [vmem:[%s1883 + $0x8] sm:$0xff]
    %v1886 = vld [vmem:[%s1883 + $0x10] sm:$0xff]
    %v1887 = vld [vmem:[%s1883 + $0x18] sm:$0xff]
    %v1888 = vld [vmem:[%s1883 + $0x20] sm:$0xff]
    %v1889 = vld [vmem:[%s1883 + $0x28] sm:$0xff]
    %v1890 = vld [vmem:[%s1883 + $0x30] sm:$0xff]
    %v1891 = vld [vmem:[%s1883 + $0x38] sm:$0xff]
    %v1892 = vld [vmem:[%s1883 + $0x40] sm:$0xff]
    %v1893 = vld [vmem:[%s1883 + $0x48] sm:$0xff]
    %v1894 = vld [vmem:[%s1883 + $0x50] sm:$0xff]
    %v1895 = vld [vmem:[%s1883 + $0x58] sm:$0xff]
    %v1896 = vld [vmem:[%s1883 + $0x60] sm:$0xff]
    %v1897 = vld [vmem:[%s1883 + $0x68] sm:$0xff]
    %v1898 = vld [vmem:[%s1883 + $0x70] sm:$0xff]
    %v1899 = vld [vmem:[%s1883 + $0x78] sm:$0xff]
    %v1900 = vld [vmem:[%s1883 + $0x80] sm:$0xff]
    %v1901 = vld [vmem:[%s1883 + $0x88] sm:$0xff]
    %v1902 = vld [vmem:[%s1883 + $0x90] sm:$0xff]
    %v1903 = vld [vmem:[%s1883 + $0x98] sm:$0xff]
    %v1904 = vld [vmem:[%s1883 + $0xa0] sm:$0xff]
    %v1905 = vld [vmem:[%s1883 + $0xa8] sm:$0xff]
    %v1906 = vld [vmem:[%s1883 + $0xb0] sm:$0xff]
    %v1907 = vld [vmem:[%s1883 + $0xb8] sm:$0xff]
    %v1908 = vld [vmem:[%s1883 + $0xc0] sm:$0xff]
    %v1909 = vld [vmem:[%s1883 + $0xc8] sm:$0xff]
    %v1910 = vld [vmem:[%s1883 + $0xd0] sm:$0xff]
    %v1911 = vld [vmem:[%s1883 + $0xd8] sm:$0xff]
    %v1912 = vld [vmem:[%s1883 + $0xe0] sm:$0xff]
    %v1913 = vld [vmem:[%s1883 + $0xe8] sm:$0xff]
    %v1914 = vld [vmem:[%s1883 + $0xf0] sm:$0xff]
    %v1915 = vld [vmem:[%s1883 + $0xf8] sm:$0xff]
    %v1916 = vld [vmem:[%s1883 + $0x100] sm:$0xff]
    %v1917 = vld [vmem:[%s1883 + $0x108] sm:$0xff]
    %v1918 = vld [vmem:[%s1883 + $0x110] sm:$0xff]
    %v1919 = vld [vmem:[%s1883 + $0x118] sm:$0xff]
    %v1920 = vld [vmem:[%s1883 + $0x120] sm:$0xff]
    %v1921 = vld [vmem:[%s1883 + $0x128] sm:$0xff]
    %v1922 = vld [vmem:[%s1883 + $0x130] sm:$0xff]
    %v1923 = vld [vmem:[%s1883 + $0x138] sm:$0xff]
    %v1924 = vld [vmem:[%s1883 + $0x140] sm:$0xff]
    %v1925 = vld [vmem:[%s1883 + $0x148] sm:$0xff]
    %v1926 = vld [vmem:[%s1883 + $0x150] sm:$0xff]
    %v1927 = vld [vmem:[%s1883 + $0x158] sm:$0xff]
    %v1928 = vld [vmem:[%s1883 + $0x160] sm:$0xff]
    %v1929 = vld [vmem:[%s1883 + $0x168] sm:$0xff]
    %v1930 = vld [vmem:[%s1883 + $0x170] sm:$0xff]
    %v1931 = vld [vmem:[%s1883 + $0x178] sm:$0xff]
    %s1932 = scalar_lea.vmem %s4, 9
    %v1933 = vld [vmem:[%s1932] sm:$0x7]
    %v1935 = vlaneseq
    %v1936 = vshrl.u32 %v1935, 7
    %v1937 = vsub.s32 0, %v1936
    %v1938 = vrot.slane %v1933, %v1937
    %v1939 = vlaneseq
    %v1940 = vshrl.u32 %v1939, 7
    %v1941 = vsub.s32 1, %v1940
    %v1942 = vrot.slane %v1933, %v1941
    %v1943 = vlaneseq
    %v1944 = vshrl.u32 %v1943, 7
    %v1945 = vsub.s32 2, %v1944
    %v1946 = vrot.slane %v1933, %v1945
    %1950 = vmatprep.subr.mxu0 %v1885
    %1951 = vmatpush1.msra.mxu0 %v1884
    %1952 = vmatprep.subr.mxu0 %v1888
    %1953 = vmatpush1.msra.mxu0 %v1887
    %1954 = vmatprep.subr.mxu0 %v1891
    %1955 = vmatpush1.msra.mxu0 %v1890
    %1956 = vmatprep.subr.mxu0 %v1894
    %1957 = vmatpush1.msra.mxu0 %v1893
    %1958 = vmatprep.subr.mxu0 %v1897
    %1959 = vmatpush1.msra.mxu0 %v1896
    %1960 = vmatprep.subr.mxu0 %v1900
    %1961 = vmatpush1.msra.mxu0 %v1899
    %1962 = vmatprep.subr.mxu0 %v1903
    %1963 = vmatpush1.msra.mxu0 %v1902
    %1964 = vmatprep.subr.mxu0 %v1906
    %1965 = vmatpush1.msra.mxu0 %v1905
    %1966 = vmatprep.subr.mxu0 %v1909
    %1967 = vmatpush1.msra.mxu0 %v1908
    %1968 = vmatprep.subr.mxu0 %v1912
    %1969 = vmatpush1.msra.mxu0 %v1911
    %1970 = vmatprep.subr.mxu0 %v1915
    %1971 = vmatpush1.msra.mxu0 %v1914
    %1972 = vmatprep.subr.mxu0 %v1918
    %1973 = vmatpush1.msra.mxu0 %v1917
    %1974 = vmatprep.subr.mxu0 %v1921
    %1975 = vmatpush1.msra.mxu0 %v1920
    %1976 = vmatprep.subr.mxu0 %v1924
    %1977 = vmatpush1.msra.mxu0 %v1923
    %1978 = vmatprep.subr.mxu0 %v1927
    %1979 = vmatpush1.msra.mxu0 %v1926
    %1980 = vmatprep.subr.mxu0 %v1930
    %1981 = vmatpush1.msra.mxu0 %v1929
    %1982 = vmatprep.subr.mxu0 0.0
    %1983 = vmatpush1.msra.mxu0 0.0
    %1984 = vmatprep.subr.mxu0 0.0
    %1985 = vmatpush1.msra.mxu0 0.0
    %1986 = vmatprep.subr.mxu0 0.0
    %1987 = vmatpush1.msra.mxu0 0.0
    %1988 = vmatprep.subr.mxu0 0.0
    %1989 = vmatpush1.msra.mxu0 0.0
    %1990 = vmatprep.subr.mxu0 0.0
    %1991 = vmatpush1.msra.mxu0 0.0
    %1992 = vmatprep.subr.mxu0 0.0
    %1993 = vmatpush1.msra.mxu0 0.0
    %1994 = vmatprep.subr.mxu0 0.0
    %1995 = vmatpush1.msra.mxu0 0.0
    %1996 = vmatprep.subr.mxu0 0.0
    %1997 = vmatpush1.msra.mxu0 0.0
    %1998 = vmatprep.subr.mxu0 0.0
    %1999 = vmatpush1.msra.mxu0 0.0
    %2000 = vmatprep.subr.mxu0 0.0
    %2001 = vmatpush1.msra.mxu0 0.0
    %2002 = vmatprep.subr.mxu0 0.0
    %2003 = vmatpush1.msra.mxu0 0.0
    %2004 = vmatprep.subr.mxu0 0.0
    %2005 = vmatpush1.msra.mxu0 0.0
    %2006 = vmatprep.subr.mxu0 0.0
    %2007 = vmatpush1.msra.mxu0 0.0
    %2008 = vmatprep.subr.mxu0 0.0
    %2009 = vmatpush1.msra.mxu0 0.0
    %2010 = vmatprep.subr.mxu0 0.0
    %2011 = vmatpush1.msra.mxu0 0.0
    %2012 = vmatprep.subr.mxu0 0.0
    %2013 = vmatpush1.msra.mxu0 0.0
    %2014 = vmatprep.mubr.f32.mxu0 0.0
    %2015 = vmatmul.mubr.f32.gmra.mrb[0].mxu0 %v1656
    %v2016 = vpop.f32.mrb[0].mxu0
    %v2017 = vadd.f32 %v1938, %v2016
    %v2018 = vpop.f32.mrb[0].mxu0
    %v2019 = vadd.f32 %v1942, %v2018
    %2020 = vmatprep.mubr.f32.mxu0 0.0
    %2021 = vmatmul.mubr.f32.gmra.mrb[0].mxu0 %v1657
    %v2022 = vpop.f32.mrb[0].mxu0
    %v2023 = vadd.f32 %v1938, %v2022
    %v2024 = vpop.f32.mrb[0].mxu0
    %v2025 = vadd.f32 %v1942, %v2024
    %2026 = vdwg.mxu0
    %2027 = vmatprep.subr.mxu0 0.0
    %2028 = vmatpush1.msra.mxu0 %v1886
    %2029 = vmatprep.subr.mxu0 0.0
    %2030 = vmatpush1.msra.mxu0 %v1889
    %2031 = vmatprep.subr.mxu0 0.0
    %2032 = vmatpush1.msra.mxu0 %v1892
    %2033 = vmatprep.subr.mxu0 0.0
    %2034 = vmatpush1.msra.mxu0 %v1895
    %2035 = vmatprep.subr.mxu0 0.0
    %2036 = vmatpush1.msra.mxu0 %v1898
    %2037 = vmatprep.subr.mxu0 0.0
    %2038 = vmatpush1.msra.mxu0 %v1901
    %2039 = vmatprep.subr.mxu0 0.0
    %2040 = vmatpush1.msra.mxu0 %v1904
    %2041 = vmatprep.subr.mxu0 0.0
    %2042 = vmatpush1.msra.mxu0 %v1907
    %2043 = vmatprep.subr.mxu0 0.0
    %2044 = vmatpush1.msra.mxu0 %v1910
    %2045 = vmatprep.subr.mxu0 0.0
    %2046 = vmatpush1.msra.mxu0 %v1913
    %2047 = vmatprep.subr.mxu0 0.0
    %2048 = vmatpush1.msra.mxu0 %v1916
    %2049 = vmatprep.subr.mxu0 0.0
    %2050 = vmatpush1.msra.mxu0 %v1919
    %2051 = vmatprep.subr.mxu0 0.0
    %2052 = vmatpush1.msra.mxu0 %v1922
    %2053 = vmatprep.subr.mxu0 0.0
    %2054 = vmatpush1.msra.mxu0 %v1925
    %2055 = vmatprep.subr.mxu0 0.0
    %2056 = vmatpush1.msra.mxu0 %v1928
    %2057 = vmatprep.subr.mxu0 0.0
    %2058 = vmatpush1.msra.mxu0 %v1931
    %2059 = vmatprep.subr.mxu0 0.0
    %2060 = vmatpush1.msra.mxu0 0.0
    %2061 = vmatprep.subr.mxu0 0.0
    %2062 = vmatpush1.msra.mxu0 0.0
    %2063 = vmatprep.subr.mxu0 0.0
    %2064 = vmatpush1.msra.mxu0 0.0
    %2065 = vmatprep.subr.mxu0 0.0
    %2066 = vmatpush1.msra.mxu0 0.0
    %2067 = vmatprep.subr.mxu0 0.0
    %2068 = vmatpush1.msra.mxu0 0.0
    %2069 = vmatprep.subr.mxu0 0.0
    %2070 = vmatpush1.msra.mxu0 0.0
    %2071 = vmatprep.subr.mxu0 0.0
    %2072 = vmatpush1.msra.mxu0 0.0
    %2073 = vmatprep.subr.mxu0 0.0
    %2074 = vmatpush1.msra.mxu0 0.0
    %2075 = vmatprep.subr.mxu0 0.0
    %2076 = vmatpush1.msra.mxu0 0.0
    %2077 = vmatprep.subr.mxu0 0.0
    %2078 = vmatpush1.msra.mxu0 0.0
    %2079 = vmatprep.subr.mxu0 0.0
    %2080 = vmatpush1.msra.mxu0 0.0
    %2081 = vmatprep.subr.mxu0 0.0
    %2082 = vmatpush1.msra.mxu0 0.0
    %2083 = vmatprep.subr.mxu0 0.0
    %2084 = vmatpush1.msra.mxu0 0.0
    %2085 = vmatprep.subr.mxu0 0.0
    %2086 = vmatpush1.msra.mxu0 0.0
    %2087 = vmatprep.subr.mxu0 0.0
    %2088 = vmatpush1.msra.mxu0 0.0
    %2089 = vmatprep.subr.mxu0 0.0
    %2090 = vmatpush1.msra.mxu0 0.0
    %2091 = vmatprep.mubr.f32.mxu0 0.0
    %2092 = vmatmul.mubr.f32.gmra.mrb[0].mxu0 %v1656
    %v2093 = vpop.f32.mrb[0].mxu0
    %v2094 = vadd.f32 %v1946, %v2093
    %v2095 = vpop.f32.mrb[0].mxu0
    %2096 = vmatprep.mubr.f32.mxu0 0.0
    %2097 = vmatmul.mubr.f32.gmra.mrb[0].mxu0 %v1657
    %v2098 = vpop.f32.mrb[0].mxu0
    %v2099 = vadd.f32 %v1946, %v2098
    %v2100 = vpop.f32.mrb[0].mxu0
    %2101 = vdwg.mxu0
    %v2102 = vmul.f32 %v123, %v2017
    %v2103 = vmul.f32 %v123, %v2019
    %v2104 = vmul.f32 %v123, %v2094
    %v2105 = vmul.f32 %v124, %v2023
    %v2106 = vmul.f32 %v124, %v2025
    %v2107 = vmul.f32 %v124, %v2099
    %v2108 = vadd.f32 %v1877, %v2102
    %v2109 = vadd.f32 %v1878, %v2103
    %v2110 = vadd.f32 %v1879, %v2104
    %v2111 = vadd.f32 %v1880, %v2105
    %v2112 = vadd.f32 %v1881, %v2106
    %v2113 = vadd.f32 %v1882, %v2107
    %v2114 = vmul.f32 %v2108, %v129
    %v2115 = vmul.f32 %v2111, %v129
    %2116 = vmatprep.subr.mxu0 0.0
    %2117 = vmatpush1.xpose.msra.mxu0 %v2109
    %2118 = vmatprep.subr.mxu0 0.0
    %2119 = vmatpush1.xpose.msra.mxu0 %v2112
    %2120 = vmatprep.subr.mxu0 0.0
    %2121 = vmatpush1.xpose.msra.mxu0 0.0
    %2122 = vmatprep.subr.mxu0 0.0
    %2123 = vmatpush1.xpose.msra.mxu0 0.0
    %2124 = vmatprep.subr.mxu0 0.0
    %2125 = vmatpush1.xpose.msra.mxu0 0.0
    %2126 = vmatprep.subr.mxu0 0.0
    %2127 = vmatpush1.xpose.msra.mxu0 0.0
    %2128 = vmatprep.subr.mxu0 0.0
    %2129 = vmatpush1.xpose.msra.mxu0 0.0
    %2130 = vmatprep.subr.mxu0 0.0
    %2131 = vmatpush1.xpose.msra.mxu0 0.0
    %2132 = vmatprep.subr.mxu0 0.0
    %2133 = vmatpush1.xpose.msra.mxu0 0.0
    %2134 = vmatprep.subr.mxu0 0.0
    %2135 = vmatpush1.xpose.msra.mxu0 0.0
    %2136 = vmatprep.subr.mxu0 0.0
    %2137 = vmatpush1.xpose.msra.mxu0 0.0
    %2138 = vmatprep.subr.mxu0 0.0
    %2139 = vmatpush1.xpose.msra.mxu0 0.0
    %2140 = vmatprep.subr.mxu0 0.0
    %2141 = vmatpush1.xpose.msra.mxu0 0.0
    %2142 = vmatprep.subr.mxu0 0.0
    %2143 = vmatpush1.xpose.msra.mxu0 0.0
    %2144 = vmatprep.subr.mxu0 0.0
    %2145 = vmatpush1.xpose.msra.mxu0 0.0
    %2146 = vmatprep.subr.mxu0 0.0
    %2147 = vmatpush1.xpose.msra.mxu0 0.0
    %2148 = vmatprep.subr.mxu0 0.0
    %2149 = vmatpush1.xpose.msra.mxu0 0.0
    %2150 = vmatprep.subr.mxu0 0.0
    %2151 = vmatpush1.xpose.msra.mxu0 0.0
    %2152 = vmatprep.subr.mxu0 0.0
    %2153 = vmatpush1.xpose.msra.mxu0 0.0
    %2154 = vmatprep.subr.mxu0 0.0
    %2155 = vmatpush1.xpose.msra.mxu0 0.0
    %2156 = vmatprep.subr.mxu0 0.0
    %2157 = vmatpush1.xpose.msra.mxu0 0.0
    %2158 = vmatprep.subr.mxu0 0.0
    %2159 = vmatpush1.xpose.msra.mxu0 0.0
    %2160 = vmatprep.subr.mxu0 0.0
    %2161 = vmatpush1.xpose.msra.mxu0 0.0
    %2162 = vmatprep.subr.mxu0 0.0
    %2163 = vmatpush1.xpose.msra.mxu0 0.0
    %2164 = vmatprep.subr.mxu0 0.0
    %2165 = vmatpush1.xpose.msra.mxu0 0.0
    %2166 = vmatprep.subr.mxu0 0.0
    %2167 = vmatpush1.xpose.msra.mxu0 0.0
    %2168 = vmatprep.subr.mxu0 0.0
    %2169 = vmatpush1.xpose.msra.mxu0 0.0
    %2170 = vmatprep.subr.mxu0 0.0
    %2171 = vmatpush1.xpose.msra.mxu0 0.0
    %2172 = vmatprep.subr.mxu0 0.0
    %2173 = vmatpush1.xpose.msra.mxu0 0.0
    %2174 = vmatprep.subr.mxu0 0.0
    %2175 = vmatpush1.xpose.msra.mxu0 0.0
    %2176 = vmatprep.subr.mxu0 0.0
    %2177 = vmatpush1.xpose.msra.mxu0 0.0
    %2178 = vmatprep.subr.mxu0 0.0
    %2179 = vmatpush1.xpose.msra.mxu0 0.0
    %2180 = vmatprep.mubr.f32.mxu0 0.0
    %2181 = vmatmul.mubr.f32.gmra.mrb[0].mxu0 %v2114
    %v2182 = vpop.f32.mrb[0].mxu0
    %v2183 = vadd.f32 0.0, %v2182
    %v2184 = vpop.f32.mrb[0].mxu0
    %2185 = vmatprep.mubr.f32.mxu0 0.0
    %2186 = vmatmul.mubr.f32.gmra.mrb[0].mxu0 %v2115
    %v2187 = vpop.f32.mrb[0].mxu0
    %v2188 = vadd.f32 0.0, %v2187
    %v2189 = vpop.f32.mrb[0].mxu0
    %2190 = vdwg.mxu0
    %v2191 = vmul.f32 %v2183, 0.35355338
    %v2192 = vmul.f32 %v2188, 0.35355338
    %s2193 = scalar_lea.vmem [#allocation7], 64
    %v2194 = vld [vmem:[%s2193] sm:$0xff]
    %v2195 = vld [vmem:[%s2193 + $0x8] sm:$0xff]
    %v2196 = vadd.f32 %v2191, %v2194
    %v2197 = vadd.f32 %v2192, %v2195
    %v2198 = vadd.f32 %v2196, %v148
    %v2199 = vadd.f32 %v2197, %v149
    %v2200 = vsel %vm691, %v2198, -inf
    %2201 = vmax.xlane.f32.xlu0 %v2200
    %v2202 = vpop.xlane.xlu0 %2201
    %v2203 = vsel %vm691, %v2199, -inf
    %2204 = vmax.xlane.f32.xlu0 %v2203
    %v2205 = vpop.xlane.xlu0 %2204
    %v2206 = vsub.f32 %v2198, %v2202
    %v2207 = vsub.f32 %v2199, %v2205
    %v2208 = vmul.f32 %v2206, 1.442695
    %v2209 = vpow.pop %v2208
    %v2210 = vmul.f32 %v2207, 1.442695
    %v2211 = vpow.pop %v2210
    %v2212 = vsel %vm691, %v2209, 0.0
    %2213 = vadd.xlane.f32.xlu0 %v2212
    %v2214 = vpop.xlane.xlu0 %2213
    %v2215 = vsel %vm691, %v2211, 0.0
    %2216 = vadd.xlane.f32.xlu0 %v2215
    %v2217 = vpop.xlane.xlu0 %2216
    %v2218 = vrcp.pop %v2214
    %v2219 = vrcp.pop %v2217
    %v2220 = vmul.f32 %v2209, %v2218
    %v2221 = vmul.f32 %v2211, %v2219
    %v2222 = vmul.f32 %v2220, %v144
    %v2223 = vmul.f32 %v2221, %v145
    %v2224 = vmul.f32 %v2110, %v129
    %v2225 = vmul.f32 %v2113, %v129
    %v2226 = vmul.f32 %v2108, %v134
    %v2227 = vmul.f32 %v2111, %v134
    %2228 = vmatprep.subr.mxu0 0.0
    %2229 = vmatpush1.xpose.msra.mxu0 %v2109
    %2230 = vmatprep.subr.mxu0 0.0
    %2231 = vmatpush1.xpose.msra.mxu0 %v2112
    %2232 = vmatprep.subr.mxu0 0.0
    %2233 = vmatpush1.xpose.msra.mxu0 0.0
    %2234 = vmatprep.subr.mxu0 0.0
    %2235 = vmatpush1.xpose.msra.mxu0 0.0
    %2236 = vmatprep.subr.mxu0 0.0
    %2237 = vmatpush1.xpose.msra.mxu0 0.0
    %2238 = vmatprep.subr.mxu0 0.0
    %2239 = vmatpush1.xpose.msra.mxu0 0.0
    %2240 = vmatprep.subr.mxu0 0.0
    %2241 = vmatpush1.xpose.msra.mxu0 0.0
    %2242 = vmatprep.subr.mxu0 0.0
    %2243 = vmatpush1.xpose.msra.mxu0 0.0
    %2244 = vmatprep.subr.mxu0 0.0
    %2245 = vmatpush1.xpose.msra.mxu0 0.0
    %2246 = vmatprep.subr.mxu0 0.0
    %2247 = vmatpush1.xpose.msra.mxu0 0.0
    %2248 = vmatprep.subr.mxu0 0.0
    %2249 = vmatpush1.xpose.msra.mxu0 0.0
    %2250 = vmatprep.subr.mxu0 0.0
    %2251 = vmatpush1.xpose.msra.mxu0 0.0
    %2252 = vmatprep.subr.mxu0 0.0
    %2253 = vmatpush1.xpose.msra.mxu0 0.0
    %2254 = vmatprep.subr.mxu0 0.0
    %2255 = vmatpush1.xpose.msra.mxu0 0.0
    %2256 = vmatprep.subr.mxu0 0.0
    %2257 = vmatpush1.xpose.msra.mxu0 0.0
    %2258 = vmatprep.subr.mxu0 0.0
    %2259 = vmatpush1.xpose.msra.mxu0 0.0
    %2260 = vmatprep.subr.mxu0 0.0
    %2261 = vmatpush1.xpose.msra.mxu0 0.0
    %2262 = vmatprep.subr.mxu0 0.0
    %2263 = vmatpush1.xpose.msra.mxu0 0.0
    %2264 = vmatprep.subr.mxu0 0.0
    %2265 = vmatpush1.xpose.msra.mxu0 0.0
    %2266 = vmatprep.subr.mxu0 0.0
    %2267 = vmatpush1.xpose.msra.mxu0 0.0
    %2268 = vmatprep.subr.mxu0 0.0
    %2269 = vmatpush1.xpose.msra.mxu0 0.0
    %2270 = vmatprep.subr.mxu0 0.0
    %2271 = vmatpush1.xpose.msra.mxu0 0.0
    %2272 = vmatprep.subr.mxu0 0.0
    %2273 = vmatpush1.xpose.msra.mxu0 0.0
    %2274 = vmatprep.subr.mxu0 0.0
    %2275 = vmatpush1.xpose.msra.mxu0 0.0
    %2276 = vmatprep.subr.mxu0 0.0
    %2277 = vmatpush1.xpose.msra.mxu0 0.0
    %2278 = vmatprep.subr.mxu0 0.0
    %2279 = vmatpush1.xpose.msra.mxu0 0.0
    %2280 = vmatprep.subr.mxu0 0.0
    %2281 = vmatpush1.xpose.msra.mxu0 0.0
    %2282 = vmatprep.subr.mxu0 0.0
    %2283 = vmatpush1.xpose.msra.mxu0 0.0
    %2284 = vmatprep.subr.mxu0 0.0
    %2285 = vmatpush1.xpose.msra.mxu0 0.0
    %2286 = vmatprep.subr.mxu0 0.0
    %2287 = vmatpush1.xpose.msra.mxu0 0.0
    %2288 = vmatprep.subr.mxu0 0.0
    %2289 = vmatpush1.xpose.msra.mxu0 0.0
    %2290 = vmatprep.subr.mxu0 0.0
    %2291 = vmatpush1.xpose.msra.mxu0 0.0
    %2292 = vmatprep.mubr.f32.mxu0 0.0
    %2293 = vmatmul.mubr.f32.gmra.mrb[0].mxu0 %v2226
    %v2294 = vpop.f32.mrb[0].mxu0
    %v2295 = vadd.f32 0.0, %v2294
    %v2296 = vpop.f32.mrb[0].mxu0
    %2297 = vmatprep.mubr.f32.mxu0 0.0
    %2298 = vmatmul.mubr.f32.gmra.mrb[0].mxu0 %v2227
    %v2299 = vpop.f32.mrb[0].mxu0
    %v2300 = vadd.f32 0.0, %v2299
    %v2301 = vpop.f32.mrb[0].mxu0
    %2302 = vdwg.mxu0
    %v2303 = vmul.f32 %v2295, 0.35355338
    %v2304 = vmul.f32 %v2300, 0.35355338
    %s2305 = scalar_lea.vmem [#allocation7], 80
    %v2306 = vld [vmem:[%s2305] sm:$0xff]
    %v2307 = vld [vmem:[%s2305 + $0x8] sm:$0xff]
    %v2308 = vadd.f32 %v2303, %v2306
    %v2309 = vadd.f32 %v2304, %v2307
    %v2310 = vadd.f32 %v2308, %v148
    %v2311 = vadd.f32 %v2309, %v149
    %v2312 = vsel %vm691, %v2310, -inf
    %2313 = vmax.xlane.f32.xlu0 %v2312
    %v2314 = vpop.xlane.xlu0 %2313
    %v2315 = vsel %vm691, %v2311, -inf
    %2316 = vmax.xlane.f32.xlu0 %v2315
    %v2317 = vpop.xlane.xlu0 %2316
    %v2318 = vsub.f32 %v2310, %v2314
    %v2319 = vsub.f32 %v2311, %v2317
    %v2320 = vmul.f32 %v2318, 1.442695
    %v2321 = vpow.pop %v2320
    %v2322 = vmul.f32 %v2319, 1.442695
    %v2323 = vpow.pop %v2322
    %v2324 = vsel %vm691, %v2321, 0.0
    %2325 = vadd.xlane.f32.xlu0 %v2324
    %v2326 = vpop.xlane.xlu0 %2325
    %v2327 = vsel %vm691, %v2323, 0.0
    %2328 = vadd.xlane.f32.xlu0 %v2327
    %v2329 = vpop.xlane.xlu0 %2328
    %v2330 = vrcp.pop %v2326
    %v2331 = vrcp.pop %v2329
    %v2332 = vmul.f32 %v2321, %v2330
    %v2333 = vmul.f32 %v2323, %v2331
    %v2334 = vmul.f32 %v2332, %v144
    %v2335 = vmul.f32 %v2333, %v145
    %v2336 = vmul.f32 %v2110, %v134
    %v2337 = vmul.f32 %v2113, %v134
    %v2339 = vsel %vm691, %v2334, 0
    %v2342 = vsel %vm691, %v2335, 0
    %2344 = vmatprep.subr.mxu0 0.0
    %2345 = vmatpush1.msra.mxu0 %v2336
    %2346 = vmatprep.subr.mxu0 0.0
    %2347 = vmatpush1.msra.mxu0 %v2337
    %2348 = vmatprep.subr.mxu0 0.0
    %2349 = vmatpush1.msra.mxu0 0.0
    %2350 = vmatprep.subr.mxu0 0.0
    %2351 = vmatpush1.msra.mxu0 0.0
    %2352 = vmatprep.subr.mxu0 0.0
    %2353 = vmatpush1.msra.mxu0 0.0
    %2354 = vmatprep.subr.mxu0 0.0
    %2355 = vmatpush1.msra.mxu0 0.0
    %2356 = vmatprep.subr.mxu0 0.0
    %2357 = vmatpush1.msra.mxu0 0.0
    %2358 = vmatprep.subr.mxu0 0.0
    %2359 = vmatpush1.msra.mxu0 0.0
    %2360 = vmatprep.subr.mxu0 0.0
    %2361 = vmatpush1.msra.mxu0 0.0
    %2362 = vmatprep.subr.mxu0 0.0
    %2363 = vmatpush1.msra.mxu0 0.0
    %2364 = vmatprep.subr.mxu0 0.0
    %2365 = vmatpush1.msra.mxu0 0.0
    %2366 = vmatprep.subr.mxu0 0.0
    %2367 = vmatpush1.msra.mxu0 0.0
    %2368 = vmatprep.subr.mxu0 0.0
    %2369 = vmatpush1.msra.mxu0 0.0
    %2370 = vmatprep.subr.mxu0 0.0
    %2371 = vmatpush1.msra.mxu0 0.0
    %2372 = vmatprep.subr.mxu0 0.0
    %2373 = vmatpush1.msra.mxu0 0.0
    %2374 = vmatprep.subr.mxu0 0.0
    %2375 = vmatpush1.msra.mxu0 0.0
    %2376 = vmatprep.subr.mxu0 0.0
    %2377 = vmatpush1.msra.mxu0 0.0
    %2378 = vmatprep.subr.mxu0 0.0
    %2379 = vmatpush1.msra.mxu0 0.0
    %2380 = vmatprep.subr.mxu0 0.0
    %2381 = vmatpush1.msra.mxu0 0.0
    %2382 = vmatprep.subr.mxu0 0.0
    %2383 = vmatpush1.msra.mxu0 0.0
    %2384 = vmatprep.subr.mxu0 0.0
    %2385 = vmatpush1.msra.mxu0 0.0
    %2386 = vmatprep.subr.mxu0 0.0
    %2387 = vmatpush1.msra.mxu0 0.0
    %2388 = vmatprep.subr.mxu0 0.0
    %2389 = vmatpush1.msra.mxu0 0.0
    %2390 = vmatprep.subr.mxu0 0.0
    %2391 = vmatpush1.msra.mxu0 0.0
    %2392 = vmatprep.subr.mxu0 0.0
    %2393 = vmatpush1.msra.mxu0 0.0
    %2394 = vmatprep.subr.mxu0 0.0
    %2395 = vmatpush1.msra.mxu0 0.0
    %2396 = vmatprep.subr.mxu0 0.0
    %2397 = vmatpush1.msra.mxu0 0.0
    %2398 = vmatprep.subr.mxu0 0.0
    %2399 = vmatpush1.msra.mxu0 0.0
    %2400 = vmatprep.subr.mxu0 0.0
    %2401 = vmatpush1.msra.mxu0 0.0
    %2402 = vmatprep.subr.mxu0 0.0
    %2403 = vmatpush1.msra.mxu0 0.0
    %2404 = vmatprep.subr.mxu0 0.0
    %2405 = vmatpush1.msra.mxu0 0.0
    %2406 = vmatprep.subr.mxu0 0.0
    %2407 = vmatpush1.msra.mxu0 0.0
    %2408 = vmatprep.mubr.f32.mxu0 0.0
    %2409 = vmatmul.mubr.f32.gmra.mrb[0].mxu0 %v2339
    %v2410 = vpop.f32.mrb[0].mxu0
    %v2411 = vadd.f32 0.0, %v2410
    %v2412 = vpop.f32.mrb[0].mxu0
    %2413 = vmatprep.mubr.f32.mxu0 0.0
    %2414 = vmatmul.mubr.f32.gmra.mrb[0].mxu0 %v2342
    %v2415 = vpop.f32.mrb[0].mxu0
    %v2416 = vadd.f32 0.0, %v2415
    %v2417 = vpop.f32.mrb[0].mxu0
    %2418 = vdwg.mxu0
    %v2420 = vsel %vm691, %v2222, 0
    %v2423 = vsel %vm691, %v2223, 0
    %2425 = vmatprep.subr.mxu0 0.0
    %2426 = vmatpush1.msra.mxu0 %v2224
    %2427 = vmatprep.subr.mxu0 0.0
    %2428 = vmatpush1.msra.mxu0 %v2225
    %2429 = vmatprep.subr.mxu0 0.0
    %2430 = vmatpush1.msra.mxu0 0.0
    %2431 = vmatprep.subr.mxu0 0.0
    %2432 = vmatpush1.msra.mxu0 0.0
    %2433 = vmatprep.subr.mxu0 0.0
    %2434 = vmatpush1.msra.mxu0 0.0
    %2435 = vmatprep.subr.mxu0 0.0
    %2436 = vmatpush1.msra.mxu0 0.0
    %2437 = vmatprep.subr.mxu0 0.0
    %2438 = vmatpush1.msra.mxu0 0.0
    %2439 = vmatprep.subr.mxu0 0.0
    %2440 = vmatpush1.msra.mxu0 0.0
    %2441 = vmatprep.subr.mxu0 0.0
    %2442 = vmatpush1.msra.mxu0 0.0
    %2443 = vmatprep.subr.mxu0 0.0
    %2444 = vmatpush1.msra.mxu0 0.0
    %2445 = vmatprep.subr.mxu0 0.0
    %2446 = vmatpush1.msra.mxu0 0.0
    %2447 = vmatprep.subr.mxu0 0.0
    %2448 = vmatpush1.msra.mxu0 0.0
    %2449 = vmatprep.subr.mxu0 0.0
    %2450 = vmatpush1.msra.mxu0 0.0
    %2451 = vmatprep.subr.mxu0 0.0
    %2452 = vmatpush1.msra.mxu0 0.0
    %2453 = vmatprep.subr.mxu0 0.0
    %2454 = vmatpush1.msra.mxu0 0.0
    %2455 = vmatprep.subr.mxu0 0.0
    %2456 = vmatpush1.msra.mxu0 0.0
    %2457 = vmatprep.subr.mxu0 0.0
    %2458 = vmatpush1.msra.mxu0 0.0
    %2459 = vmatprep.subr.mxu0 0.0
    %2460 = vmatpush1.msra.mxu0 0.0
    %2461 = vmatprep.subr.mxu0 0.0
    %2462 = vmatpush1.msra.mxu0 0.0
    %2463 = vmatprep.subr.mxu0 0.0
    %2464 = vmatpush1.msra.mxu0 0.0
    %2465 = vmatprep.subr.mxu0 0.0
    %2466 = vmatpush1.msra.mxu0 0.0
    %2467 = vmatprep.subr.mxu0 0.0
    %2468 = vmatpush1.msra.mxu0 0.0
    %2469 = vmatprep.subr.mxu0 0.0
    %2470 = vmatpush1.msra.mxu0 0.0
    %2471 = vmatprep.subr.mxu0 0.0
    %2472 = vmatpush1.msra.mxu0 0.0
    %2473 = vmatprep.subr.mxu0 0.0
    %2474 = vmatpush1.msra.mxu0 0.0
    %2475 = vmatprep.subr.mxu0 0.0
    %2476 = vmatpush1.msra.mxu0 0.0
    %2477 = vmatprep.subr.mxu0 0.0
    %2478 = vmatpush1.msra.mxu0 0.0
    %2479 = vmatprep.subr.mxu0 0.0
    %2480 = vmatpush1.msra.mxu0 0.0
    %2481 = vmatprep.subr.mxu0 0.0
    %2482 = vmatpush1.msra.mxu0 0.0
    %2483 = vmatprep.subr.mxu0 0.0
    %2484 = vmatpush1.msra.mxu0 0.0
    %2485 = vmatprep.subr.mxu0 0.0
    %2486 = vmatpush1.msra.mxu0 0.0
    %2487 = vmatprep.subr.mxu0 0.0
    %2488 = vmatpush1.msra.mxu0 0.0
    %2489 = vmatprep.mubr.f32.mxu0 0.0
    %2490 = vmatmul.mubr.f32.gmra.mrb[0].mxu0 %v2420
    %v2491 = vpop.f32.mrb[0].mxu0
    %v2492 = vadd.f32 %v2411, %v2491
    %v2493 = vpop.f32.mrb[0].mxu0
    %2494 = vmatprep.mubr.f32.mxu0 0.0
    %2495 = vmatmul.mubr.f32.gmra.mrb[0].mxu0 %v2423
    %v2496 = vpop.f32.mrb[0].mxu0
    %v2497 = vadd.f32 %v2416, %v2496
    %v2498 = vpop.f32.mrb[0].mxu0
    %2499 = vdwg.mxu0
    %v2500 = vmul.f32 %v2108, %v139
    %v2501 = vmul.f32 %v2111, %v139
    %2502 = vmatprep.subr.mxu0 0.0
    %2503 = vmatpush1.xpose.msra.mxu0 %v2109
    %2504 = vmatprep.subr.mxu0 0.0
    %2505 = vmatpush1.xpose.msra.mxu0 %v2112
    %2506 = vmatprep.subr.mxu0 0.0
    %2507 = vmatpush1.xpose.msra.mxu0 0.0
    %2508 = vmatprep.subr.mxu0 0.0
    %2509 = vmatpush1.xpose.msra.mxu0 0.0
    %2510 = vmatprep.subr.mxu0 0.0
    %2511 = vmatpush1.xpose.msra.mxu0 0.0
    %2512 = vmatprep.subr.mxu0 0.0
    %2513 = vmatpush1.xpose.msra.mxu0 0.0
    %2514 = vmatprep.subr.mxu0 0.0
    %2515 = vmatpush1.xpose.msra.mxu0 0.0
    %2516 = vmatprep.subr.mxu0 0.0
    %2517 = vmatpush1.xpose.msra.mxu0 0.0
    %2518 = vmatprep.subr.mxu0 0.0
    %2519 = vmatpush1.xpose.msra.mxu0 0.0
    %2520 = vmatprep.subr.mxu0 0.0
    %2521 = vmatpush1.xpose.msra.mxu0 0.0
    %2522 = vmatprep.subr.mxu0 0.0
    %2523 = vmatpush1.xpose.msra.mxu0 0.0
    %2524 = vmatprep.subr.mxu0 0.0
    %2525 = vmatpush1.xpose.msra.mxu0 0.0
    %2526 = vmatprep.subr.mxu0 0.0
    %2527 = vmatpush1.xpose.msra.mxu0 0.0
    %2528 = vmatprep.subr.mxu0 0.0
    %2529 = vmatpush1.xpose.msra.mxu0 0.0
    %2530 = vmatprep.subr.mxu0 0.0
    %2531 = vmatpush1.xpose.msra.mxu0 0.0
    %2532 = vmatprep.subr.mxu0 0.0
    %2533 = vmatpush1.xpose.msra.mxu0 0.0
    %2534 = vmatprep.subr.mxu0 0.0
    %2535 = vmatpush1.xpose.msra.mxu0 0.0
    %2536 = vmatprep.subr.mxu0 0.0
    %2537 = vmatpush1.xpose.msra.mxu0 0.0
    %2538 = vmatprep.subr.mxu0 0.0
    %2539 = vmatpush1.xpose.msra.mxu0 0.0
    %2540 = vmatprep.subr.mxu0 0.0
    %2541 = vmatpush1.xpose.msra.mxu0 0.0
    %2542 = vmatprep.subr.mxu0 0.0
    %2543 = vmatpush1.xpose.msra.mxu0 0.0
    %2544 = vmatprep.subr.mxu0 0.0
    %2545 = vmatpush1.xpose.msra.mxu0 0.0
    %2546 = vmatprep.subr.mxu0 0.0
    %2547 = vmatpush1.xpose.msra.mxu0 0.0
    %2548 = vmatprep.subr.mxu0 0.0
    %2549 = vmatpush1.xpose.msra.mxu0 0.0
    %2550 = vmatprep.subr.mxu0 0.0
    %2551 = vmatpush1.xpose.msra.mxu0 0.0
    %2552 = vmatprep.subr.mxu0 0.0
    %2553 = vmatpush1.xpose.msra.mxu0 0.0
    %2554 = vmatprep.subr.mxu0 0.0
    %2555 = vmatpush1.xpose.msra.mxu0 0.0
    %2556 = vmatprep.subr.mxu0 0.0
    %2557 = vmatpush1.xpose.msra.mxu0 0.0
    %2558 = vmatprep.subr.mxu0 0.0
    %2559 = vmatpush1.xpose.msra.mxu0 0.0
    %2560 = vmatprep.subr.mxu0 0.0
    %2561 = vmatpush1.xpose.msra.mxu0 0.0
    %2562 = vmatprep.subr.mxu0 0.0
    %2563 = vmatpush1.xpose.msra.mxu0 0.0
    %2564 = vmatprep.subr.mxu0 0.0
    %2565 = vmatpush1.xpose.msra.mxu0 0.0
    %2566 = vmatprep.mubr.f32.mxu0 0.0
    %2567 = vmatmul.mubr.f32.gmra.mrb[0].mxu0 %v2500
    %v2568 = vpop.f32.mrb[0].mxu0
    %v2569 = vadd.f32 0.0, %v2568
    %v2570 = vpop.f32.mrb[0].mxu0
    %2571 = vmatprep.mubr.f32.mxu0 0.0
    %2572 = vmatmul.mubr.f32.gmra.mrb[0].mxu0 %v2501
    %v2573 = vpop.f32.mrb[0].mxu0
    %v2574 = vadd.f32 0.0, %v2573
    %v2575 = vpop.f32.mrb[0].mxu0
    %2576 = vdwg.mxu0
    %v2577 = vmul.f32 %v2569, 0.35355338
    %v2578 = vmul.f32 %v2574, 0.35355338
    %s2579 = scalar_lea.vmem [#allocation7], 96
    %v2580 = vld [vmem:[%s2579] sm:$0xff]
    %v2581 = vld [vmem:[%s2579 + $0x8] sm:$0xff]
    %v2582 = vadd.f32 %v2577, %v2580
    %v2583 = vadd.f32 %v2578, %v2581
    %v2584 = vadd.f32 %v2582, %v148
    %v2585 = vadd.f32 %v2583, %v149
    %v2586 = vsel %vm691, %v2584, -inf
    %2587 = vmax.xlane.f32.xlu0 %v2586
    %v2588 = vpop.xlane.xlu0 %2587
    %v2589 = vsel %vm691, %v2585, -inf
    %2590 = vmax.xlane.f32.xlu0 %v2589
    %v2591 = vpop.xlane.xlu0 %2590
    %v2592 = vsub.f32 %v2584, %v2588
    %v2593 = vsub.f32 %v2585, %v2591
    %v2594 = vmul.f32 %v2592, 1.442695
    %v2595 = vpow.pop %v2594
    %v2596 = vmul.f32 %v2593, 1.442695
    %v2597 = vpow.pop %v2596
    %v2598 = vsel %vm691, %v2595, 0.0
    %2599 = vadd.xlane.f32.xlu0 %v2598
    %v2600 = vpop.xlane.xlu0 %2599
    %v2601 = vsel %vm691, %v2597, 0.0
    %2602 = vadd.xlane.f32.xlu0 %v2601
    %v2603 = vpop.xlane.xlu0 %2602
    %v2604 = vrcp.pop %v2600
    %v2605 = vrcp.pop %v2603
    %v2606 = vmul.f32 %v2595, %v2604
    %v2607 = vmul.f32 %v2597, %v2605
    %v2608 = vmul.f32 %v2606, %v144
    %v2609 = vmul.f32 %v2607, %v145
    %v2610 = vmul.f32 %v2110, %v139
    %v2611 = vmul.f32 %v2113, %v139
    %v2613 = vsel %vm691, %v2608, 0
    %v2616 = vsel %vm691, %v2609, 0
    %2618 = vmatprep.subr.mxu0 0.0
    %2619 = vmatpush1.msra.mxu0 %v2610
    %2620 = vmatprep.subr.mxu0 0.0
    %2621 = vmatpush1.msra.mxu0 %v2611
    %2622 = vmatprep.subr.mxu0 0.0
    %2623 = vmatpush1.msra.mxu0 0.0
    %2624 = vmatprep.subr.mxu0 0.0
    %2625 = vmatpush1.msra.mxu0 0.0
    %2626 = vmatprep.subr.mxu0 0.0
    %2627 = vmatpush1.msra.mxu0 0.0
    %2628 = vmatprep.subr.mxu0 0.0
    %2629 = vmatpush1.msra.mxu0 0.0
    %2630 = vmatprep.subr.mxu0 0.0
    %2631 = vmatpush1.msra.mxu0 0.0
    %2632 = vmatprep.subr.mxu0 0.0
    %2633 = vmatpush1.msra.mxu0 0.0
    %2634 = vmatprep.subr.mxu0 0.0
    %2635 = vmatpush1.msra.mxu0 0.0
    %2636 = vmatprep.subr.mxu0 0.0
    %2637 = vmatpush1.msra.mxu0 0.0
    %2638 = vmatprep.subr.mxu0 0.0
    %2639 = vmatpush1.msra.mxu0 0.0
    %2640 = vmatprep.subr.mxu0 0.0
    %2641 = vmatpush1.msra.mxu0 0.0
    %2642 = vmatprep.subr.mxu0 0.0
    %2643 = vmatpush1.msra.mxu0 0.0
    %2644 = vmatprep.subr.mxu0 0.0
    %2645 = vmatpush1.msra.mxu0 0.0
    %2646 = vmatprep.subr.mxu0 0.0
    %2647 = vmatpush1.msra.mxu0 0.0
    %2648 = vmatprep.subr.mxu0 0.0
    %2649 = vmatpush1.msra.mxu0 0.0
    %2650 = vmatprep.subr.mxu0 0.0
    %2651 = vmatpush1.msra.mxu0 0.0
    %2652 = vmatprep.subr.mxu0 0.0
    %2653 = vmatpush1.msra.mxu0 0.0
    %2654 = vmatprep.subr.mxu0 0.0
    %2655 = vmatpush1.msra.mxu0 0.0
    %2656 = vmatprep.subr.mxu0 0.0
    %2657 = vmatpush1.msra.mxu0 0.0
    %2658 = vmatprep.subr.mxu0 0.0
    %2659 = vmatpush1.msra.mxu0 0.0
    %2660 = vmatprep.subr.mxu0 0.0
    %2661 = vmatpush1.msra.mxu0 0.0
    %2662 = vmatprep.subr.mxu0 0.0
    %2663 = vmatpush1.msra.mxu0 0.0
    %2664 = vmatprep.subr.mxu0 0.0
    %2665 = vmatpush1.msra.mxu0 0.0
    %2666 = vmatprep.subr.mxu0 0.0
    %2667 = vmatpush1.msra.mxu0 0.0
    %2668 = vmatprep.subr.mxu0 0.0
    %2669 = vmatpush1.msra.mxu0 0.0
    %2670 = vmatprep.subr.mxu0 0.0
    %2671 = vmatpush1.msra.mxu0 0.0
    %2672 = vmatprep.subr.mxu0 0.0
    %2673 = vmatpush1.msra.mxu0 0.0
    %2674 = vmatprep.subr.mxu0 0.0
    %2675 = vmatpush1.msra.mxu0 0.0
    %2676 = vmatprep.subr.mxu0 0.0
    %2677 = vmatpush1.msra.mxu0 0.0
    %2678 = vmatprep.subr.mxu0 0.0
    %2679 = vmatpush1.msra.mxu0 0.0
    %2680 = vmatprep.subr.mxu0 0.0
    %2681 = vmatpush1.msra.mxu0 0.0
    %2682 = vmatprep.mubr.f32.mxu0 0.0
    %2683 = vmatmul.mubr.f32.gmra.mrb[0].mxu0 %v2613
    %v2684 = vpop.f32.mrb[0].mxu0
    %v2685 = vadd.f32 0.0, %v2684
    %v2686 = vpop.f32.mrb[0].mxu0
    %2687 = vmatprep.mubr.f32.mxu0 0.0
    %2688 = vmatmul.mubr.f32.gmra.mrb[0].mxu0 %v2616
    %v2689 = vpop.f32.mrb[0].mxu0
    %v2690 = vadd.f32 0.0, %v2689
    %v2691 = vpop.f32.mrb[0].mxu0
    %2692 = vdwg.mxu0
    %v2693 = vadd.f32 %v2492, %v2685
    %v2694 = vadd.f32 %v2497, %v2690
    %v2695 = vmul.f32 %v2108, %v143
    %v2696 = vmul.f32 %v2111, %v143
    %2697 = vmatprep.subr.mxu0 0.0
    %2698 = vmatpush1.xpose.msra.mxu0 %v2109
    %2699 = vmatprep.subr.mxu0 0.0
    %2700 = vmatpush1.xpose.msra.mxu0 %v2112
    %2701 = vmatprep.subr.mxu0 0.0
    %2702 = vmatpush1.xpose.msra.mxu0 0.0
    %2703 = vmatprep.subr.mxu0 0.0
    %2704 = vmatpush1.xpose.msra.mxu0 0.0
    %2705 = vmatprep.subr.mxu0 0.0
    %2706 = vmatpush1.xpose.msra.mxu0 0.0
    %2707 = vmatprep.subr.mxu0 0.0
    %2708 = vmatpush1.xpose.msra.mxu0 0.0
    %2709 = vmatprep.subr.mxu0 0.0
    %2710 = vmatpush1.xpose.msra.mxu0 0.0
    %2711 = vmatprep.subr.mxu0 0.0
    %2712 = vmatpush1.xpose.msra.mxu0 0.0
    %2713 = vmatprep.subr.mxu0 0.0
    %2714 = vmatpush1.xpose.msra.mxu0 0.0
    %2715 = vmatprep.subr.mxu0 0.0
    %2716 = vmatpush1.xpose.msra.mxu0 0.0
    %2717 = vmatprep.subr.mxu0 0.0
    %2718 = vmatpush1.xpose.msra.mxu0 0.0
    %2719 = vmatprep.subr.mxu0 0.0
    %2720 = vmatpush1.xpose.msra.mxu0 0.0
    %2721 = vmatprep.subr.mxu0 0.0
    %2722 = vmatpush1.xpose.msra.mxu0 0.0
    %2723 = vmatprep.subr.mxu0 0.0
    %2724 = vmatpush1.xpose.msra.mxu0 0.0
    %2725 = vmatprep.subr.mxu0 0.0
    %2726 = vmatpush1.xpose.msra.mxu0 0.0
    %2727 = vmatprep.subr.mxu0 0.0
    %2728 = vmatpush1.xpose.msra.mxu0 0.0
    %2729 = vmatprep.subr.mxu0 0.0
    %2730 = vmatpush1.xpose.msra.mxu0 0.0
    %2731 = vmatprep.subr.mxu0 0.0
    %2732 = vmatpush1.xpose.msra.mxu0 0.0
    %2733 = vmatprep.subr.mxu0 0.0
    %2734 = vmatpush1.xpose.msra.mxu0 0.0
    %2735 = vmatprep.subr.mxu0 0.0
    %2736 = vmatpush1.xpose.msra.mxu0 0.0
    %2737 = vmatprep.subr.mxu0 0.0
    %2738 = vmatpush1.xpose.msra.mxu0 0.0
    %2739 = vmatprep.subr.mxu0 0.0
    %2740 = vmatpush1.xpose.msra.mxu0 0.0
    %2741 = vmatprep.subr.mxu0 0.0
    %2742 = vmatpush1.xpose.msra.mxu0 0.0
    %2743 = vmatprep.subr.mxu0 0.0
    %2744 = vmatpush1.xpose.msra.mxu0 0.0
    %2745 = vmatprep.subr.mxu0 0.0
    %2746 = vmatpush1.xpose.msra.mxu0 0.0
    %2747 = vmatprep.subr.mxu0 0.0
    %2748 = vmatpush1.xpose.msra.mxu0 0.0
    %2749 = vmatprep.subr.mxu0 0.0
    %2750 = vmatpush1.xpose.msra.mxu0 0.0
    %2751 = vmatprep.subr.mxu0 0.0
    %2752 = vmatpush1.xpose.msra.mxu0 0.0
    %2753 = vmatprep.subr.mxu0 0.0
    %2754 = vmatpush1.xpose.msra.mxu0 0.0
    %2755 = vmatprep.subr.mxu0 0.0
    %2756 = vmatpush1.xpose.msra.mxu0 0.0
    %2757 = vmatprep.subr.mxu0 0.0
    %2758 = vmatpush1.xpose.msra.mxu0 0.0
    %2759 = vmatprep.subr.mxu0 0.0
    %2760 = vmatpush1.xpose.msra.mxu0 0.0
    %2761 = vmatprep.mubr.f32.mxu0 0.0
    %2762 = vmatmul.mubr.f32.gmra.mrb[0].mxu0 %v2695
    %v2763 = vpop.f32.mrb[0].mxu0
    %v2764 = vadd.f32 0.0, %v2763
    %v2765 = vpop.f32.mrb[0].mxu0
    %2766 = vmatprep.mubr.f32.mxu0 0.0
    %2767 = vmatmul.mubr.f32.gmra.mrb[0].mxu0 %v2696
    %v2768 = vpop.f32.mrb[0].mxu0
    %v2769 = vadd.f32 0.0, %v2768
    %v2770 = vpop.f32.mrb[0].mxu0
    %2771 = vdwg.mxu0
    %v2772 = vmul.f32 %v2764, 0.35355338
    %v2773 = vmul.f32 %v2769, 0.35355338
    %s2774 = scalar_lea.vmem [#allocation7], 112
    %v2775 = vld [vmem:[%s2774] sm:$0xff]
    %v2776 = vld [vmem:[%s2774 + $0x8] sm:$0xff]
    %v2777 = vadd.f32 %v2772, %v2775
    %v2778 = vadd.f32 %v2773, %v2776
    %v2779 = vadd.f32 %v2777, %v148
    %v2780 = vadd.f32 %v2778, %v149
    %v2781 = vsel %vm691, %v2779, -inf
    %2782 = vmax.xlane.f32.xlu0 %v2781
    %v2783 = vpop.xlane.xlu0 %2782
    %v2784 = vsel %vm691, %v2780, -inf
    %2785 = vmax.xlane.f32.xlu0 %v2784
    %v2786 = vpop.xlane.xlu0 %2785
    %v2787 = vsub.f32 %v2779, %v2783
    %v2788 = vsub.f32 %v2780, %v2786
    %v2789 = vmul.f32 %v2787, 1.442695
    %v2790 = vpow.pop %v2789
    %v2791 = vmul.f32 %v2788, 1.442695
    %v2792 = vpow.pop %v2791
    %v2793 = vsel %vm691, %v2790, 0.0
    %2794 = vadd.xlane.f32.xlu0 %v2793
    %v2795 = vpop.xlane.xlu0 %2794
    %v2796 = vsel %vm691, %v2792, 0.0
    %2797 = vadd.xlane.f32.xlu0 %v2796
    %v2798 = vpop.xlane.xlu0 %2797
    %v2799 = vrcp.pop %v2795
    %v2800 = vrcp.pop %v2798
    %v2801 = vmul.f32 %v2790, %v2799
    %v2802 = vmul.f32 %v2792, %v2800
    %v2803 = vmul.f32 %v2801, %v144
    %v2804 = vmul.f32 %v2802, %v145
    %v2805 = vmul.f32 %v2110, %v143
    %v2806 = vmul.f32 %v2113, %v143
    %v2808 = vsel %vm691, %v2803, 0
    %v2811 = vsel %vm691, %v2804, 0
    %2813 = vmatprep.subr.mxu0 0.0
    %2814 = vmatpush1.msra.mxu0 %v2805
    %2815 = vmatprep.subr.mxu0 0.0
    %2816 = vmatpush1.msra.mxu0 %v2806
    %2817 = vmatprep.subr.mxu0 0.0
    %2818 = vmatpush1.msra.mxu0 0.0
    %2819 = vmatprep.subr.mxu0 0.0
    %2820 = vmatpush1.msra.mxu0 0.0
    %2821 = vmatprep.subr.mxu0 0.0
    %2822 = vmatpush1.msra.mxu0 0.0
    %2823 = vmatprep.subr.mxu0 0.0
    %2824 = vmatpush1.msra.mxu0 0.0
    %2825 = vmatprep.subr.mxu0 0.0
    %2826 = vmatpush1.msra.mxu0 0.0
    %2827 = vmatprep.subr.mxu0 0.0
    %2828 = vmatpush1.msra.mxu0 0.0
    %2829 = vmatprep.subr.mxu0 0.0
    %2830 = vmatpush1.msra.mxu0 0.0
    %2831 = vmatprep.subr.mxu0 0.0
    %2832 = vmatpush1.msra.mxu0 0.0
    %2833 = vmatprep.subr.mxu0 0.0
    %2834 = vmatpush1.msra.mxu0 0.0
    %2835 = vmatprep.subr.mxu0 0.0
    %2836 = vmatpush1.msra.mxu0 0.0
    %2837 = vmatprep.subr.mxu0 0.0
    %2838 = vmatpush1.msra.mxu0 0.0
    %2839 = vmatprep.subr.mxu0 0.0
    %2840 = vmatpush1.msra.mxu0 0.0
    %2841 = vmatprep.subr.mxu0 0.0
    %2842 = vmatpush1.msra.mxu0 0.0
    %2843 = vmatprep.subr.mxu0 0.0
    %2844 = vmatpush1.msra.mxu0 0.0
    %2845 = vmatprep.subr.mxu0 0.0
    %2846 = vmatpush1.msra.mxu0 0.0
    %2847 = vmatprep.subr.mxu0 0.0
    %2848 = vmatpush1.msra.mxu0 0.0
    %2849 = vmatprep.subr.mxu0 0.0
    %2850 = vmatpush1.msra.mxu0 0.0
    %2851 = vmatprep.subr.mxu0 0.0
    %2852 = vmatpush1.msra.mxu0 0.0
    %2853 = vmatprep.subr.mxu0 0.0
    %2854 = vmatpush1.msra.mxu0 0.0
    %2855 = vmatprep.subr.mxu0 0.0
    %2856 = vmatpush1.msra.mxu0 0.0
    %2857 = vmatprep.subr.mxu0 0.0
    %2858 = vmatpush1.msra.mxu0 0.0
    %2859 = vmatprep.subr.mxu0 0.0
    %2860 = vmatpush1.msra.mxu0 0.0
    %2861 = vmatprep.subr.mxu0 0.0
    %2862 = vmatpush1.msra.mxu0 0.0
    %2863 = vmatprep.subr.mxu0 0.0
    %2864 = vmatpush1.msra.mxu0 0.0
    %2865 = vmatprep.subr.mxu0 0.0
    %2866 = vmatpush1.msra.mxu0 0.0
    %2867 = vmatprep.subr.mxu0 0.0
    %2868 = vmatpush1.msra.mxu0 0.0
    %2869 = vmatprep.subr.mxu0 0.0
    %2870 = vmatpush1.msra.mxu0 0.0
    %2871 = vmatprep.subr.mxu0 0.0
    %2872 = vmatpush1.msra.mxu0 0.0
    %2873 = vmatprep.subr.mxu0 0.0
    %2874 = vmatpush1.msra.mxu0 0.0
    %2875 = vmatprep.subr.mxu0 0.0
    %2876 = vmatpush1.msra.mxu0 0.0
    %2877 = vmatprep.mubr.f32.mxu0 0.0
    %2878 = vmatmul.mubr.f32.gmra.mrb[0].mxu0 %v2808
    %v2879 = vpop.f32.mrb[0].mxu0
    %v2880 = vadd.f32 0.0, %v2879
    %v2881 = vpop.f32.mrb[0].mxu0
    %2882 = vmatprep.mubr.f32.mxu0 0.0
    %2883 = vmatmul.mubr.f32.gmra.mrb[0].mxu0 %v2811
    %v2884 = vpop.f32.mrb[0].mxu0
    %v2885 = vadd.f32 0.0, %v2884
    %v2886 = vpop.f32.mrb[0].mxu0
    %2887 = vdwg.mxu0
    %v2888 = vadd.f32 %v2693, %v2880
    %v2889 = vadd.f32 %v2694, %v2885
    %s2890 = scalar_lea.vmem [#allocation10], 256
    %v2891 = vld [vmem:[%s2890] sm:$0xff]
    %v2892 = vld [vmem:[%s2890 + $0x8] sm:$0xff]
    %v2893 = vld [vmem:[%s2890 + $0x10] sm:$0xff]
    %v2894 = vld [vmem:[%s2890 + $0x18] sm:$0xff]
    %v2895 = vld [vmem:[%s2890 + $0x20] sm:$0xff]
    %v2896 = vld [vmem:[%s2890 + $0x28] sm:$0xff]
    %v2897 = vld [vmem:[%s2890 + $0x30] sm:$0xff]
    %v2898 = vld [vmem:[%s2890 + $0x38] sm:$0xff]
    %v2899 = vld [vmem:[%s2890 + $0x40] sm:$0xff]
    %v2900 = vld [vmem:[%s2890 + $0x48] sm:$0xff]
    %v2901 = vld [vmem:[%s2890 + $0x50] sm:$0xff]
    %v2902 = vld [vmem:[%s2890 + $0x58] sm:$0xff]
    %v2903 = vld [vmem:[%s2890 + $0x60] sm:$0xff]
    %v2904 = vld [vmem:[%s2890 + $0x68] sm:$0xff]
    %v2905 = vld [vmem:[%s2890 + $0x70] sm:$0xff]
    %v2906 = vld [vmem:[%s2890 + $0x78] sm:$0xff]
    %s2907 = scalar_lea.vmem %s6, 2
    %v2908 = vld [vmem:[%s2907] sm:$0x1]
    %v2910 = vlaneseq
    %v2911 = vshrl.u32 %v2910, 7
    %v2912 = vsub.s32 0, %v2911
    %v2913 = vrot.slane %v2908, %v2912
    %2915 = vmatprep.subr.mxu0 0.0
    %2916 = vmatpush1.msra.mxu0 %v2891
    %2917 = vmatprep.subr.mxu0 0.0
    %2918 = vmatpush1.msra.mxu0 %v2892
    %2919 = vmatprep.subr.mxu0 0.0
    %2920 = vmatpush1.msra.mxu0 %v2893
    %2921 = vmatprep.subr.mxu0 0.0
    %2922 = vmatpush1.msra.mxu0 %v2894
    %2923 = vmatprep.subr.mxu0 0.0
    %2924 = vmatpush1.msra.mxu0 %v2895
    %2925 = vmatprep.subr.mxu0 0.0
    %2926 = vmatpush1.msra.mxu0 %v2896
    %2927 = vmatprep.subr.mxu0 0.0
    %2928 = vmatpush1.msra.mxu0 %v2897
    %2929 = vmatprep.subr.mxu0 0.0
    %2930 = vmatpush1.msra.mxu0 %v2898
    %2931 = vmatprep.subr.mxu0 0.0
    %2932 = vmatpush1.msra.mxu0 %v2899
    %2933 = vmatprep.subr.mxu0 0.0
    %2934 = vmatpush1.msra.mxu0 %v2900
    %2935 = vmatprep.subr.mxu0 0.0
    %2936 = vmatpush1.msra.mxu0 %v2901
    %2937 = vmatprep.subr.mxu0 0.0
    %2938 = vmatpush1.msra.mxu0 %v2902
    %2939 = vmatprep.subr.mxu0 0.0
    %2940 = vmatpush1.msra.mxu0 %v2903
    %2941 = vmatprep.subr.mxu0 0.0
    %2942 = vmatpush1.msra.mxu0 %v2904
    %2943 = vmatprep.subr.mxu0 0.0
    %2944 = vmatpush1.msra.mxu0 %v2905
    %2945 = vmatprep.subr.mxu0 0.0
    %2946 = vmatpush1.msra.mxu0 %v2906
    %2947 = vmatprep.subr.mxu0 0.0
    %2948 = vmatpush1.msra.mxu0 0.0
    %2949 = vmatprep.subr.mxu0 0.0
    %2950 = vmatpush1.msra.mxu0 0.0
    %2951 = vmatprep.subr.mxu0 0.0
    %2952 = vmatpush1.msra.mxu0 0.0
    %2953 = vmatprep.subr.mxu0 0.0
    %2954 = vmatpush1.msra.mxu0 0.0
    %2955 = vmatprep.subr.mxu0 0.0
    %2956 = vmatpush1.msra.mxu0 0.0
    %2957 = vmatprep.subr.mxu0 0.0
    %2958 = vmatpush1.msra.mxu0 0.0
    %2959 = vmatprep.subr.mxu0 0.0
    %2960 = vmatpush1.msra.mxu0 0.0
    %2961 = vmatprep.subr.mxu0 0.0
    %2962 = vmatpush1.msra.mxu0 0.0
    %2963 = vmatprep.subr.mxu0 0.0
    %2964 = vmatpush1.msra.mxu0 0.0
    %2965 = vmatprep.subr.mxu0 0.0
    %2966 = vmatpush1.msra.mxu0 0.0
    %2967 = vmatprep.subr.mxu0 0.0
    %2968 = vmatpush1.msra.mxu0 0.0
    %2969 = vmatprep.subr.mxu0 0.0
    %2970 = vmatpush1.msra.mxu0 0.0
    %2971 = vmatprep.subr.mxu0 0.0
    %2972 = vmatpush1.msra.mxu0 0.0
    %2973 = vmatprep.subr.mxu0 0.0
    %2974 = vmatpush1.msra.mxu0 0.0
    %2975 = vmatprep.subr.mxu0 0.0
    %2976 = vmatpush1.msra.mxu0 0.0
    %2977 = vmatprep.subr.mxu0 0.0
    %2978 = vmatpush1.msra.mxu0 0.0
    %2979 = vmatprep.mubr.f32.mxu0 0.0
    %2980 = vmatmul.mubr.f32.gmra.mrb[0].mxu0 %v2888
    %v2981 = vpop.f32.mrb[0].mxu0
    %v2982 = vadd.f32 %v2913, %v2981
    %v2983 = vpop.f32.mrb[0].mxu0
    %2984 = vmatprep.mubr.f32.mxu0 0.0
    %2985 = vmatmul.mubr.f32.gmra.mrb[0].mxu0 %v2889
    %v2986 = vpop.f32.mrb[0].mxu0
    %v2987 = vadd.f32 %v2913, %v2986
    %v2988 = vpop.f32.mrb[0].mxu0
    %2989 = vdwg.mxu0
    %v2990 = vmul.f32 %v113, %v2982
    %v2991 = vmul.f32 %v114, %v2987
    %s2992 = scalar_lea.vmem [#allocation10], 384
    %v2993 = vld [vmem:[%s2992] sm:$0xff]
    %v2994 = vld [vmem:[%s2992 + $0x8] sm:$0xff]
    %v2995 = vld [vmem:[%s2992 + $0x10] sm:$0xff]
    %v2996 = vld [vmem:[%s2992 + $0x18] sm:$0xff]
    %v2997 = vld [vmem:[%s2992 + $0x20] sm:$0xff]
    %v2998 = vld [vmem:[%s2992 + $0x28] sm:$0xff]
    %v2999 = vld [vmem:[%s2992 + $0x30] sm:$0xff]
    %v3000 = vld [vmem:[%s2992 + $0x38] sm:$0xff]
    %v3001 = vld [vmem:[%s2992 + $0x40] sm:$0xff]
    %v3002 = vld [vmem:[%s2992 + $0x48] sm:$0xff]
    %v3003 = vld [vmem:[%s2992 + $0x50] sm:$0xff]
    %v3004 = vld [vmem:[%s2992 + $0x58] sm:$0xff]
    %v3005 = vld [vmem:[%s2992 + $0x60] sm:$0xff]
    %v3006 = vld [vmem:[%s2992 + $0x68] sm:$0xff]
    %v3007 = vld [vmem:[%s2992 + $0x70] sm:$0xff]
    %v3008 = vld [vmem:[%s2992 + $0x78] sm:$0xff]
    %s3009 = scalar_lea.vmem %s6, 3
    %v3010 = vld [vmem:[%s3009] sm:$0x1]
    %v3012 = vlaneseq
    %v3013 = vshrl.u32 %v3012, 7
    %v3014 = vsub.s32 0, %v3013
    %v3015 = vrot.slane %v3010, %v3014
    %3017 = vmatprep.subr.mxu0 0.0
    %3018 = vmatpush1.msra.mxu0 %v2993
    %3019 = vmatprep.subr.mxu0 0.0
    %3020 = vmatpush1.msra.mxu0 %v2994
    %3021 = vmatprep.subr.mxu0 0.0
    %3022 = vmatpush1.msra.mxu0 %v2995
    %3023 = vmatprep.subr.mxu0 0.0
    %3024 = vmatpush1.msra.mxu0 %v2996
    %3025 = vmatprep.subr.mxu0 0.0
    %3026 = vmatpush1.msra.mxu0 %v2997
    %3027 = vmatprep.subr.mxu0 0.0
    %3028 = vmatpush1.msra.mxu0 %v2998
    %3029 = vmatprep.subr.mxu0 0.0
    %3030 = vmatpush1.msra.mxu0 %v2999
    %3031 = vmatprep.subr.mxu0 0.0
    %3032 = vmatpush1.msra.mxu0 %v3000
    %3033 = vmatprep.subr.mxu0 0.0
    %3034 = vmatpush1.msra.mxu0 %v3001
    %3035 = vmatprep.subr.mxu0 0.0
    %3036 = vmatpush1.msra.mxu0 %v3002
    %3037 = vmatprep.subr.mxu0 0.0
    %3038 = vmatpush1.msra.mxu0 %v3003
    %3039 = vmatprep.subr.mxu0 0.0
    %3040 = vmatpush1.msra.mxu0 %v3004
    %3041 = vmatprep.subr.mxu0 0.0
    %3042 = vmatpush1.msra.mxu0 %v3005
    %3043 = vmatprep.subr.mxu0 0.0
    %3044 = vmatpush1.msra.mxu0 %v3006
    %3045 = vmatprep.subr.mxu0 0.0
    %3046 = vmatpush1.msra.mxu0 %v3007
    %3047 = vmatprep.subr.mxu0 0.0
    %3048 = vmatpush1.msra.mxu0 %v3008
    %3049 = vmatprep.subr.mxu0 0.0
    %3050 = vmatpush1.msra.mxu0 0.0
    %3051 = vmatprep.subr.mxu0 0.0
    %3052 = vmatpush1.msra.mxu0 0.0
    %3053 = vmatprep.subr.mxu0 0.0
    %3054 = vmatpush1.msra.mxu0 0.0
    %3055 = vmatprep.subr.mxu0 0.0
    %3056 = vmatpush1.msra.mxu0 0.0
    %3057 = vmatprep.subr.mxu0 0.0
    %3058 = vmatpush1.msra.mxu0 0.0
    %3059 = vmatprep.subr.mxu0 0.0
    %3060 = vmatpush1.msra.mxu0 0.0
    %3061 = vmatprep.subr.mxu0 0.0
    %3062 = vmatpush1.msra.mxu0 0.0
    %3063 = vmatprep.subr.mxu0 0.0
    %3064 = vmatpush1.msra.mxu0 0.0
    %3065 = vmatprep.subr.mxu0 0.0
    %3066 = vmatpush1.msra.mxu0 0.0
    %3067 = vmatprep.subr.mxu0 0.0
    %3068 = vmatpush1.msra.mxu0 0.0
    %3069 = vmatprep.subr.mxu0 0.0
    %3070 = vmatpush1.msra.mxu0 0.0
    %3071 = vmatprep.subr.mxu0 0.0
    %3072 = vmatpush1.msra.mxu0 0.0
    %3073 = vmatprep.subr.mxu0 0.0
    %3074 = vmatpush1.msra.mxu0 0.0
    %3075 = vmatprep.subr.mxu0 0.0
    %3076 = vmatpush1.msra.mxu0 0.0
    %3077 = vmatprep.subr.mxu0 0.0
    %3078 = vmatpush1.msra.mxu0 0.0
    %3079 = vmatprep.subr.mxu0 0.0
    %3080 = vmatpush1.msra.mxu0 0.0
    %3081 = vmatprep.mubr.f32.mxu0 0.0
    %3082 = vmatmul.mubr.f32.gmra.mrb[0].mxu0 %v2888
    %v3083 = vpop.f32.mrb[0].mxu0
    %v3084 = vadd.f32 %v3015, %v3083
    %v3085 = vpop.f32.mrb[0].mxu0
    %3086 = vmatprep.mubr.f32.mxu0 0.0
    %3087 = vmatmul.mubr.f32.gmra.mrb[0].mxu0 %v2889
    %v3088 = vpop.f32.mrb[0].mxu0
    %v3089 = vadd.f32 %v3015, %v3088
    %v3090 = vpop.f32.mrb[0].mxu0
    %3091 = vdwg.mxu0
    %v3092 = vmul.f32 %v123, %v3084
    %v3093 = vmul.f32 %v124, %v3089
    %v3094 = vadd.f32 %v2990, %v3092
    %v3095 = vadd.f32 %v2991, %v3093
    %v3096 = vmul.f32 %v3094, %v108
    %v3097 = vmul.f32 %v3095, %v108
    %3098 = vadd.xlane.f32.xlu0 %v3096
    %v3099 = vpop.xlane.xlu0 %3098
    %3100 = vadd.xlane.f32.xlu0 %v3097
    %v3101 = vpop.xlane.xlu0 %3100
    %v3102 = vmul.f32 %v3099, 0.03125
    %v3103 = vmul.f32 %v3101, 0.03125
    %v3104 = vsub.f32 %v3094, %v3102
    %v3105 = vsub.f32 %v3095, %v3103
    %v3106 = vmul.f32 %v3104, %v108
    %v3107 = vmul.f32 %v3105, %v108
    %v3108 = vmul.f32 %v3106, %v3106
    %v3109 = vmul.f32 %v3107, %v3107
    %3110 = vadd.xlane.f32.xlu0 %v3108
    %v3111 = vpop.xlane.xlu0 %3110
    %3112 = vadd.xlane.f32.xlu0 %v3109
    %v3113 = vpop.xlane.xlu0 %3112
    %v3114 = vmul.f32 %v3111, 0.03125
    %v3115 = vmul.f32 %v3113, 0.03125
    %v3116 = vadd.f32 %v3114, 1e-05
    %v3117 = vadd.f32 %v3115, 1e-05
    %v3118 = vrsqrt.pop %v3116
    %v3119 = vrsqrt.pop %v3117
    %v3120 = vmul.f32 %v3106, %v3118
    %v3121 = vmul.f32 %v3107, %v3119
    %s3122 = scalar_lea.vmem %s7, 2
    %v3123 = vld [vmem:[%s3122] sm:$0x1]
    %v3125 = vlaneseq
    %v3126 = vshrl.u32 %v3125, 7
    %v3127 = vsub.s32 0, %v3126
    %v3128 = vrot.slane %v3123, %v3127
    %v3130 = vmul.f32 %v3120, %v3128
    %v3131 = vmul.f32 %v3121, %v3128
    %s3132 = scalar_lea.vmem %s8, 2
    %v3133 = vld [vmem:[%s3132] sm:$0x1]
    %v3135 = vlaneseq
    %v3136 = vshrl.u32 %v3135, 7
    %v3137 = vsub.s32 0, %v3136
    %v3138 = vrot.slane %v3133, %v3137
    %v3140 = vadd.f32 %v3130, %v3138
    %v3141 = vadd.f32 %v3131, %v3138
    %v3142 = vmul.f32 %v113, %v3140
    %v3143 = vmul.f32 %v114, %v3141
    %s3144 = scalar_lea.vmem %s7, 3
    %v3145 = vld [vmem:[%s3144] sm:$0x1]
    %v3147 = vlaneseq
    %v3148 = vshrl.u32 %v3147, 7
    %v3149 = vsub.s32 0, %v3148
    %v3150 = vrot.slane %v3145, %v3149
    %v3152 = vmul.f32 %v3120, %v3150
    %v3153 = vmul.f32 %v3121, %v3150
    %s3154 = scalar_lea.vmem %s8, 3
    %v3155 = vld [vmem:[%s3154] sm:$0x1]
    %v3157 = vlaneseq
    %v3158 = vshrl.u32 %v3157, 7
    %v3159 = vsub.s32 0, %v3158
    %v3160 = vrot.slane %v3155, %v3159
    %v3162 = vadd.f32 %v3152, %v3160
    %v3163 = vadd.f32 %v3153, %v3160
    %v3164 = vmul.f32 %v123, %v3162
    %v3165 = vmul.f32 %v124, %v3163
    %v3166 = vadd.f32 %v3142, %v3164
    %v3167 = vadd.f32 %v3143, %v3165
    %v3168 = vadd.f32 %v3166, %v1656
    %v3169 = vadd.f32 %v3167, %v1657
    %3170 = vst [vmem:[#allocation11] sm:$0xff] %v3168
    %3171 = vst [vmem:[#allocation11 + $0x8] sm:$0xff] %v3169
    // Predicated region
    $region58: #{tpu_custom_call.1} parent=1 // pred_check
      _
    $region59: #{tpu_custom_call.1} parent=1 // pred_check_branch
      %3173 = sbr.rel (0) target = $region61
    $region60: #{tpu_custom_call.1} parent=1 // pred_region
      %s3175 = ssub.s32 256, 256
      %3176 = vsyncadd [#allocation4], %s3175
      %s3177 = sshll.u32 [#allocation11], 4
      %s3178 = int_to_ptr.vmem [resolvable:$true] %s3177
      %3183 = dma.vmem_to_hbm [thread:$0]  %s3178, 256, %s9, [#allocation4], 128, 128, 8
    $region61: #{tpu_custom_call.1} parent=1 // pred_fallthru
      _
    // Predicated region
    $region62: #{tpu_custom_call.1} parent=1 // pred_check
      _
    $region63: #{tpu_custom_call.1} parent=1 // pred_check_branch
      %3185 = sbr.rel (0) target = $region65
    $region64: #{tpu_custom_call.1} parent=1 // pred_region
      %3186 = dma.done [#allocation4], 256
    $region65: #{tpu_custom_call.1} parent=1 // pred_fallthru
      _
    %3187 = vsyncpa [#allocation3], 1
    %3188 = vsyncpa [#allocation6], 1
    %3189 = vsyncpa [#allocation9], 1
    %3190 = vsyncpa [#allocation4], 1

</llo_original>
